<compile_context>
chip_gen: v7x
topology: tpu7x:2x2x1
jax: 0.10.0
libtpu: 0.0.40
codegen_flags: <defaults>
</compile_context>

<pallas_src>
import functools

import jax
import jax.numpy as jnp
from jax import lax
from jax.experimental import pallas as pl
from jax.experimental.pallas import tpu as pltpu


def cbam_kernel(x_ref, w1t_ref, b1_ref, w2t_ref, b2_ref, row_ref, col_ref,
                cw_ref, cb_ref, o_ref, *, H, W):
    """CBAM forward for one batch element, (C, H*W) layout (spatial on lanes)."""
    C, HW = x_ref.shape
    KH, KW, P = 7, 7, 3

    x = x_ref[...].astype(jnp.float32)                       # (C, HW)

    # ---------------- Channel attention (fused avg/max MLP) ----------------
    avg = jnp.mean(x, axis=1, keepdims=True)                  # (C, 1)  adaptive avg pool
    mxp = jnp.max(x, axis=1, keepdims=True)                   # (C, 1)  adaptive max pool
    sel = lax.broadcasted_iota(jnp.int32, (C, 2), 1)
    v = jnp.where(sel == 0, avg, mxp)                         # (C, 2): col0=avg, col1=max

    # Shared MLP in column form: h = relu(W1^T v + b1), y = W2^T h + b2.
    h = jnp.maximum(
        jnp.dot(w1t_ref[...], v, preferred_element_type=jnp.float32) + b1_ref[...],
        0.0)                                                  # (hidden, 2)
    y = jnp.dot(w2t_ref[...], h, preferred_element_type=jnp.float32) + b2_ref[...]  # (C, 2)
    gate_c = jax.nn.sigmoid(jnp.sum(y, axis=1, keepdims=True))  # (C, 1) = sigmoid(fc(avg)+fc(max))

    xc = x * gate_c                                           # lane-broadcast multiply (C, HW)

    # ---------------- Spatial attention ----------------
    # ChannelPool over C (leading axis): elementwise folds, stays lane-dense.
    pmax = jnp.max(xc, axis=0, keepdims=True)                 # (1, HW)
    pmean = jnp.mean(xc, axis=0, keepdims=True)               # (1, HW)

    row = row_ref[...]                                        # (1, HW) int32: h of each lane
    col = col_ref[...]                                        # (1, HW) int32: w of each lane

    # Column validity masks for each horizontal tap (zero padding of width 3).
    cmask = [jnp.logical_and(col + dw >= 0, col + dw < W) for dw in range(-P, P + 1)]

    # 7x7 conv (2 in-channels -> 1 out-channel) as 49 taps on the flattened plane.
    acc = jnp.zeros((1, HW), jnp.float32) + cb_ref[0]
    for dh in range(-P, P + 1):
        rmask = jnp.logical_and(row + dh >= 0, row + dh < H)
        for dw in range(-P, P + 1):
            s = dh * W + dw                                   # flat source offset
            if s == 0:
                smax, smean = pmax, pmean
            else:
                k = (-s) % HW                                 # shifted[i] = p[i + s]
                smax = pltpu.roll(pmax, k, 1)
                smean = pltpu.roll(pmean, k, 1)
            w_max = cw_ref[(dh + P) * KW + (dw + P)]           # conv weight, channel 0 (max)
            w_mean = cw_ref[KH * KW + (dh + P) * KW + (dw + P)]  # channel 1 (mean)
            contrib = w_max * smax + w_mean * smean
            valid = jnp.logical_and(rmask, cmask[dw + P])
            acc = acc + jnp.where(valid, contrib, 0.0)

    gate_s = jax.nn.sigmoid(acc)                              # (1, HW)
    o_ref[...] = (xc * gate_s).astype(o_ref.dtype)            # lane-dense store


def cbam_pallas(x_nchw, w1, b1, w2, b2, conv_w, conv_b):
    """x_nchw: (B, C, H, W) float32 -> (B, C, H, W) float32."""
    B, C, H, W = x_nchw.shape
    hidden = w1.shape[1]
    HW = H * W

    # Free contiguous reshape only (no HBM transpose round trips).
    x = x_nchw.reshape(B, C, HW)

    # Tiny one-off parameter prep: MLP weights in column (transposed) form.
    w1t = jnp.transpose(w1)                                   # (hidden, C)
    w2t = jnp.transpose(w2)                                   # (C, hidden)
    b1c = b1.reshape(hidden, 1)
    b2c = b2.reshape(C, 1)

    # Precomputed row / col index of every flattened lane (avoids in-kernel int div).
    idx = jnp.arange(HW, dtype=jnp.int32)
    row_ids = (idx // W).reshape(1, HW)
    col_ids = (idx % W).reshape(1, HW)

    kernel = functools.partial(cbam_kernel, H=H, W=W)

    out = pl.pallas_call(
        kernel,
        out_shape=jax.ShapeDtypeStruct((B, C, HW), x_nchw.dtype),
        grid_spec=pltpu.PrefetchScalarGridSpec(
            num_scalar_prefetch=0,
            grid=(B,),
            in_specs=[
                pl.BlockSpec((None, C, HW), lambda b: (b, 0, 0)),
                pl.BlockSpec((hidden, C), lambda b: (0, 0)),
                pl.BlockSpec((hidden, 1), lambda b: (0, 0)),
                pl.BlockSpec((C, hidden), lambda b: (0, 0)),
                pl.BlockSpec((C, 1), lambda b: (0, 0)),
                pl.BlockSpec((1, HW), lambda b: (0, 0)),
                pl.BlockSpec((1, HW), lambda b: (0, 0)),
                pl.BlockSpec(memory_space=pltpu.MemorySpace.SMEM),  # conv weights (98,)
                pl.BlockSpec(memory_space=pltpu.MemorySpace.SMEM),  # conv bias   (1,)
            ],
            out_specs=pl.BlockSpec((None, C, HW), lambda b: (b, 0, 0)),
        ),
        compiler_params=pltpu.CompilerParams(
            dimension_semantics=("parallel",)),
    )(x, w1t, b1c, w2t, b2c, row_ids, col_ids, conv_w, conv_b)

    return out.reshape(B, C, H, W)


def cbam_ref(x, w1, b1, w2, b2, conv_w, conv_b):
    """Pure-JAX NCHW reference matching the PyTorch module."""
    avg = jnp.mean(x, axis=(2, 3))
    mxp = jnp.max(x, axis=(2, 3))

    def fc(v):
        h = jnp.maximum(v @ w1 + b1, 0.0)
        return h @ w2 + b2

    gate_c = jax.nn.sigmoid(fc(avg) + fc(mxp))                # (B, C)
    xc = x * gate_c[:, :, None, None]

    pooled = jnp.stack([jnp.max(xc, axis=1), jnp.mean(xc, axis=1)], axis=1)
    kernel = conv_w.reshape(1, 2, 7, 7)                       # OIHW
    y = jax.lax.conv_general_dilated(
        pooled, kernel, window_strides=(1, 1), padding=((3, 3), (3, 3)),
        dimension_numbers=("NCHW", "OIHW", "NCHW")) + conv_b[0]
    return xc * jax.nn.sigmoid(y)


if __name__ == "__main__":
    B, C, H, W = 2, 32, 16, 16
    reduction = 16
    hidden = C // reduction

    key = jax.random.PRNGKey(0)
    ks = jax.random.split(key, 7)
    x = jax.random.normal(ks[0], (B, C, H, W), jnp.float32)
    # Linear weights stored transposed relative to PyTorch (in, out).
    w1 = jax.random.normal(ks[1], (C, hidden), jnp.float32) * 0.1
    b1 = jax.random.normal(ks[2], (1, hidden), jnp.float32) * 0.1
    w2 = jax.random.normal(ks[3], (hidden, C), jnp.float32) * 0.1
    b2 = jax.random.normal(ks[4], (1, C), jnp.float32) * 0.1
    conv_w = jax.random.normal(ks[5], (2 * 7 * 7,), jnp.float32) * 0.1  # flat (out=1,in=2,7,7)
    conv_b = jax.random.normal(ks[6], (1,), jnp.float32) * 0.1

    out = cbam_pallas(x, w1, b1, w2, b2, conv_w, conv_b)
    out = jax.block_until_ready(out)

    ref = cbam_ref(x, w1, b1, w2, b2, conv_w, conv_b)
    assert out.shape == x.shape and out.dtype == x.dtype
    if not jnp.allclose(out, ref, atol=1e-4, rtol=1e-4):
        raise AssertionError("Pallas CBAM output does not match JAX reference")
    print("KERNEL_OK")
</pallas_src>

<mosaic_0001>
module attributes {stable_mosaic.version = 11 : i64} {
  func.func @cbam_kernel(%arg0: i32, %arg1: memref<1x32x256xf32, #tpu.memory_space<vmem>>, %arg2: memref<2x32xf32, #tpu.memory_space<vmem>>, %arg3: memref<2x1xf32, #tpu.memory_space<vmem>>, %arg4: memref<32x2xf32, #tpu.memory_space<vmem>>, %arg5: memref<32x1xf32, #tpu.memory_space<vmem>>, %arg6: memref<1x256xi32, #tpu.memory_space<vmem>>, %arg7: memref<1x256xi32, #tpu.memory_space<vmem>>, %arg8: memref<98xf32, #tpu.memory_space<smem>>, %arg9: memref<1xf32, #tpu.memory_space<smem>>, %arg10: memref<1x32x256xf32, #tpu.memory_space<vmem>>) attributes {dimension_semantics = [#tpu.dimension_semantics<parallel>], iteration_bounds = array<i64: 2>, scalar_prefetch = 0 : i64, scratch_operands = 0 : i64, tpu.core_type = #tpu.core_type<tc>, window_params = [{transform_indices = @transform_0, window_bounds = array<i64: 1, 32, 256>}, {pipeline_mode = #tpu.pipeline_mode<synchronous>, transform_indices = @transform_1, window_bounds = array<i64: 2, 32>}, {pipeline_mode = #tpu.pipeline_mode<synchronous>, transform_indices = @transform_2, window_bounds = array<i64: 2, 1>}, {pipeline_mode = #tpu.pipeline_mode<synchronous>, transform_indices = @transform_3, window_bounds = array<i64: 32, 2>}, {pipeline_mode = #tpu.pipeline_mode<synchronous>, transform_indices = @transform_4, window_bounds = array<i64: 32, 1>}, {pipeline_mode = #tpu.pipeline_mode<synchronous>, transform_indices = @transform_5, window_bounds = array<i64: 1, 256>}, {pipeline_mode = #tpu.pipeline_mode<synchronous>, transform_indices = @transform_6, window_bounds = array<i64: 1, 256>}, {transform_indices = @transform_7, window_bounds = array<i64: 98>}, {transform_indices = @transform_8, window_bounds = array<i64: 1>}, {transform_indices = @transform_9, window_bounds = array<i64: 1, 32, 256>}]} {
    %c0 = arith.constant 0 : index
    %c0_0 = arith.constant 0 : index
    %c0_1 = arith.constant 0 : index
    %0 = vector.load %arg1[%c0, %c0_0, %c0_1] : memref<1x32x256xf32, #tpu.memory_space<vmem>>, vector<1x32x256xf32>
    %1 = vector.shape_cast %0 : vector<1x32x256xf32> to vector<32x256xf32>
    %cst = arith.constant dense<0.000000e+00> : vector<32xf32>
    %2 = vector.multi_reduction <add>, %1, %cst [1] : vector<32x256xf32> to vector<32xf32>
    %3 = vector.shape_cast %2 : vector<32xf32> to vector<32x1xf32>
    %cst_2 = arith.constant 2.560000e+02 : f32
    %4 = vector.broadcast %cst_2 : f32 to vector<32x1xf32>
    %5 = arith.divf %3, %4 : vector<32x1xf32>
    %cst_3 = arith.constant dense<0xFF800000> : vector<32xf32>
    %6 = vector.multi_reduction <maximumf>, %1, %cst_3 [1] : vector<32x256xf32> to vector<32xf32>
    %7 = vector.shape_cast %6 : vector<32xf32> to vector<32x1xf32>
    %8 = tpu.iota {dimensions = array<i32: 1>} : vector<32x2xi32>
    %c0_i32 = arith.constant 0 : i32
    %9 = vector.broadcast %c0_i32 : i32 to vector<32x2xi32>
    %10 = arith.cmpi eq, %8, %9 : vector<32x2xi32>
    %11 = vector.shape_cast %5 : vector<32x1xf32> to vector<32x1xf32>
    %12 = vector.broadcast %11 : vector<32x1xf32> to vector<32x2xf32>
    %13 = vector.shape_cast %7 : vector<32x1xf32> to vector<32x1xf32>
    %14 = vector.broadcast %13 : vector<32x1xf32> to vector<32x2xf32>
    %15 = arith.select %10, %12, %14 : vector<32x2xi1>, vector<32x2xf32>
    %c0_4 = arith.constant 0 : index
    %c0_5 = arith.constant 0 : index
    %16 = vector.load %arg2[%c0_4, %c0_5] : memref<2x32xf32, #tpu.memory_space<vmem>>, vector<2x32xf32>
    %cst_6 = arith.constant dense<0.000000e+00> : vector<2x2xf32>
    %17 = tpu.matmul %16, %15, %cst_6 {dimension_numbers = #tpu.dot_dimension_numbers<[1], [0], [0], [1], [0, 0, 1, 1], [], []>} : vector<2x32xf32>, vector<32x2xf32>, vector<2x2xf32> -> vector<2x2xf32>
    %c0_7 = arith.constant 0 : index
    %c0_8 = arith.constant 0 : index
    %18 = vector.load %arg3[%c0_7, %c0_8] : memref<2x1xf32, #tpu.memory_space<vmem>>, vector<2x1xf32>
    %19 = vector.broadcast %18 : vector<2x1xf32> to vector<2x2xf32>
    %20 = arith.addf %17, %19 : vector<2x2xf32>
    %cst_9 = arith.constant 0.000000e+00 : f32
    %21 = vector.broadcast %cst_9 : f32 to vector<2x2xf32>
    %22 = arith.maximumf %20, %21 : vector<2x2xf32>
    %c0_10 = arith.constant 0 : index
    %c0_11 = arith.constant 0 : index
    %23 = vector.load %arg4[%c0_10, %c0_11] : memref<32x2xf32, #tpu.memory_space<vmem>>, vector<32x2xf32>
    %cst_12 = arith.constant dense<0.000000e+00> : vector<32x2xf32>
    %24 = tpu.matmul %23, %22, %cst_12 {dimension_numbers = #tpu.dot_dimension_numbers<[1], [0], [0], [1], [0, 0, 1, 1], [], []>} : vector<32x2xf32>, vector<2x2xf32>, vector<32x2xf32> -> vector<32x2xf32>
    %c0_13 = arith.constant 0 : index
    %c0_14 = arith.constant 0 : index
    %25 = vector.load %arg5[%c0_13, %c0_14] : memref<32x1xf32, #tpu.memory_space<vmem>>, vector<32x1xf32>
    %26 = vector.broadcast %25 : vector<32x1xf32> to vector<32x2xf32>
    %27 = arith.addf %24, %26 : vector<32x2xf32>
    %cst_15 = arith.constant dense<0.000000e+00> : vector<32xf32>
    %28 = vector.multi_reduction <add>, %27, %cst_15 [1] : vector<32x2xf32> to vector<32xf32>
    %29 = vector.shape_cast %28 : vector<32xf32> to vector<32x1xf32>
    %30 = arith.negf %29 : vector<32x1xf32>
    %31 = math.exp %30 : vector<32x1xf32>
    %cst_16 = arith.constant 1.000000e+00 : f32
    %32 = vector.broadcast %cst_16 : f32 to vector<32x1xf32>
    %33 = arith.addf %32, %31 : vector<32x1xf32>
    %34 = arith.divf %32, %33 : vector<32x1xf32>
    %35 = vector.broadcast %34 : vector<32x1xf32> to vector<32x256xf32>
    %36 = arith.mulf %1, %35 : vector<32x256xf32>
    %cst_17 = arith.constant dense<0xFF800000> : vector<256xf32>
    %37 = vector.multi_reduction <maximumf>, %36, %cst_17 [0] : vector<32x256xf32> to vector<256xf32>
    %38 = vector.shape_cast %37 : vector<256xf32> to vector<1x256xf32>
    %cst_18 = arith.constant dense<0.000000e+00> : vector<256xf32>
    %39 = vector.multi_reduction <add>, %36, %cst_18 [0] : vector<32x256xf32> to vector<256xf32>
    %40 = vector.shape_cast %39 : vector<256xf32> to vector<1x256xf32>
    %cst_19 = arith.constant 3.200000e+01 : f32
    %41 = vector.broadcast %cst_19 : f32 to vector<1x256xf32>
    %42 = arith.divf %40, %41 : vector<1x256xf32>
    %c0_20 = arith.constant 0 : index
    %c0_21 = arith.constant 0 : index
    %43 = vector.load %arg6[%c0_20, %c0_21] : memref<1x256xi32, #tpu.memory_space<vmem>>, vector<1x256xi32>
    %c0_22 = arith.constant 0 : index
    %c0_23 = arith.constant 0 : index
    %44 = vector.load %arg7[%c0_22, %c0_23] : memref<1x256xi32, #tpu.memory_space<vmem>>, vector<1x256xi32>
    %c-3_i32 = arith.constant -3 : i32
    %45 = vector.broadcast %c-3_i32 : i32 to vector<1x256xi32>
    %46 = arith.addi %44, %45 : vector<1x256xi32>
    %c0_i32_24 = arith.constant 0 : i32
    %47 = vector.broadcast %c0_i32_24 : i32 to vector<1x256xi32>
    %48 = arith.cmpi sge, %46, %47 : vector<1x256xi32>
    %c-3_i32_25 = arith.constant -3 : i32
    %49 = vector.broadcast %c-3_i32_25 : i32 to vector<1x256xi32>
    %50 = arith.addi %44, %49 : vector<1x256xi32>
    %c16_i32 = arith.constant 16 : i32
    %51 = vector.broadcast %c16_i32 : i32 to vector<1x256xi32>
    %52 = arith.cmpi slt, %50, %51 : vector<1x256xi32>
    %53 = arith.andi %48, %52 : vector<1x256xi1>
    %c-2_i32 = arith.constant -2 : i32
    %54 = vector.broadcast %c-2_i32 : i32 to vector<1x256xi32>
    %55 = arith.addi %44, %54 : vector<1x256xi32>
    %c0_i32_26 = arith.constant 0 : i32
    %56 = vector.broadcast %c0_i32_26 : i32 to vector<1x256xi32>
    %57 = arith.cmpi sge, %55, %56 : vector<1x256xi32>
    %c-2_i32_27 = arith.constant -2 : i32
    %58 = vector.broadcast %c-2_i32_27 : i32 to vector<1x256xi32>
    %59 = arith.addi %44, %58 : vector<1x256xi32>
    %c16_i32_28 = arith.constant 16 : i32
    %60 = vector.broadcast %c16_i32_28 : i32 to vector<1x256xi32>
    %61 = arith.cmpi slt, %59, %60 : vector<1x256xi32>
    %62 = arith.andi %57, %61 : vector<1x256xi1>
    %c-1_i32 = arith.constant -1 : i32
    %63 = vector.broadcast %c-1_i32 : i32 to vector<1x256xi32>
    %64 = arith.addi %44, %63 : vector<1x256xi32>
    %c0_i32_29 = arith.constant 0 : i32
    %65 = vector.broadcast %c0_i32_29 : i32 to vector<1x256xi32>
    %66 = arith.cmpi sge, %64, %65 : vector<1x256xi32>
    %c-1_i32_30 = arith.constant -1 : i32
    %67 = vector.broadcast %c-1_i32_30 : i32 to vector<1x256xi32>
    %68 = arith.addi %44, %67 : vector<1x256xi32>
    %c16_i32_31 = arith.constant 16 : i32
    %69 = vector.broadcast %c16_i32_31 : i32 to vector<1x256xi32>
    %70 = arith.cmpi slt, %68, %69 : vector<1x256xi32>
    %71 = arith.andi %66, %70 : vector<1x256xi1>
    %c0_i32_32 = arith.constant 0 : i32
    %72 = vector.broadcast %c0_i32_32 : i32 to vector<1x256xi32>
    %73 = arith.addi %44, %72 : vector<1x256xi32>
    %c0_i32_33 = arith.constant 0 : i32
    %74 = vector.broadcast %c0_i32_33 : i32 to vector<1x256xi32>
    %75 = arith.cmpi sge, %73, %74 : vector<1x256xi32>
    %c0_i32_34 = arith.constant 0 : i32
    %76 = vector.broadcast %c0_i32_34 : i32 to vector<1x256xi32>
    %77 = arith.addi %44, %76 : vector<1x256xi32>
    %c16_i32_35 = arith.constant 16 : i32
    %78 = vector.broadcast %c16_i32_35 : i32 to vector<1x256xi32>
    %79 = arith.cmpi slt, %77, %78 : vector<1x256xi32>
    %80 = arith.andi %75, %79 : vector<1x256xi1>
    %c1_i32 = arith.constant 1 : i32
    %81 = vector.broadcast %c1_i32 : i32 to vector<1x256xi32>
    %82 = arith.addi %44, %81 : vector<1x256xi32>
    %c0_i32_36 = arith.constant 0 : i32
    %83 = vector.broadcast %c0_i32_36 : i32 to vector<1x256xi32>
    %84 = arith.cmpi sge, %82, %83 : vector<1x256xi32>
    %c1_i32_37 = arith.constant 1 : i32
    %85 = vector.broadcast %c1_i32_37 : i32 to vector<1x256xi32>
    %86 = arith.addi %44, %85 : vector<1x256xi32>
    %c16_i32_38 = arith.constant 16 : i32
    %87 = vector.broadcast %c16_i32_38 : i32 to vector<1x256xi32>
    %88 = arith.cmpi slt, %86, %87 : vector<1x256xi32>
    %89 = arith.andi %84, %88 : vector<1x256xi1>
    %c2_i32 = arith.constant 2 : i32
    %90 = vector.broadcast %c2_i32 : i32 to vector<1x256xi32>
    %91 = arith.addi %44, %90 : vector<1x256xi32>
    %c0_i32_39 = arith.constant 0 : i32
    %92 = vector.broadcast %c0_i32_39 : i32 to vector<1x256xi32>
    %93 = arith.cmpi sge, %91, %92 : vector<1x256xi32>
    %c2_i32_40 = arith.constant 2 : i32
    %94 = vector.broadcast %c2_i32_40 : i32 to vector<1x256xi32>
    %95 = arith.addi %44, %94 : vector<1x256xi32>
    %c16_i32_41 = arith.constant 16 : i32
    %96 = vector.broadcast %c16_i32_41 : i32 to vector<1x256xi32>
    %97 = arith.cmpi slt, %95, %96 : vector<1x256xi32>
    %98 = arith.andi %93, %97 : vector<1x256xi1>
    %c3_i32 = arith.constant 3 : i32
    %99 = vector.broadcast %c3_i32 : i32 to vector<1x256xi32>
    %100 = arith.addi %44, %99 : vector<1x256xi32>
    %c0_i32_42 = arith.constant 0 : i32
    %101 = vector.broadcast %c0_i32_42 : i32 to vector<1x256xi32>
    %102 = arith.cmpi sge, %100, %101 : vector<1x256xi32>
    %c3_i32_43 = arith.constant 3 : i32
    %103 = vector.broadcast %c3_i32_43 : i32 to vector<1x256xi32>
    %104 = arith.addi %44, %103 : vector<1x256xi32>
    %c16_i32_44 = arith.constant 16 : i32
    %105 = vector.broadcast %c16_i32_44 : i32 to vector<1x256xi32>
    %106 = arith.cmpi slt, %104, %105 : vector<1x256xi32>
    %107 = arith.andi %102, %106 : vector<1x256xi1>
    %cst_45 = arith.constant 0.000000e+00 : f32
    %108 = vector.broadcast %cst_45 : f32 to vector<1x256xf32>
    %c0_46 = arith.constant 0 : index
    %109 = memref.load %arg9[%c0_46] : memref<1xf32, #tpu.memory_space<smem>>
    %110 = vector.broadcast %109 : f32 to vector<1x256xf32>
    %111 = arith.addf %108, %110 : vector<1x256xf32>
    %c-3_i32_47 = arith.constant -3 : i32
    %112 = vector.broadcast %c-3_i32_47 : i32 to vector<1x256xi32>
    %113 = arith.addi %43, %112 : vector<1x256xi32>
    %c0_i32_48 = arith.constant 0 : i32
    %114 = vector.broadcast %c0_i32_48 : i32 to vector<1x256xi32>
    %115 = arith.cmpi sge, %113, %114 : vector<1x256xi32>
    %c-3_i32_49 = arith.constant -3 : i32
    %116 = vector.broadcast %c-3_i32_49 : i32 to vector<1x256xi32>
    %117 = arith.addi %43, %116 : vector<1x256xi32>
    %c16_i32_50 = arith.constant 16 : i32
    %118 = vector.broadcast %c16_i32_50 : i32 to vector<1x256xi32>
    %119 = arith.cmpi slt, %117, %118 : vector<1x256xi32>
    %120 = arith.andi %115, %119 : vector<1x256xi1>
    %c51_i32 = arith.constant 51 : i32
    %121 = tpu.dynamic_rotate %38 by %c51_i32 dim 1 : vector<1x256xf32>, i32 -> vector<1x256xf32>
    %c51_i32_51 = arith.constant 51 : i32
    %122 = tpu.dynamic_rotate %42 by %c51_i32_51 dim 1 : vector<1x256xf32>, i32 -> vector<1x256xf32>
    %c0_52 = arith.constant 0 : index
    %123 = memref.load %arg8[%c0_52] : memref<98xf32, #tpu.memory_space<smem>>
    %c49 = arith.constant 49 : index
    %124 = memref.load %arg8[%c49] : memref<98xf32, #tpu.memory_space<smem>>
    %125 = vector.broadcast %123 : f32 to vector<1x256xf32>
    %126 = arith.mulf %125, %121 : vector<1x256xf32>
    %127 = vector.broadcast %124 : f32 to vector<1x256xf32>
    %128 = arith.mulf %127, %122 : vector<1x256xf32>
    %129 = arith.addf %126, %128 : vector<1x256xf32>
    %130 = arith.andi %120, %53 : vector<1x256xi1>
    %cst_53 = arith.constant 0.000000e+00 : f32
    %131 = vector.broadcast %cst_53 : f32 to vector<1x256xf32>
    %132 = arith.select %130, %129, %131 : vector<1x256xi1>, vector<1x256xf32>
    %133 = arith.addf %111, %132 : vector<1x256xf32>
    %c50_i32 = arith.constant 50 : i32
    %134 = tpu.dynamic_rotate %38 by %c50_i32 dim 1 : vector<1x256xf32>, i32 -> vector<1x256xf32>
    %c50_i32_54 = arith.constant 50 : i32
    %135 = tpu.dynamic_rotate %42 by %c50_i32_54 dim 1 : vector<1x256xf32>, i32 -> vector<1x256xf32>
    %c1 = arith.constant 1 : index
    %136 = memref.load %arg8[%c1] : memref<98xf32, #tpu.memory_space<smem>>
    %c50 = arith.constant 50 : index
    %137 = memref.load %arg8[%c50] : memref<98xf32, #tpu.memory_space<smem>>
    %138 = vector.broadcast %136 : f32 to vector<1x256xf32>
    %139 = arith.mulf %138, %134 : vector<1x256xf32>
    %140 = vector.broadcast %137 : f32 to vector<1x256xf32>
    %141 = arith.mulf %140, %135 : vector<1x256xf32>
    %142 = arith.addf %139, %141 : vector<1x256xf32>
    %143 = arith.andi %120, %62 : vector<1x256xi1>
    %cst_55 = arith.constant 0.000000e+00 : f32
    %144 = vector.broadcast %cst_55 : f32 to vector<1x256xf32>
    %145 = arith.select %143, %142, %144 : vector<1x256xi1>, vector<1x256xf32>
    %146 = arith.addf %133, %145 : vector<1x256xf32>
    %c49_i32 = arith.constant 49 : i32
    %147 = tpu.dynamic_rotate %38 by %c49_i32 dim 1 : vector<1x256xf32>, i32 -> vector<1x256xf32>
    %c49_i32_56 = arith.constant 49 : i32
    %148 = tpu.dynamic_rotate %42 by %c49_i32_56 dim 1 : vector<1x256xf32>, i32 -> vector<1x256xf32>
    %c2 = arith.constant 2 : index
    %149 = memref.load %arg8[%c2] : memref<98xf32, #tpu.memory_space<smem>>
    %c51 = arith.constant 51 : index
    %150 = memref.load %arg8[%c51] : memref<98xf32, #tpu.memory_space<smem>>
    %151 = vector.broadcast %149 : f32 to vector<1x256xf32>
    %152 = arith.mulf %151, %147 : vector<1x256xf32>
    %153 = vector.broadcast %150 : f32 to vector<1x256xf32>
    %154 = arith.mulf %153, %148 : vector<1x256xf32>
    %155 = arith.addf %152, %154 : vector<1x256xf32>
    %156 = arith.andi %120, %71 : vector<1x256xi1>
    %cst_57 = arith.constant 0.000000e+00 : f32
    %157 = vector.broadcast %cst_57 : f32 to vector<1x256xf32>
    %158 = arith.select %156, %155, %157 : vector<1x256xi1>, vector<1x256xf32>
    %159 = arith.addf %146, %158 : vector<1x256xf32>
    %c48_i32 = arith.constant 48 : i32
    %160 = tpu.dynamic_rotate %38 by %c48_i32 dim 1 : vector<1x256xf32>, i32 -> vector<1x256xf32>
    %c48_i32_58 = arith.constant 48 : i32
    %161 = tpu.dynamic_rotate %42 by %c48_i32_58 dim 1 : vector<1x256xf32>, i32 -> vector<1x256xf32>
    %c3 = arith.constant 3 : index
    %162 = memref.load %arg8[%c3] : memref<98xf32, #tpu.memory_space<smem>>
    %c52 = arith.constant 52 : index
    %163 = memref.load %arg8[%c52] : memref<98xf32, #tpu.memory_space<smem>>
    %164 = vector.broadcast %162 : f32 to vector<1x256xf32>
    %165 = arith.mulf %164, %160 : vector<1x256xf32>
    %166 = vector.broadcast %163 : f32 to vector<1x256xf32>
    %167 = arith.mulf %166, %161 : vector<1x256xf32>
    %168 = arith.addf %165, %167 : vector<1x256xf32>
    %169 = arith.andi %120, %80 : vector<1x256xi1>
    %cst_59 = arith.constant 0.000000e+00 : f32
    %170 = vector.broadcast %cst_59 : f32 to vector<1x256xf32>
    %171 = arith.select %169, %168, %170 : vector<1x256xi1>, vector<1x256xf32>
    %172 = arith.addf %159, %171 : vector<1x256xf32>
    %c47_i32 = arith.constant 47 : i32
    %173 = tpu.dynamic_rotate %38 by %c47_i32 dim 1 : vector<1x256xf32>, i32 -> vector<1x256xf32>
    %c47_i32_60 = arith.constant 47 : i32
    %174 = tpu.dynamic_rotate %42 by %c47_i32_60 dim 1 : vector<1x256xf32>, i32 -> vector<1x256xf32>
    %c4 = arith.constant 4 : index
    %175 = memref.load %arg8[%c4] : memref<98xf32, #tpu.memory_space<smem>>
    %c53 = arith.constant 53 : index
    %176 = memref.load %arg8[%c53] : memref<98xf32, #tpu.memory_space<smem>>
    %177 = vector.broadcast %175 : f32 to vector<1x256xf32>
    %178 = arith.mulf %177, %173 : vector<1x256xf32>
    %179 = vector.broadcast %176 : f32 to vector<1x256xf32>
    %180 = arith.mulf %179, %174 : vector<1x256xf32>
    %181 = arith.addf %178, %180 : vector<1x256xf32>
    %182 = arith.andi %120, %89 : vector<1x256xi1>
    %cst_61 = arith.constant 0.000000e+00 : f32
    %183 = vector.broadcast %cst_61 : f32 to vector<1x256xf32>
    %184 = arith.select %182, %181, %183 : vector<1x256xi1>, vector<1x256xf32>
    %185 = arith.addf %172, %184 : vector<1x256xf32>
    %c46_i32 = arith.constant 46 : i32
    %186 = tpu.dynamic_rotate %38 by %c46_i32 dim 1 : vector<1x256xf32>, i32 -> vector<1x256xf32>
    %c46_i32_62 = arith.constant 46 : i32
    %187 = tpu.dynamic_rotate %42 by %c46_i32_62 dim 1 : vector<1x256xf32>, i32 -> vector<1x256xf32>
    %c5 = arith.constant 5 : index
    %188 = memref.load %arg8[%c5] : memref<98xf32, #tpu.memory_space<smem>>
    %c54 = arith.constant 54 : index
    %189 = memref.load %arg8[%c54] : memref<98xf32, #tpu.memory_space<smem>>
    %190 = vector.broadcast %188 : f32 to vector<1x256xf32>
    %191 = arith.mulf %190, %186 : vector<1x256xf32>
    %192 = vector.broadcast %189 : f32 to vector<1x256xf32>
    %193 = arith.mulf %192, %187 : vector<1x256xf32>
    %194 = arith.addf %191, %193 : vector<1x256xf32>
    %195 = arith.andi %120, %98 : vector<1x256xi1>
    %cst_63 = arith.constant 0.000000e+00 : f32
    %196 = vector.broadcast %cst_63 : f32 to vector<1x256xf32>
    %197 = arith.select %195, %194, %196 : vector<1x256xi1>, vector<1x256xf32>
    %198 = arith.addf %185, %197 : vector<1x256xf32>
    %c45_i32 = arith.constant 45 : i32
    %199 = tpu.dynamic_rotate %38 by %c45_i32 dim 1 : vector<1x256xf32>, i32 -> vector<1x256xf32>
    %c45_i32_64 = arith.constant 45 : i32
    %200 = tpu.dynamic_rotate %42 by %c45_i32_64 dim 1 : vector<1x256xf32>, i32 -> vector<1x256xf32>
    %c6 = arith.constant 6 : index
    %201 = memref.load %arg8[%c6] : memref<98xf32, #tpu.memory_space<smem>>
    %c55 = arith.constant 55 : index
    %202 = memref.load %arg8[%c55] : memref<98xf32, #tpu.memory_space<smem>>
    %203 = vector.broadcast %201 : f32 to vector<1x256xf32>
    %204 = arith.mulf %203, %199 : vector<1x256xf32>
    %205 = vector.broadcast %202 : f32 to vector<1x256xf32>
    %206 = arith.mulf %205, %200 : vector<1x256xf32>
    %207 = arith.addf %204, %206 : vector<1x256xf32>
    %208 = arith.andi %120, %107 : vector<1x256xi1>
    %cst_65 = arith.constant 0.000000e+00 : f32
    %209 = vector.broadcast %cst_65 : f32 to vector<1x256xf32>
    %210 = arith.select %208, %207, %209 : vector<1x256xi1>, vector<1x256xf32>
    %211 = arith.addf %198, %210 : vector<1x256xf32>
    %c-2_i32_66 = arith.constant -2 : i32
    %212 = vector.broadcast %c-2_i32_66 : i32 to vector<1x256xi32>
    %213 = arith.addi %43, %212 : vector<1x256xi32>
    %c0_i32_67 = arith.constant 0 : i32
    %214 = vector.broadcast %c0_i32_67 : i32 to vector<1x256xi32>
    %215 = arith.cmpi sge, %213, %214 : vector<1x256xi32>
    %c-2_i32_68 = arith.constant -2 : i32
    %216 = vector.broadcast %c-2_i32_68 : i32 to vector<1x256xi32>
    %217 = arith.addi %43, %216 : vector<1x256xi32>
    %c16_i32_69 = arith.constant 16 : i32
    %218 = vector.broadcast %c16_i32_69 : i32 to vector<1x256xi32>
    %219 = arith.cmpi slt, %217, %218 : vector<1x256xi32>
    %220 = arith.andi %215, %219 : vector<1x256xi1>
    %c35_i32 = arith.constant 35 : i32
    %221 = tpu.dynamic_rotate %38 by %c35_i32 dim 1 : vector<1x256xf32>, i32 -> vector<1x256xf32>
    %c35_i32_70 = arith.constant 35 : i32
    %222 = tpu.dynamic_rotate %42 by %c35_i32_70 dim 1 : vector<1x256xf32>, i32 -> vector<1x256xf32>
    %c7 = arith.constant 7 : index
    %223 = memref.load %arg8[%c7] : memref<98xf32, #tpu.memory_space<smem>>
    %c56 = arith.constant 56 : index
    %224 = memref.load %arg8[%c56] : memref<98xf32, #tpu.memory_space<smem>>
    %225 = vector.broadcast %223 : f32 to vector<1x256xf32>
    %226 = arith.mulf %225, %221 : vector<1x256xf32>
    %227 = vector.broadcast %224 : f32 to vector<1x256xf32>
    %228 = arith.mulf %227, %222 : vector<1x256xf32>
    %229 = arith.addf %226, %228 : vector<1x256xf32>
    %230 = arith.andi %220, %53 : vector<1x256xi1>
    %cst_71 = arith.constant 0.000000e+00 : f32
    %231 = vector.broadcast %cst_71 : f32 to vector<1x256xf32>
    %232 = arith.select %230, %229, %231 : vector<1x256xi1>, vector<1x256xf32>
    %233 = arith.addf %211, %232 : vector<1x256xf32>
    %c34_i32 = arith.constant 34 : i32
    %234 = tpu.dynamic_rotate %38 by %c34_i32 dim 1 : vector<1x256xf32>, i32 -> vector<1x256xf32>
    %c34_i32_72 = arith.constant 34 : i32
    %235 = tpu.dynamic_rotate %42 by %c34_i32_72 dim 1 : vector<1x256xf32>, i32 -> vector<1x256xf32>
    %c8 = arith.constant 8 : index
    %236 = memref.load %arg8[%c8] : memref<98xf32, #tpu.memory_space<smem>>
    %c57 = arith.constant 57 : index
    %237 = memref.load %arg8[%c57] : memref<98xf32, #tpu.memory_space<smem>>
    %238 = vector.broadcast %236 : f32 to vector<1x256xf32>
    %239 = arith.mulf %238, %234 : vector<1x256xf32>
    %240 = vector.broadcast %237 : f32 to vector<1x256xf32>
    %241 = arith.mulf %240, %235 : vector<1x256xf32>
    %242 = arith.addf %239, %241 : vector<1x256xf32>
    %243 = arith.andi %220, %62 : vector<1x256xi1>
    %cst_73 = arith.constant 0.000000e+00 : f32
    %244 = vector.broadcast %cst_73 : f32 to vector<1x256xf32>
    %245 = arith.select %243, %242, %244 : vector<1x256xi1>, vector<1x256xf32>
    %246 = arith.addf %233, %245 : vector<1x256xf32>
    %c33_i32 = arith.constant 33 : i32
    %247 = tpu.dynamic_rotate %38 by %c33_i32 dim 1 : vector<1x256xf32>, i32 -> vector<1x256xf32>
    %c33_i32_74 = arith.constant 33 : i32
    %248 = tpu.dynamic_rotate %42 by %c33_i32_74 dim 1 : vector<1x256xf32>, i32 -> vector<1x256xf32>
    %c9 = arith.constant 9 : index
    %249 = memref.load %arg8[%c9] : memref<98xf32, #tpu.memory_space<smem>>
    %c58 = arith.constant 58 : index
    %250 = memref.load %arg8[%c58] : memref<98xf32, #tpu.memory_space<smem>>
    %251 = vector.broadcast %249 : f32 to vector<1x256xf32>
    %252 = arith.mulf %251, %247 : vector<1x256xf32>
    %253 = vector.broadcast %250 : f32 to vector<1x256xf32>
    %254 = arith.mulf %253, %248 : vector<1x256xf32>
    %255 = arith.addf %252, %254 : vector<1x256xf32>
    %256 = arith.andi %220, %71 : vector<1x256xi1>
    %cst_75 = arith.constant 0.000000e+00 : f32
    %257 = vector.broadcast %cst_75 : f32 to vector<1x256xf32>
    %258 = arith.select %256, %255, %257 : vector<1x256xi1>, vector<1x256xf32>
    %259 = arith.addf %246, %258 : vector<1x256xf32>
    %c32_i32 = arith.constant 32 : i32
    %260 = tpu.dynamic_rotate %38 by %c32_i32 dim 1 : vector<1x256xf32>, i32 -> vector<1x256xf32>
    %c32_i32_76 = arith.constant 32 : i32
    %261 = tpu.dynamic_rotate %42 by %c32_i32_76 dim 1 : vector<1x256xf32>, i32 -> vector<1x256xf32>
    %c10 = arith.constant 10 : index
    %262 = memref.load %arg8[%c10] : memref<98xf32, #tpu.memory_space<smem>>
    %c59 = arith.constant 59 : index
    %263 = memref.load %arg8[%c59] : memref<98xf32, #tpu.memory_space<smem>>
    %264 = vector.broadcast %262 : f32 to vector<1x256xf32>
    %265 = arith.mulf %264, %260 : vector<1x256xf32>
    %266 = vector.broadcast %263 : f32 to vector<1x256xf32>
    %267 = arith.mulf %266, %261 : vector<1x256xf32>
    %268 = arith.addf %265, %267 : vector<1x256xf32>
    %269 = arith.andi %220, %80 : vector<1x256xi1>
    %cst_77 = arith.constant 0.000000e+00 : f32
    %270 = vector.broadcast %cst_77 : f32 to vector<1x256xf32>
    %271 = arith.select %269, %268, %270 : vector<1x256xi1>, vector<1x256xf32>
    %272 = arith.addf %259, %271 : vector<1x256xf32>
    %c31_i32 = arith.constant 31 : i32
    %273 = tpu.dynamic_rotate %38 by %c31_i32 dim 1 : vector<1x256xf32>, i32 -> vector<1x256xf32>
    %c31_i32_78 = arith.constant 31 : i32
    %274 = tpu.dynamic_rotate %42 by %c31_i32_78 dim 1 : vector<1x256xf32>, i32 -> vector<1x256xf32>
    %c11 = arith.constant 11 : index
    %275 = memref.load %arg8[%c11] : memref<98xf32, #tpu.memory_space<smem>>
    %c60 = arith.constant 60 : index
    %276 = memref.load %arg8[%c60] : memref<98xf32, #tpu.memory_space<smem>>
    %277 = vector.broadcast %275 : f32 to vector<1x256xf32>
    %278 = arith.mulf %277, %273 : vector<1x256xf32>
    %279 = vector.broadcast %276 : f32 to vector<1x256xf32>
    %280 = arith.mulf %279, %274 : vector<1x256xf32>
    %281 = arith.addf %278, %280 : vector<1x256xf32>
    %282 = arith.andi %220, %89 : vector<1x256xi1>
    %cst_79 = arith.constant 0.000000e+00 : f32
    %283 = vector.broadcast %cst_79 : f32 to vector<1x256xf32>
    %284 = arith.select %282, %281, %283 : vector<1x256xi1>, vector<1x256xf32>
    %285 = arith.addf %272, %284 : vector<1x256xf32>
    %c30_i32 = arith.constant 30 : i32
    %286 = tpu.dynamic_rotate %38 by %c30_i32 dim 1 : vector<1x256xf32>, i32 -> vector<1x256xf32>
    %c30_i32_80 = arith.constant 30 : i32
    %287 = tpu.dynamic_rotate %42 by %c30_i32_80 dim 1 : vector<1x256xf32>, i32 -> vector<1x256xf32>
    %c12 = arith.constant 12 : index
    %288 = memref.load %arg8[%c12] : memref<98xf32, #tpu.memory_space<smem>>
    %c61 = arith.constant 61 : index
    %289 = memref.load %arg8[%c61] : memref<98xf32, #tpu.memory_space<smem>>
    %290 = vector.broadcast %288 : f32 to vector<1x256xf32>
    %291 = arith.mulf %290, %286 : vector<1x256xf32>
    %292 = vector.broadcast %289 : f32 to vector<1x256xf32>
    %293 = arith.mulf %292, %287 : vector<1x256xf32>
    %294 = arith.addf %291, %293 : vector<1x256xf32>
    %295 = arith.andi %220, %98 : vector<1x256xi1>
    %cst_81 = arith.constant 0.000000e+00 : f32
    %296 = vector.broadcast %cst_81 : f32 to vector<1x256xf32>
    %297 = arith.select %295, %294, %296 : vector<1x256xi1>, vector<1x256xf32>
    %298 = arith.addf %285, %297 : vector<1x256xf32>
    %c29_i32 = arith.constant 29 : i32
    %299 = tpu.dynamic_rotate %38 by %c29_i32 dim 1 : vector<1x256xf32>, i32 -> vector<1x256xf32>
    %c29_i32_82 = arith.constant 29 : i32
    %300 = tpu.dynamic_rotate %42 by %c29_i32_82 dim 1 : vector<1x256xf32>, i32 -> vector<1x256xf32>
    %c13 = arith.constant 13 : index
    %301 = memref.load %arg8[%c13] : memref<98xf32, #tpu.memory_space<smem>>
    %c62 = arith.constant 62 : index
    %302 = memref.load %arg8[%c62] : memref<98xf32, #tpu.memory_space<smem>>
    %303 = vector.broadcast %301 : f32 to vector<1x256xf32>
    %304 = arith.mulf %303, %299 : vector<1x256xf32>
    %305 = vector.broadcast %302 : f32 to vector<1x256xf32>
    %306 = arith.mulf %305, %300 : vector<1x256xf32>
    %307 = arith.addf %304, %306 : vector<1x256xf32>
    %308 = arith.andi %220, %107 : vector<1x256xi1>
    %cst_83 = arith.constant 0.000000e+00 : f32
    %309 = vector.broadcast %cst_83 : f32 to vector<1x256xf32>
    %310 = arith.select %308, %307, %309 : vector<1x256xi1>, vector<1x256xf32>
    %311 = arith.addf %298, %310 : vector<1x256xf32>
    %c-1_i32_84 = arith.constant -1 : i32
    %312 = vector.broadcast %c-1_i32_84 : i32 to vector<1x256xi32>
    %313 = arith.addi %43, %312 : vector<1x256xi32>
    %c0_i32_85 = arith.constant 0 : i32
    %314 = vector.broadcast %c0_i32_85 : i32 to vector<1x256xi32>
    %315 = arith.cmpi sge, %313, %314 : vector<1x256xi32>
    %c-1_i32_86 = arith.constant -1 : i32
    %316 = vector.broadcast %c-1_i32_86 : i32 to vector<1x256xi32>
    %317 = arith.addi %43, %316 : vector<1x256xi32>
    %c16_i32_87 = arith.constant 16 : i32
    %318 = vector.broadcast %c16_i32_87 : i32 to vector<1x256xi32>
    %319 = arith.cmpi slt, %317, %318 : vector<1x256xi32>
    %320 = arith.andi %315, %319 : vector<1x256xi1>
    %c19_i32 = arith.constant 19 : i32
    %321 = tpu.dynamic_rotate %38 by %c19_i32 dim 1 : vector<1x256xf32>, i32 -> vector<1x256xf32>
    %c19_i32_88 = arith.constant 19 : i32
    %322 = tpu.dynamic_rotate %42 by %c19_i32_88 dim 1 : vector<1x256xf32>, i32 -> vector<1x256xf32>
    %c14 = arith.constant 14 : index
    %323 = memref.load %arg8[%c14] : memref<98xf32, #tpu.memory_space<smem>>
    %c63 = arith.constant 63 : index
    %324 = memref.load %arg8[%c63] : memref<98xf32, #tpu.memory_space<smem>>
    %325 = vector.broadcast %323 : f32 to vector<1x256xf32>
    %326 = arith.mulf %325, %321 : vector<1x256xf32>
    %327 = vector.broadcast %324 : f32 to vector<1x256xf32>
    %328 = arith.mulf %327, %322 : vector<1x256xf32>
    %329 = arith.addf %326, %328 : vector<1x256xf32>
    %330 = arith.andi %320, %53 : vector<1x256xi1>
    %cst_89 = arith.constant 0.000000e+00 : f32
    %331 = vector.broadcast %cst_89 : f32 to vector<1x256xf32>
    %332 = arith.select %330, %329, %331 : vector<1x256xi1>, vector<1x256xf32>
    %333 = arith.addf %311, %332 : vector<1x256xf32>
    %c18_i32 = arith.constant 18 : i32
    %334 = tpu.dynamic_rotate %38 by %c18_i32 dim 1 : vector<1x256xf32>, i32 -> vector<1x256xf32>
    %c18_i32_90 = arith.constant 18 : i32
    %335 = tpu.dynamic_rotate %42 by %c18_i32_90 dim 1 : vector<1x256xf32>, i32 -> vector<1x256xf32>
    %c15 = arith.constant 15 : index
    %336 = memref.load %arg8[%c15] : memref<98xf32, #tpu.memory_space<smem>>
    %c64 = arith.constant 64 : index
    %337 = memref.load %arg8[%c64] : memref<98xf32, #tpu.memory_space<smem>>
    %338 = vector.broadcast %336 : f32 to vector<1x256xf32>
    %339 = arith.mulf %338, %334 : vector<1x256xf32>
    %340 = vector.broadcast %337 : f32 to vector<1x256xf32>
    %341 = arith.mulf %340, %335 : vector<1x256xf32>
    %342 = arith.addf %339, %341 : vector<1x256xf32>
    %343 = arith.andi %320, %62 : vector<1x256xi1>
    %cst_91 = arith.constant 0.000000e+00 : f32
    %344 = vector.broadcast %cst_91 : f32 to vector<1x256xf32>
    %345 = arith.select %343, %342, %344 : vector<1x256xi1>, vector<1x256xf32>
    %346 = arith.addf %333, %345 : vector<1x256xf32>
    %c17_i32 = arith.constant 17 : i32
    %347 = tpu.dynamic_rotate %38 by %c17_i32 dim 1 : vector<1x256xf32>, i32 -> vector<1x256xf32>
    %c17_i32_92 = arith.constant 17 : i32
    %348 = tpu.dynamic_rotate %42 by %c17_i32_92 dim 1 : vector<1x256xf32>, i32 -> vector<1x256xf32>
    %c16 = arith.constant 16 : index
    %349 = memref.load %arg8[%c16] : memref<98xf32, #tpu.memory_space<smem>>
    %c65 = arith.constant 65 : index
    %350 = memref.load %arg8[%c65] : memref<98xf32, #tpu.memory_space<smem>>
    %351 = vector.broadcast %349 : f32 to vector<1x256xf32>
    %352 = arith.mulf %351, %347 : vector<1x256xf32>
    %353 = vector.broadcast %350 : f32 to vector<1x256xf32>
    %354 = arith.mulf %353, %348 : vector<1x256xf32>
    %355 = arith.addf %352, %354 : vector<1x256xf32>
    %356 = arith.andi %320, %71 : vector<1x256xi1>
    %cst_93 = arith.constant 0.000000e+00 : f32
    %357 = vector.broadcast %cst_93 : f32 to vector<1x256xf32>
    %358 = arith.select %356, %355, %357 : vector<1x256xi1>, vector<1x256xf32>
    %359 = arith.addf %346, %358 : vector<1x256xf32>
    %c16_i32_94 = arith.constant 16 : i32
    %360 = tpu.dynamic_rotate %38 by %c16_i32_94 dim 1 : vector<1x256xf32>, i32 -> vector<1x256xf32>
    %c16_i32_95 = arith.constant 16 : i32
    %361 = tpu.dynamic_rotate %42 by %c16_i32_95 dim 1 : vector<1x256xf32>, i32 -> vector<1x256xf32>
    %c17 = arith.constant 17 : index
    %362 = memref.load %arg8[%c17] : memref<98xf32, #tpu.memory_space<smem>>
    %c66 = arith.constant 66 : index
    %363 = memref.load %arg8[%c66] : memref<98xf32, #tpu.memory_space<smem>>
    %364 = vector.broadcast %362 : f32 to vector<1x256xf32>
    %365 = arith.mulf %364, %360 : vector<1x256xf32>
    %366 = vector.broadcast %363 : f32 to vector<1x256xf32>
    %367 = arith.mulf %366, %361 : vector<1x256xf32>
    %368 = arith.addf %365, %367 : vector<1x256xf32>
    %369 = arith.andi %320, %80 : vector<1x256xi1>
    %cst_96 = arith.constant 0.000000e+00 : f32
    %370 = vector.broadcast %cst_96 : f32 to vector<1x256xf32>
    %371 = arith.select %369, %368, %370 : vector<1x256xi1>, vector<1x256xf32>
    %372 = arith.addf %359, %371 : vector<1x256xf32>
    %c15_i32 = arith.constant 15 : i32
    %373 = tpu.dynamic_rotate %38 by %c15_i32 dim 1 : vector<1x256xf32>, i32 -> vector<1x256xf32>
    %c15_i32_97 = arith.constant 15 : i32
    %374 = tpu.dynamic_rotate %42 by %c15_i32_97 dim 1 : vector<1x256xf32>, i32 -> vector<1x256xf32>
    %c18 = arith.constant 18 : index
    %375 = memref.load %arg8[%c18] : memref<98xf32, #tpu.memory_space<smem>>
    %c67 = arith.constant 67 : index
    %376 = memref.load %arg8[%c67] : memref<98xf32, #tpu.memory_space<smem>>
    %377 = vector.broadcast %375 : f32 to vector<1x256xf32>
    %378 = arith.mulf %377, %373 : vector<1x256xf32>
    %379 = vector.broadcast %376 : f32 to vector<1x256xf32>
    %380 = arith.mulf %379, %374 : vector<1x256xf32>
    %381 = arith.addf %378, %380 : vector<1x256xf32>
    %382 = arith.andi %320, %89 : vector<1x256xi1>
    %cst_98 = arith.constant 0.000000e+00 : f32
    %383 = vector.broadcast %cst_98 : f32 to vector<1x256xf32>
    %384 = arith.select %382, %381, %383 : vector<1x256xi1>, vector<1x256xf32>
    %385 = arith.addf %372, %384 : vector<1x256xf32>
    %c14_i32 = arith.constant 14 : i32
    %386 = tpu.dynamic_rotate %38 by %c14_i32 dim 1 : vector<1x256xf32>, i32 -> vector<1x256xf32>
    %c14_i32_99 = arith.constant 14 : i32
    %387 = tpu.dynamic_rotate %42 by %c14_i32_99 dim 1 : vector<1x256xf32>, i32 -> vector<1x256xf32>
    %c19 = arith.constant 19 : index
    %388 = memref.load %arg8[%c19] : memref<98xf32, #tpu.memory_space<smem>>
    %c68 = arith.constant 68 : index
    %389 = memref.load %arg8[%c68] : memref<98xf32, #tpu.memory_space<smem>>
    %390 = vector.broadcast %388 : f32 to vector<1x256xf32>
    %391 = arith.mulf %390, %386 : vector<1x256xf32>
    %392 = vector.broadcast %389 : f32 to vector<1x256xf32>
    %393 = arith.mulf %392, %387 : vector<1x256xf32>
    %394 = arith.addf %391, %393 : vector<1x256xf32>
    %395 = arith.andi %320, %98 : vector<1x256xi1>
    %cst_100 = arith.constant 0.000000e+00 : f32
    %396 = vector.broadcast %cst_100 : f32 to vector<1x256xf32>
    %397 = arith.select %395, %394, %396 : vector<1x256xi1>, vector<1x256xf32>
    %398 = arith.addf %385, %397 : vector<1x256xf32>
    %c13_i32 = arith.constant 13 : i32
    %399 = tpu.dynamic_rotate %38 by %c13_i32 dim 1 : vector<1x256xf32>, i32 -> vector<1x256xf32>
    %c13_i32_101 = arith.constant 13 : i32
    %400 = tpu.dynamic_rotate %42 by %c13_i32_101 dim 1 : vector<1x256xf32>, i32 -> vector<1x256xf32>
    %c20 = arith.constant 20 : index
    %401 = memref.load %arg8[%c20] : memref<98xf32, #tpu.memory_space<smem>>
    %c69 = arith.constant 69 : index
    %402 = memref.load %arg8[%c69] : memref<98xf32, #tpu.memory_space<smem>>
    %403 = vector.broadcast %401 : f32 to vector<1x256xf32>
    %404 = arith.mulf %403, %399 : vector<1x256xf32>
    %405 = vector.broadcast %402 : f32 to vector<1x256xf32>
    %406 = arith.mulf %405, %400 : vector<1x256xf32>
    %407 = arith.addf %404, %406 : vector<1x256xf32>
    %408 = arith.andi %320, %107 : vector<1x256xi1>
    %cst_102 = arith.constant 0.000000e+00 : f32
    %409 = vector.broadcast %cst_102 : f32 to vector<1x256xf32>
    %410 = arith.select %408, %407, %409 : vector<1x256xi1>, vector<1x256xf32>
    %411 = arith.addf %398, %410 : vector<1x256xf32>
    %c0_i32_103 = arith.constant 0 : i32
    %412 = vector.broadcast %c0_i32_103 : i32 to vector<1x256xi32>
    %413 = arith.addi %43, %412 : vector<1x256xi32>
    %c0_i32_104 = arith.constant 0 : i32
    %414 = vector.broadcast %c0_i32_104 : i32 to vector<1x256xi32>
    %415 = arith.cmpi sge, %413, %414 : vector<1x256xi32>
    %c0_i32_105 = arith.constant 0 : i32
    %416 = vector.broadcast %c0_i32_105 : i32 to vector<1x256xi32>
    %417 = arith.addi %43, %416 : vector<1x256xi32>
    %c16_i32_106 = arith.constant 16 : i32
    %418 = vector.broadcast %c16_i32_106 : i32 to vector<1x256xi32>
    %419 = arith.cmpi slt, %417, %418 : vector<1x256xi32>
    %420 = arith.andi %415, %419 : vector<1x256xi1>
    %c3_i32_107 = arith.constant 3 : i32
    %421 = tpu.dynamic_rotate %38 by %c3_i32_107 dim 1 : vector<1x256xf32>, i32 -> vector<1x256xf32>
    %c3_i32_108 = arith.constant 3 : i32
    %422 = tpu.dynamic_rotate %42 by %c3_i32_108 dim 1 : vector<1x256xf32>, i32 -> vector<1x256xf32>
    %c21 = arith.constant 21 : index
    %423 = memref.load %arg8[%c21] : memref<98xf32, #tpu.memory_space<smem>>
    %c70 = arith.constant 70 : index
    %424 = memref.load %arg8[%c70] : memref<98xf32, #tpu.memory_space<smem>>
    %425 = vector.broadcast %423 : f32 to vector<1x256xf32>
    %426 = arith.mulf %425, %421 : vector<1x256xf32>
    %427 = vector.broadcast %424 : f32 to vector<1x256xf32>
    %428 = arith.mulf %427, %422 : vector<1x256xf32>
    %429 = arith.addf %426, %428 : vector<1x256xf32>
    %430 = arith.andi %420, %53 : vector<1x256xi1>
    %cst_109 = arith.constant 0.000000e+00 : f32
    %431 = vector.broadcast %cst_109 : f32 to vector<1x256xf32>
    %432 = arith.select %430, %429, %431 : vector<1x256xi1>, vector<1x256xf32>
    %433 = arith.addf %411, %432 : vector<1x256xf32>
    %c2_i32_110 = arith.constant 2 : i32
    %434 = tpu.dynamic_rotate %38 by %c2_i32_110 dim 1 : vector<1x256xf32>, i32 -> vector<1x256xf32>
    %c2_i32_111 = arith.constant 2 : i32
    %435 = tpu.dynamic_rotate %42 by %c2_i32_111 dim 1 : vector<1x256xf32>, i32 -> vector<1x256xf32>
    %c22 = arith.constant 22 : index
    %436 = memref.load %arg8[%c22] : memref<98xf32, #tpu.memory_space<smem>>
    %c71 = arith.constant 71 : index
    %437 = memref.load %arg8[%c71] : memref<98xf32, #tpu.memory_space<smem>>
    %438 = vector.broadcast %436 : f32 to vector<1x256xf32>
    %439 = arith.mulf %438, %434 : vector<1x256xf32>
    %440 = vector.broadcast %437 : f32 to vector<1x256xf32>
    %441 = arith.mulf %440, %435 : vector<1x256xf32>
    %442 = arith.addf %439, %441 : vector<1x256xf32>
    %443 = arith.andi %420, %62 : vector<1x256xi1>
    %cst_112 = arith.constant 0.000000e+00 : f32
    %444 = vector.broadcast %cst_112 : f32 to vector<1x256xf32>
    %445 = arith.select %443, %442, %444 : vector<1x256xi1>, vector<1x256xf32>
    %446 = arith.addf %433, %445 : vector<1x256xf32>
    %c1_i32_113 = arith.constant 1 : i32
    %447 = tpu.dynamic_rotate %38 by %c1_i32_113 dim 1 : vector<1x256xf32>, i32 -> vector<1x256xf32>
    %c1_i32_114 = arith.constant 1 : i32
    %448 = tpu.dynamic_rotate %42 by %c1_i32_114 dim 1 : vector<1x256xf32>, i32 -> vector<1x256xf32>
    %c23 = arith.constant 23 : index
    %449 = memref.load %arg8[%c23] : memref<98xf32, #tpu.memory_space<smem>>
    %c72 = arith.constant 72 : index
    %450 = memref.load %arg8[%c72] : memref<98xf32, #tpu.memory_space<smem>>
    %451 = vector.broadcast %449 : f32 to vector<1x256xf32>
    %452 = arith.mulf %451, %447 : vector<1x256xf32>
    %453 = vector.broadcast %450 : f32 to vector<1x256xf32>
    %454 = arith.mulf %453, %448 : vector<1x256xf32>
    %455 = arith.addf %452, %454 : vector<1x256xf32>
    %456 = arith.andi %420, %71 : vector<1x256xi1>
    %cst_115 = arith.constant 0.000000e+00 : f32
    %457 = vector.broadcast %cst_115 : f32 to vector<1x256xf32>
    %458 = arith.select %456, %455, %457 : vector<1x256xi1>, vector<1x256xf32>
    %459 = arith.addf %446, %458 : vector<1x256xf32>
    %c24 = arith.constant 24 : index
    %460 = memref.load %arg8[%c24] : memref<98xf32, #tpu.memory_space<smem>>
    %c73 = arith.constant 73 : index
    %461 = memref.load %arg8[%c73] : memref<98xf32, #tpu.memory_space<smem>>
    %462 = vector.broadcast %460 : f32 to vector<1x256xf32>
    %463 = arith.mulf %462, %38 : vector<1x256xf32>
    %464 = vector.broadcast %461 : f32 to vector<1x256xf32>
    %465 = arith.mulf %464, %42 : vector<1x256xf32>
    %466 = arith.addf %463, %465 : vector<1x256xf32>
    %467 = arith.andi %420, %80 : vector<1x256xi1>
    %cst_116 = arith.constant 0.000000e+00 : f32
    %468 = vector.broadcast %cst_116 : f32 to vector<1x256xf32>
    %469 = arith.select %467, %466, %468 : vector<1x256xi1>, vector<1x256xf32>
    %470 = arith.addf %459, %469 : vector<1x256xf32>
    %c255_i32 = arith.constant 255 : i32
    %471 = tpu.dynamic_rotate %38 by %c255_i32 dim 1 : vector<1x256xf32>, i32 -> vector<1x256xf32>
    %c255_i32_117 = arith.constant 255 : i32
    %472 = tpu.dynamic_rotate %42 by %c255_i32_117 dim 1 : vector<1x256xf32>, i32 -> vector<1x256xf32>
    %c25 = arith.constant 25 : index
    %473 = memref.load %arg8[%c25] : memref<98xf32, #tpu.memory_space<smem>>
    %c74 = arith.constant 74 : index
    %474 = memref.load %arg8[%c74] : memref<98xf32, #tpu.memory_space<smem>>
    %475 = vector.broadcast %473 : f32 to vector<1x256xf32>
    %476 = arith.mulf %475, %471 : vector<1x256xf32>
    %477 = vector.broadcast %474 : f32 to vector<1x256xf32>
    %478 = arith.mulf %477, %472 : vector<1x256xf32>
    %479 = arith.addf %476, %478 : vector<1x256xf32>
    %480 = arith.andi %420, %89 : vector<1x256xi1>
    %cst_118 = arith.constant 0.000000e+00 : f32
    %481 = vector.broadcast %cst_118 : f32 to vector<1x256xf32>
    %482 = arith.select %480, %479, %481 : vector<1x256xi1>, vector<1x256xf32>
    %483 = arith.addf %470, %482 : vector<1x256xf32>
    %c254_i32 = arith.constant 254 : i32
    %484 = tpu.dynamic_rotate %38 by %c254_i32 dim 1 : vector<1x256xf32>, i32 -> vector<1x256xf32>
    %c254_i32_119 = arith.constant 254 : i32
    %485 = tpu.dynamic_rotate %42 by %c254_i32_119 dim 1 : vector<1x256xf32>, i32 -> vector<1x256xf32>
    %c26 = arith.constant 26 : index
    %486 = memref.load %arg8[%c26] : memref<98xf32, #tpu.memory_space<smem>>
    %c75 = arith.constant 75 : index
    %487 = memref.load %arg8[%c75] : memref<98xf32, #tpu.memory_space<smem>>
    %488 = vector.broadcast %486 : f32 to vector<1x256xf32>
    %489 = arith.mulf %488, %484 : vector<1x256xf32>
    %490 = vector.broadcast %487 : f32 to vector<1x256xf32>
    %491 = arith.mulf %490, %485 : vector<1x256xf32>
    %492 = arith.addf %489, %491 : vector<1x256xf32>
    %493 = arith.andi %420, %98 : vector<1x256xi1>
    %cst_120 = arith.constant 0.000000e+00 : f32
    %494 = vector.broadcast %cst_120 : f32 to vector<1x256xf32>
    %495 = arith.select %493, %492, %494 : vector<1x256xi1>, vector<1x256xf32>
    %496 = arith.addf %483, %495 : vector<1x256xf32>
    %c253_i32 = arith.constant 253 : i32
    %497 = tpu.dynamic_rotate %38 by %c253_i32 dim 1 : vector<1x256xf32>, i32 -> vector<1x256xf32>
    %c253_i32_121 = arith.constant 253 : i32
    %498 = tpu.dynamic_rotate %42 by %c253_i32_121 dim 1 : vector<1x256xf32>, i32 -> vector<1x256xf32>
    %c27 = arith.constant 27 : index
    %499 = memref.load %arg8[%c27] : memref<98xf32, #tpu.memory_space<smem>>
    %c76 = arith.constant 76 : index
    %500 = memref.load %arg8[%c76] : memref<98xf32, #tpu.memory_space<smem>>
    %501 = vector.broadcast %499 : f32 to vector<1x256xf32>
    %502 = arith.mulf %501, %497 : vector<1x256xf32>
    %503 = vector.broadcast %500 : f32 to vector<1x256xf32>
    %504 = arith.mulf %503, %498 : vector<1x256xf32>
    %505 = arith.addf %502, %504 : vector<1x256xf32>
    %506 = arith.andi %420, %107 : vector<1x256xi1>
    %cst_122 = arith.constant 0.000000e+00 : f32
    %507 = vector.broadcast %cst_122 : f32 to vector<1x256xf32>
    %508 = arith.select %506, %505, %507 : vector<1x256xi1>, vector<1x256xf32>
    %509 = arith.addf %496, %508 : vector<1x256xf32>
    %c1_i32_123 = arith.constant 1 : i32
    %510 = vector.broadcast %c1_i32_123 : i32 to vector<1x256xi32>
    %511 = arith.addi %43, %510 : vector<1x256xi32>
    %c0_i32_124 = arith.constant 0 : i32
    %512 = vector.broadcast %c0_i32_124 : i32 to vector<1x256xi32>
    %513 = arith.cmpi sge, %511, %512 : vector<1x256xi32>
    %c1_i32_125 = arith.constant 1 : i32
    %514 = vector.broadcast %c1_i32_125 : i32 to vector<1x256xi32>
    %515 = arith.addi %43, %514 : vector<1x256xi32>
    %c16_i32_126 = arith.constant 16 : i32
    %516 = vector.broadcast %c16_i32_126 : i32 to vector<1x256xi32>
    %517 = arith.cmpi slt, %515, %516 : vector<1x256xi32>
    %518 = arith.andi %513, %517 : vector<1x256xi1>
    %c243_i32 = arith.constant 243 : i32
    %519 = tpu.dynamic_rotate %38 by %c243_i32 dim 1 : vector<1x256xf32>, i32 -> vector<1x256xf32>
    %c243_i32_127 = arith.constant 243 : i32
    %520 = tpu.dynamic_rotate %42 by %c243_i32_127 dim 1 : vector<1x256xf32>, i32 -> vector<1x256xf32>
    %c28 = arith.constant 28 : index
    %521 = memref.load %arg8[%c28] : memref<98xf32, #tpu.memory_space<smem>>
    %c77 = arith.constant 77 : index
    %522 = memref.load %arg8[%c77] : memref<98xf32, #tpu.memory_space<smem>>
    %523 = vector.broadcast %521 : f32 to vector<1x256xf32>
    %524 = arith.mulf %523, %519 : vector<1x256xf32>
    %525 = vector.broadcast %522 : f32 to vector<1x256xf32>
    %526 = arith.mulf %525, %520 : vector<1x256xf32>
    %527 = arith.addf %524, %526 : vector<1x256xf32>
    %528 = arith.andi %518, %53 : vector<1x256xi1>
    %cst_128 = arith.constant 0.000000e+00 : f32
    %529 = vector.broadcast %cst_128 : f32 to vector<1x256xf32>
    %530 = arith.select %528, %527, %529 : vector<1x256xi1>, vector<1x256xf32>
    %531 = arith.addf %509, %530 : vector<1x256xf32>
    %c242_i32 = arith.constant 242 : i32
    %532 = tpu.dynamic_rotate %38 by %c242_i32 dim 1 : vector<1x256xf32>, i32 -> vector<1x256xf32>
    %c242_i32_129 = arith.constant 242 : i32
    %533 = tpu.dynamic_rotate %42 by %c242_i32_129 dim 1 : vector<1x256xf32>, i32 -> vector<1x256xf32>
    %c29 = arith.constant 29 : index
    %534 = memref.load %arg8[%c29] : memref<98xf32, #tpu.memory_space<smem>>
    %c78 = arith.constant 78 : index
    %535 = memref.load %arg8[%c78] : memref<98xf32, #tpu.memory_space<smem>>
    %536 = vector.broadcast %534 : f32 to vector<1x256xf32>
    %537 = arith.mulf %536, %532 : vector<1x256xf32>
    %538 = vector.broadcast %535 : f32 to vector<1x256xf32>
    %539 = arith.mulf %538, %533 : vector<1x256xf32>
    %540 = arith.addf %537, %539 : vector<1x256xf32>
    %541 = arith.andi %518, %62 : vector<1x256xi1>
    %cst_130 = arith.constant 0.000000e+00 : f32
    %542 = vector.broadcast %cst_130 : f32 to vector<1x256xf32>
    %543 = arith.select %541, %540, %542 : vector<1x256xi1>, vector<1x256xf32>
    %544 = arith.addf %531, %543 : vector<1x256xf32>
    %c241_i32 = arith.constant 241 : i32
    %545 = tpu.dynamic_rotate %38 by %c241_i32 dim 1 : vector<1x256xf32>, i32 -> vector<1x256xf32>
    %c241_i32_131 = arith.constant 241 : i32
    %546 = tpu.dynamic_rotate %42 by %c241_i32_131 dim 1 : vector<1x256xf32>, i32 -> vector<1x256xf32>
    %c30 = arith.constant 30 : index
    %547 = memref.load %arg8[%c30] : memref<98xf32, #tpu.memory_space<smem>>
    %c79 = arith.constant 79 : index
    %548 = memref.load %arg8[%c79] : memref<98xf32, #tpu.memory_space<smem>>
    %549 = vector.broadcast %547 : f32 to vector<1x256xf32>
    %550 = arith.mulf %549, %545 : vector<1x256xf32>
    %551 = vector.broadcast %548 : f32 to vector<1x256xf32>
    %552 = arith.mulf %551, %546 : vector<1x256xf32>
    %553 = arith.addf %550, %552 : vector<1x256xf32>
    %554 = arith.andi %518, %71 : vector<1x256xi1>
    %cst_132 = arith.constant 0.000000e+00 : f32
    %555 = vector.broadcast %cst_132 : f32 to vector<1x256xf32>
    %556 = arith.select %554, %553, %555 : vector<1x256xi1>, vector<1x256xf32>
    %557 = arith.addf %544, %556 : vector<1x256xf32>
    %c240_i32 = arith.constant 240 : i32
    %558 = tpu.dynamic_rotate %38 by %c240_i32 dim 1 : vector<1x256xf32>, i32 -> vector<1x256xf32>
    %c240_i32_133 = arith.constant 240 : i32
    %559 = tpu.dynamic_rotate %42 by %c240_i32_133 dim 1 : vector<1x256xf32>, i32 -> vector<1x256xf32>
    %c31 = arith.constant 31 : index
    %560 = memref.load %arg8[%c31] : memref<98xf32, #tpu.memory_space<smem>>
    %c80 = arith.constant 80 : index
    %561 = memref.load %arg8[%c80] : memref<98xf32, #tpu.memory_space<smem>>
    %562 = vector.broadcast %560 : f32 to vector<1x256xf32>
    %563 = arith.mulf %562, %558 : vector<1x256xf32>
    %564 = vector.broadcast %561 : f32 to vector<1x256xf32>
    %565 = arith.mulf %564, %559 : vector<1x256xf32>
    %566 = arith.addf %563, %565 : vector<1x256xf32>
    %567 = arith.andi %518, %80 : vector<1x256xi1>
    %cst_134 = arith.constant 0.000000e+00 : f32
    %568 = vector.broadcast %cst_134 : f32 to vector<1x256xf32>
    %569 = arith.select %567, %566, %568 : vector<1x256xi1>, vector<1x256xf32>
    %570 = arith.addf %557, %569 : vector<1x256xf32>
    %c239_i32 = arith.constant 239 : i32
    %571 = tpu.dynamic_rotate %38 by %c239_i32 dim 1 : vector<1x256xf32>, i32 -> vector<1x256xf32>
    %c239_i32_135 = arith.constant 239 : i32
    %572 = tpu.dynamic_rotate %42 by %c239_i32_135 dim 1 : vector<1x256xf32>, i32 -> vector<1x256xf32>
    %c32 = arith.constant 32 : index
    %573 = memref.load %arg8[%c32] : memref<98xf32, #tpu.memory_space<smem>>
    %c81 = arith.constant 81 : index
    %574 = memref.load %arg8[%c81] : memref<98xf32, #tpu.memory_space<smem>>
    %575 = vector.broadcast %573 : f32 to vector<1x256xf32>
    %576 = arith.mulf %575, %571 : vector<1x256xf32>
    %577 = vector.broadcast %574 : f32 to vector<1x256xf32>
    %578 = arith.mulf %577, %572 : vector<1x256xf32>
    %579 = arith.addf %576, %578 : vector<1x256xf32>
    %580 = arith.andi %518, %89 : vector<1x256xi1>
    %cst_136 = arith.constant 0.000000e+00 : f32
    %581 = vector.broadcast %cst_136 : f32 to vector<1x256xf32>
    %582 = arith.select %580, %579, %581 : vector<1x256xi1>, vector<1x256xf32>
    %583 = arith.addf %570, %582 : vector<1x256xf32>
    %c238_i32 = arith.constant 238 : i32
    %584 = tpu.dynamic_rotate %38 by %c238_i32 dim 1 : vector<1x256xf32>, i32 -> vector<1x256xf32>
    %c238_i32_137 = arith.constant 238 : i32
    %585 = tpu.dynamic_rotate %42 by %c238_i32_137 dim 1 : vector<1x256xf32>, i32 -> vector<1x256xf32>
    %c33 = arith.constant 33 : index
    %586 = memref.load %arg8[%c33] : memref<98xf32, #tpu.memory_space<smem>>
    %c82 = arith.constant 82 : index
    %587 = memref.load %arg8[%c82] : memref<98xf32, #tpu.memory_space<smem>>
    %588 = vector.broadcast %586 : f32 to vector<1x256xf32>
    %589 = arith.mulf %588, %584 : vector<1x256xf32>
    %590 = vector.broadcast %587 : f32 to vector<1x256xf32>
    %591 = arith.mulf %590, %585 : vector<1x256xf32>
    %592 = arith.addf %589, %591 : vector<1x256xf32>
    %593 = arith.andi %518, %98 : vector<1x256xi1>
    %cst_138 = arith.constant 0.000000e+00 : f32
    %594 = vector.broadcast %cst_138 : f32 to vector<1x256xf32>
    %595 = arith.select %593, %592, %594 : vector<1x256xi1>, vector<1x256xf32>
    %596 = arith.addf %583, %595 : vector<1x256xf32>
    %c237_i32 = arith.constant 237 : i32
    %597 = tpu.dynamic_rotate %38 by %c237_i32 dim 1 : vector<1x256xf32>, i32 -> vector<1x256xf32>
    %c237_i32_139 = arith.constant 237 : i32
    %598 = tpu.dynamic_rotate %42 by %c237_i32_139 dim 1 : vector<1x256xf32>, i32 -> vector<1x256xf32>
    %c34 = arith.constant 34 : index
    %599 = memref.load %arg8[%c34] : memref<98xf32, #tpu.memory_space<smem>>
    %c83 = arith.constant 83 : index
    %600 = memref.load %arg8[%c83] : memref<98xf32, #tpu.memory_space<smem>>
    %601 = vector.broadcast %599 : f32 to vector<1x256xf32>
    %602 = arith.mulf %601, %597 : vector<1x256xf32>
    %603 = vector.broadcast %600 : f32 to vector<1x256xf32>
    %604 = arith.mulf %603, %598 : vector<1x256xf32>
    %605 = arith.addf %602, %604 : vector<1x256xf32>
    %606 = arith.andi %518, %107 : vector<1x256xi1>
    %cst_140 = arith.constant 0.000000e+00 : f32
    %607 = vector.broadcast %cst_140 : f32 to vector<1x256xf32>
    %608 = arith.select %606, %605, %607 : vector<1x256xi1>, vector<1x256xf32>
    %609 = arith.addf %596, %608 : vector<1x256xf32>
    %c2_i32_141 = arith.constant 2 : i32
    %610 = vector.broadcast %c2_i32_141 : i32 to vector<1x256xi32>
    %611 = arith.addi %43, %610 : vector<1x256xi32>
    %c0_i32_142 = arith.constant 0 : i32
    %612 = vector.broadcast %c0_i32_142 : i32 to vector<1x256xi32>
    %613 = arith.cmpi sge, %611, %612 : vector<1x256xi32>
    %c2_i32_143 = arith.constant 2 : i32
    %614 = vector.broadcast %c2_i32_143 : i32 to vector<1x256xi32>
    %615 = arith.addi %43, %614 : vector<1x256xi32>
    %c16_i32_144 = arith.constant 16 : i32
    %616 = vector.broadcast %c16_i32_144 : i32 to vector<1x256xi32>
    %617 = arith.cmpi slt, %615, %616 : vector<1x256xi32>
    %618 = arith.andi %613, %617 : vector<1x256xi1>
    %c227_i32 = arith.constant 227 : i32
    %619 = tpu.dynamic_rotate %38 by %c227_i32 dim 1 : vector<1x256xf32>, i32 -> vector<1x256xf32>
    %c227_i32_145 = arith.constant 227 : i32
    %620 = tpu.dynamic_rotate %42 by %c227_i32_145 dim 1 : vector<1x256xf32>, i32 -> vector<1x256xf32>
    %c35 = arith.constant 35 : index
    %621 = memref.load %arg8[%c35] : memref<98xf32, #tpu.memory_space<smem>>
    %c84 = arith.constant 84 : index
    %622 = memref.load %arg8[%c84] : memref<98xf32, #tpu.memory_space<smem>>
    %623 = vector.broadcast %621 : f32 to vector<1x256xf32>
    %624 = arith.mulf %623, %619 : vector<1x256xf32>
    %625 = vector.broadcast %622 : f32 to vector<1x256xf32>
    %626 = arith.mulf %625, %620 : vector<1x256xf32>
    %627 = arith.addf %624, %626 : vector<1x256xf32>
    %628 = arith.andi %618, %53 : vector<1x256xi1>
    %cst_146 = arith.constant 0.000000e+00 : f32
    %629 = vector.broadcast %cst_146 : f32 to vector<1x256xf32>
    %630 = arith.select %628, %627, %629 : vector<1x256xi1>, vector<1x256xf32>
    %631 = arith.addf %609, %630 : vector<1x256xf32>
    %c226_i32 = arith.constant 226 : i32
    %632 = tpu.dynamic_rotate %38 by %c226_i32 dim 1 : vector<1x256xf32>, i32 -> vector<1x256xf32>
    %c226_i32_147 = arith.constant 226 : i32
    %633 = tpu.dynamic_rotate %42 by %c226_i32_147 dim 1 : vector<1x256xf32>, i32 -> vector<1x256xf32>
    %c36 = arith.constant 36 : index
    %634 = memref.load %arg8[%c36] : memref<98xf32, #tpu.memory_space<smem>>
    %c85 = arith.constant 85 : index
    %635 = memref.load %arg8[%c85] : memref<98xf32, #tpu.memory_space<smem>>
    %636 = vector.broadcast %634 : f32 to vector<1x256xf32>
    %637 = arith.mulf %636, %632 : vector<1x256xf32>
    %638 = vector.broadcast %635 : f32 to vector<1x256xf32>
    %639 = arith.mulf %638, %633 : vector<1x256xf32>
    %640 = arith.addf %637, %639 : vector<1x256xf32>
    %641 = arith.andi %618, %62 : vector<1x256xi1>
    %cst_148 = arith.constant 0.000000e+00 : f32
    %642 = vector.broadcast %cst_148 : f32 to vector<1x256xf32>
    %643 = arith.select %641, %640, %642 : vector<1x256xi1>, vector<1x256xf32>
    %644 = arith.addf %631, %643 : vector<1x256xf32>
    %c225_i32 = arith.constant 225 : i32
    %645 = tpu.dynamic_rotate %38 by %c225_i32 dim 1 : vector<1x256xf32>, i32 -> vector<1x256xf32>
    %c225_i32_149 = arith.constant 225 : i32
    %646 = tpu.dynamic_rotate %42 by %c225_i32_149 dim 1 : vector<1x256xf32>, i32 -> vector<1x256xf32>
    %c37 = arith.constant 37 : index
    %647 = memref.load %arg8[%c37] : memref<98xf32, #tpu.memory_space<smem>>
    %c86 = arith.constant 86 : index
    %648 = memref.load %arg8[%c86] : memref<98xf32, #tpu.memory_space<smem>>
    %649 = vector.broadcast %647 : f32 to vector<1x256xf32>
    %650 = arith.mulf %649, %645 : vector<1x256xf32>
    %651 = vector.broadcast %648 : f32 to vector<1x256xf32>
    %652 = arith.mulf %651, %646 : vector<1x256xf32>
    %653 = arith.addf %650, %652 : vector<1x256xf32>
    %654 = arith.andi %618, %71 : vector<1x256xi1>
    %cst_150 = arith.constant 0.000000e+00 : f32
    %655 = vector.broadcast %cst_150 : f32 to vector<1x256xf32>
    %656 = arith.select %654, %653, %655 : vector<1x256xi1>, vector<1x256xf32>
    %657 = arith.addf %644, %656 : vector<1x256xf32>
    %c224_i32 = arith.constant 224 : i32
    %658 = tpu.dynamic_rotate %38 by %c224_i32 dim 1 : vector<1x256xf32>, i32 -> vector<1x256xf32>
    %c224_i32_151 = arith.constant 224 : i32
    %659 = tpu.dynamic_rotate %42 by %c224_i32_151 dim 1 : vector<1x256xf32>, i32 -> vector<1x256xf32>
    %c38 = arith.constant 38 : index
    %660 = memref.load %arg8[%c38] : memref<98xf32, #tpu.memory_space<smem>>
    %c87 = arith.constant 87 : index
    %661 = memref.load %arg8[%c87] : memref<98xf32, #tpu.memory_space<smem>>
    %662 = vector.broadcast %660 : f32 to vector<1x256xf32>
    %663 = arith.mulf %662, %658 : vector<1x256xf32>
    %664 = vector.broadcast %661 : f32 to vector<1x256xf32>
    %665 = arith.mulf %664, %659 : vector<1x256xf32>
    %666 = arith.addf %663, %665 : vector<1x256xf32>
    %667 = arith.andi %618, %80 : vector<1x256xi1>
    %cst_152 = arith.constant 0.000000e+00 : f32
    %668 = vector.broadcast %cst_152 : f32 to vector<1x256xf32>
    %669 = arith.select %667, %666, %668 : vector<1x256xi1>, vector<1x256xf32>
    %670 = arith.addf %657, %669 : vector<1x256xf32>
    %c223_i32 = arith.constant 223 : i32
    %671 = tpu.dynamic_rotate %38 by %c223_i32 dim 1 : vector<1x256xf32>, i32 -> vector<1x256xf32>
    %c223_i32_153 = arith.constant 223 : i32
    %672 = tpu.dynamic_rotate %42 by %c223_i32_153 dim 1 : vector<1x256xf32>, i32 -> vector<1x256xf32>
    %c39 = arith.constant 39 : index
    %673 = memref.load %arg8[%c39] : memref<98xf32, #tpu.memory_space<smem>>
    %c88 = arith.constant 88 : index
    %674 = memref.load %arg8[%c88] : memref<98xf32, #tpu.memory_space<smem>>
    %675 = vector.broadcast %673 : f32 to vector<1x256xf32>
    %676 = arith.mulf %675, %671 : vector<1x256xf32>
    %677 = vector.broadcast %674 : f32 to vector<1x256xf32>
    %678 = arith.mulf %677, %672 : vector<1x256xf32>
    %679 = arith.addf %676, %678 : vector<1x256xf32>
    %680 = arith.andi %618, %89 : vector<1x256xi1>
    %cst_154 = arith.constant 0.000000e+00 : f32
    %681 = vector.broadcast %cst_154 : f32 to vector<1x256xf32>
    %682 = arith.select %680, %679, %681 : vector<1x256xi1>, vector<1x256xf32>
    %683 = arith.addf %670, %682 : vector<1x256xf32>
    %c222_i32 = arith.constant 222 : i32
    %684 = tpu.dynamic_rotate %38 by %c222_i32 dim 1 : vector<1x256xf32>, i32 -> vector<1x256xf32>
    %c222_i32_155 = arith.constant 222 : i32
    %685 = tpu.dynamic_rotate %42 by %c222_i32_155 dim 1 : vector<1x256xf32>, i32 -> vector<1x256xf32>
    %c40 = arith.constant 40 : index
    %686 = memref.load %arg8[%c40] : memref<98xf32, #tpu.memory_space<smem>>
    %c89 = arith.constant 89 : index
    %687 = memref.load %arg8[%c89] : memref<98xf32, #tpu.memory_space<smem>>
    %688 = vector.broadcast %686 : f32 to vector<1x256xf32>
    %689 = arith.mulf %688, %684 : vector<1x256xf32>
    %690 = vector.broadcast %687 : f32 to vector<1x256xf32>
    %691 = arith.mulf %690, %685 : vector<1x256xf32>
    %692 = arith.addf %689, %691 : vector<1x256xf32>
    %693 = arith.andi %618, %98 : vector<1x256xi1>
    %cst_156 = arith.constant 0.000000e+00 : f32
    %694 = vector.broadcast %cst_156 : f32 to vector<1x256xf32>
    %695 = arith.select %693, %692, %694 : vector<1x256xi1>, vector<1x256xf32>
    %696 = arith.addf %683, %695 : vector<1x256xf32>
    %c221_i32 = arith.constant 221 : i32
    %697 = tpu.dynamic_rotate %38 by %c221_i32 dim 1 : vector<1x256xf32>, i32 -> vector<1x256xf32>
    %c221_i32_157 = arith.constant 221 : i32
    %698 = tpu.dynamic_rotate %42 by %c221_i32_157 dim 1 : vector<1x256xf32>, i32 -> vector<1x256xf32>
    %c41 = arith.constant 41 : index
    %699 = memref.load %arg8[%c41] : memref<98xf32, #tpu.memory_space<smem>>
    %c90 = arith.constant 90 : index
    %700 = memref.load %arg8[%c90] : memref<98xf32, #tpu.memory_space<smem>>
    %701 = vector.broadcast %699 : f32 to vector<1x256xf32>
    %702 = arith.mulf %701, %697 : vector<1x256xf32>
    %703 = vector.broadcast %700 : f32 to vector<1x256xf32>
    %704 = arith.mulf %703, %698 : vector<1x256xf32>
    %705 = arith.addf %702, %704 : vector<1x256xf32>
    %706 = arith.andi %618, %107 : vector<1x256xi1>
    %cst_158 = arith.constant 0.000000e+00 : f32
    %707 = vector.broadcast %cst_158 : f32 to vector<1x256xf32>
    %708 = arith.select %706, %705, %707 : vector<1x256xi1>, vector<1x256xf32>
    %709 = arith.addf %696, %708 : vector<1x256xf32>
    %c3_i32_159 = arith.constant 3 : i32
    %710 = vector.broadcast %c3_i32_159 : i32 to vector<1x256xi32>
    %711 = arith.addi %43, %710 : vector<1x256xi32>
    %c0_i32_160 = arith.constant 0 : i32
    %712 = vector.broadcast %c0_i32_160 : i32 to vector<1x256xi32>
    %713 = arith.cmpi sge, %711, %712 : vector<1x256xi32>
    %c3_i32_161 = arith.constant 3 : i32
    %714 = vector.broadcast %c3_i32_161 : i32 to vector<1x256xi32>
    %715 = arith.addi %43, %714 : vector<1x256xi32>
    %c16_i32_162 = arith.constant 16 : i32
    %716 = vector.broadcast %c16_i32_162 : i32 to vector<1x256xi32>
    %717 = arith.cmpi slt, %715, %716 : vector<1x256xi32>
    %718 = arith.andi %713, %717 : vector<1x256xi1>
    %c211_i32 = arith.constant 211 : i32
    %719 = tpu.dynamic_rotate %38 by %c211_i32 dim 1 : vector<1x256xf32>, i32 -> vector<1x256xf32>
    %c211_i32_163 = arith.constant 211 : i32
    %720 = tpu.dynamic_rotate %42 by %c211_i32_163 dim 1 : vector<1x256xf32>, i32 -> vector<1x256xf32>
    %c42 = arith.constant 42 : index
    %721 = memref.load %arg8[%c42] : memref<98xf32, #tpu.memory_space<smem>>
    %c91 = arith.constant 91 : index
    %722 = memref.load %arg8[%c91] : memref<98xf32, #tpu.memory_space<smem>>
    %723 = vector.broadcast %721 : f32 to vector<1x256xf32>
    %724 = arith.mulf %723, %719 : vector<1x256xf32>
    %725 = vector.broadcast %722 : f32 to vector<1x256xf32>
    %726 = arith.mulf %725, %720 : vector<1x256xf32>
    %727 = arith.addf %724, %726 : vector<1x256xf32>
    %728 = arith.andi %718, %53 : vector<1x256xi1>
    %cst_164 = arith.constant 0.000000e+00 : f32
    %729 = vector.broadcast %cst_164 : f32 to vector<1x256xf32>
    %730 = arith.select %728, %727, %729 : vector<1x256xi1>, vector<1x256xf32>
    %731 = arith.addf %709, %730 : vector<1x256xf32>
    %c210_i32 = arith.constant 210 : i32
    %732 = tpu.dynamic_rotate %38 by %c210_i32 dim 1 : vector<1x256xf32>, i32 -> vector<1x256xf32>
    %c210_i32_165 = arith.constant 210 : i32
    %733 = tpu.dynamic_rotate %42 by %c210_i32_165 dim 1 : vector<1x256xf32>, i32 -> vector<1x256xf32>
    %c43 = arith.constant 43 : index
    %734 = memref.load %arg8[%c43] : memref<98xf32, #tpu.memory_space<smem>>
    %c92 = arith.constant 92 : index
    %735 = memref.load %arg8[%c92] : memref<98xf32, #tpu.memory_space<smem>>
    %736 = vector.broadcast %734 : f32 to vector<1x256xf32>
    %737 = arith.mulf %736, %732 : vector<1x256xf32>
    %738 = vector.broadcast %735 : f32 to vector<1x256xf32>
    %739 = arith.mulf %738, %733 : vector<1x256xf32>
    %740 = arith.addf %737, %739 : vector<1x256xf32>
    %741 = arith.andi %718, %62 : vector<1x256xi1>
    %cst_166 = arith.constant 0.000000e+00 : f32
    %742 = vector.broadcast %cst_166 : f32 to vector<1x256xf32>
    %743 = arith.select %741, %740, %742 : vector<1x256xi1>, vector<1x256xf32>
    %744 = arith.addf %731, %743 : vector<1x256xf32>
    %c209_i32 = arith.constant 209 : i32
    %745 = tpu.dynamic_rotate %38 by %c209_i32 dim 1 : vector<1x256xf32>, i32 -> vector<1x256xf32>
    %c209_i32_167 = arith.constant 209 : i32
    %746 = tpu.dynamic_rotate %42 by %c209_i32_167 dim 1 : vector<1x256xf32>, i32 -> vector<1x256xf32>
    %c44 = arith.constant 44 : index
    %747 = memref.load %arg8[%c44] : memref<98xf32, #tpu.memory_space<smem>>
    %c93 = arith.constant 93 : index
    %748 = memref.load %arg8[%c93] : memref<98xf32, #tpu.memory_space<smem>>
    %749 = vector.broadcast %747 : f32 to vector<1x256xf32>
    %750 = arith.mulf %749, %745 : vector<1x256xf32>
    %751 = vector.broadcast %748 : f32 to vector<1x256xf32>
    %752 = arith.mulf %751, %746 : vector<1x256xf32>
    %753 = arith.addf %750, %752 : vector<1x256xf32>
    %754 = arith.andi %718, %71 : vector<1x256xi1>
    %cst_168 = arith.constant 0.000000e+00 : f32
    %755 = vector.broadcast %cst_168 : f32 to vector<1x256xf32>
    %756 = arith.select %754, %753, %755 : vector<1x256xi1>, vector<1x256xf32>
    %757 = arith.addf %744, %756 : vector<1x256xf32>
    %c208_i32 = arith.constant 208 : i32
    %758 = tpu.dynamic_rotate %38 by %c208_i32 dim 1 : vector<1x256xf32>, i32 -> vector<1x256xf32>
    %c208_i32_169 = arith.constant 208 : i32
    %759 = tpu.dynamic_rotate %42 by %c208_i32_169 dim 1 : vector<1x256xf32>, i32 -> vector<1x256xf32>
    %c45 = arith.constant 45 : index
    %760 = memref.load %arg8[%c45] : memref<98xf32, #tpu.memory_space<smem>>
    %c94 = arith.constant 94 : index
    %761 = memref.load %arg8[%c94] : memref<98xf32, #tpu.memory_space<smem>>
    %762 = vector.broadcast %760 : f32 to vector<1x256xf32>
    %763 = arith.mulf %762, %758 : vector<1x256xf32>
    %764 = vector.broadcast %761 : f32 to vector<1x256xf32>
    %765 = arith.mulf %764, %759 : vector<1x256xf32>
    %766 = arith.addf %763, %765 : vector<1x256xf32>
    %767 = arith.andi %718, %80 : vector<1x256xi1>
    %cst_170 = arith.constant 0.000000e+00 : f32
    %768 = vector.broadcast %cst_170 : f32 to vector<1x256xf32>
    %769 = arith.select %767, %766, %768 : vector<1x256xi1>, vector<1x256xf32>
    %770 = arith.addf %757, %769 : vector<1x256xf32>
    %c207_i32 = arith.constant 207 : i32
    %771 = tpu.dynamic_rotate %38 by %c207_i32 dim 1 : vector<1x256xf32>, i32 -> vector<1x256xf32>
    %c207_i32_171 = arith.constant 207 : i32
    %772 = tpu.dynamic_rotate %42 by %c207_i32_171 dim 1 : vector<1x256xf32>, i32 -> vector<1x256xf32>
    %c46 = arith.constant 46 : index
    %773 = memref.load %arg8[%c46] : memref<98xf32, #tpu.memory_space<smem>>
    %c95 = arith.constant 95 : index
    %774 = memref.load %arg8[%c95] : memref<98xf32, #tpu.memory_space<smem>>
    %775 = vector.broadcast %773 : f32 to vector<1x256xf32>
    %776 = arith.mulf %775, %771 : vector<1x256xf32>
    %777 = vector.broadcast %774 : f32 to vector<1x256xf32>
    %778 = arith.mulf %777, %772 : vector<1x256xf32>
    %779 = arith.addf %776, %778 : vector<1x256xf32>
    %780 = arith.andi %718, %89 : vector<1x256xi1>
    %cst_172 = arith.constant 0.000000e+00 : f32
    %781 = vector.broadcast %cst_172 : f32 to vector<1x256xf32>
    %782 = arith.select %780, %779, %781 : vector<1x256xi1>, vector<1x256xf32>
    %783 = arith.addf %770, %782 : vector<1x256xf32>
    %c206_i32 = arith.constant 206 : i32
    %784 = tpu.dynamic_rotate %38 by %c206_i32 dim 1 : vector<1x256xf32>, i32 -> vector<1x256xf32>
    %c206_i32_173 = arith.constant 206 : i32
    %785 = tpu.dynamic_rotate %42 by %c206_i32_173 dim 1 : vector<1x256xf32>, i32 -> vector<1x256xf32>
    %c47 = arith.constant 47 : index
    %786 = memref.load %arg8[%c47] : memref<98xf32, #tpu.memory_space<smem>>
    %c96 = arith.constant 96 : index
    %787 = memref.load %arg8[%c96] : memref<98xf32, #tpu.memory_space<smem>>
    %788 = vector.broadcast %786 : f32 to vector<1x256xf32>
    %789 = arith.mulf %788, %784 : vector<1x256xf32>
    %790 = vector.broadcast %787 : f32 to vector<1x256xf32>
    %791 = arith.mulf %790, %785 : vector<1x256xf32>
    %792 = arith.addf %789, %791 : vector<1x256xf32>
    %793 = arith.andi %718, %98 : vector<1x256xi1>
    %cst_174 = arith.constant 0.000000e+00 : f32
    %794 = vector.broadcast %cst_174 : f32 to vector<1x256xf32>
    %795 = arith.select %793, %792, %794 : vector<1x256xi1>, vector<1x256xf32>
    %796 = arith.addf %783, %795 : vector<1x256xf32>
    %c205_i32 = arith.constant 205 : i32
    %797 = tpu.dynamic_rotate %38 by %c205_i32 dim 1 : vector<1x256xf32>, i32 -> vector<1x256xf32>
    %c205_i32_175 = arith.constant 205 : i32
    %798 = tpu.dynamic_rotate %42 by %c205_i32_175 dim 1 : vector<1x256xf32>, i32 -> vector<1x256xf32>
    %c48 = arith.constant 48 : index
    %799 = memref.load %arg8[%c48] : memref<98xf32, #tpu.memory_space<smem>>
    %c97 = arith.constant 97 : index
    %800 = memref.load %arg8[%c97] : memref<98xf32, #tpu.memory_space<smem>>
    %801 = vector.broadcast %799 : f32 to vector<1x256xf32>
    %802 = arith.mulf %801, %797 : vector<1x256xf32>
    %803 = vector.broadcast %800 : f32 to vector<1x256xf32>
    %804 = arith.mulf %803, %798 : vector<1x256xf32>
    %805 = arith.addf %802, %804 : vector<1x256xf32>
    %806 = arith.andi %718, %107 : vector<1x256xi1>
    %cst_176 = arith.constant 0.000000e+00 : f32
    %807 = vector.broadcast %cst_176 : f32 to vector<1x256xf32>
    %808 = arith.select %806, %805, %807 : vector<1x256xi1>, vector<1x256xf32>
    %809 = arith.addf %796, %808 : vector<1x256xf32>
    %810 = arith.negf %809 : vector<1x256xf32>
    %811 = math.exp %810 : vector<1x256xf32>
    %cst_177 = arith.constant 1.000000e+00 : f32
    %812 = vector.broadcast %cst_177 : f32 to vector<1x256xf32>
    %813 = arith.addf %812, %811 : vector<1x256xf32>
    %814 = arith.divf %812, %813 : vector<1x256xf32>
    %815 = vector.broadcast %814 : vector<1x256xf32> to vector<32x256xf32>
    %816 = arith.mulf %36, %815 : vector<32x256xf32>
    %c0_178 = arith.constant 0 : index
    %c0_179 = arith.constant 0 : index
    %c0_180 = arith.constant 0 : index
    %817 = vector.load %arg10[%c0_178, %c0_179, %c0_180] : memref<1x32x256xf32, #tpu.memory_space<vmem>>, vector<1x32x256xf32>
    %818 = vector.shape_cast %817 : vector<1x32x256xf32> to vector<32x256xf32>
    %819 = vector.shape_cast %816 : vector<32x256xf32> to vector<1x32x256xf32>
    tpu.vector_store %arg10[%c0_178, %c0_179, %c0_180], %819 {strides = array<i32>} : memref<1x32x256xf32, #tpu.memory_space<vmem>>, vector<1x32x256xf32>,
    return
  }
  func.func @transform_0(%arg0: i32) -> (i32, i32, i32) {
    %c0_i32 = arith.constant 0 : i32
    %c0_i32_0 = arith.constant 0 : i32
    %c0_i32_1 = arith.constant 0 : i32
    return %arg0, %c0_i32, %c0_i32_0 : i32, i32, i32
  }
  func.func @transform_1(%arg0: i32) -> (i32, i32) {
    %c0_i32 = arith.constant 0 : i32
    %c0_i32_0 = arith.constant 0 : i32
    %c0_i32_1 = arith.constant 0 : i32
    return %c0_i32, %c0_i32_0 : i32, i32
  }
  func.func @transform_2(%arg0: i32) -> (i32, i32) {
    %c0_i32 = arith.constant 0 : i32
    %c0_i32_0 = arith.constant 0 : i32
    %c0_i32_1 = arith.constant 0 : i32
    return %c0_i32, %c0_i32_0 : i32, i32
  }
  func.func @transform_3(%arg0: i32) -> (i32, i32) {
    %c0_i32 = arith.constant 0 : i32
    %c0_i32_0 = arith.constant 0 : i32
    %c0_i32_1 = arith.constant 0 : i32
    return %c0_i32, %c0_i32_0 : i32, i32
  }
  func.func @transform_4(%arg0: i32) -> (i32, i32) {
    %c0_i32 = arith.constant 0 : i32
    %c0_i32_0 = arith.constant 0 : i32
    %c0_i32_1 = arith.constant 0 : i32
    return %c0_i32, %c0_i32_0 : i32, i32
  }
  func.func @transform_5(%arg0: i32) -> (i32, i32) {
    %c0_i32 = arith.constant 0 : i32
    %c0_i32_0 = arith.constant 0 : i32
    %c0_i32_1 = arith.constant 0 : i32
    return %c0_i32, %c0_i32_0 : i32, i32
  }
  func.func @transform_6(%arg0: i32) -> (i32, i32) {
    %c0_i32 = arith.constant 0 : i32
    %c0_i32_0 = arith.constant 0 : i32
    %c0_i32_1 = arith.constant 0 : i32
    return %c0_i32, %c0_i32_0 : i32, i32
  }
  func.func @transform_7(%arg0: i32) -> i32 {
    %c0_i32 = arith.constant 0 : i32
    %c0_i32_0 = arith.constant 0 : i32
    return %c0_i32 : i32
  }
  func.func @transform_8(%arg0: i32) -> i32 {
    %c0_i32 = arith.constant 0 : i32
    %c0_i32_0 = arith.constant 0 : i32
    return %c0_i32 : i32
  }
  func.func @transform_9(%arg0: i32) -> (i32, i32, i32) {
    %c0_i32 = arith.constant 0 : i32
    %c0_i32_0 = arith.constant 0 : i32
    %c0_i32_1 = arith.constant 0 : i32
    return %arg0, %c0_i32, %c0_i32_0 : i32, i32, i32
  }
}

</mosaic_0001>

<llo_original>
// kernel: tpu_custom_call.1
$region0: #{tpu_custom_call.1}
  #allocation0 [shape = 'u32[]', space=smem, size = 0x4, offset = 0x4, fixed_abs, tag = 'smem constant byte address 0x4 - core index']
  #allocation1 [shape = 'u32[144,128]{1,0:T(1,128)}', space=vmem, size = 0x12000, scoped, tag = 'internal scratch']
  #allocation2 [shape = 'f32[1]{0:T(128)S(6)}', space=smem, size = 0x200, scoped, tag = 'scoped memory for tpu_custom_call.1']
  %s0 = inlined_call_operand.hbm [shape: f32[2,32,256], index: 0, kind: input, shape index: {}]
  %s1 = inlined_call_operand.vmem [shape: f32[2,32], index: 1, kind: input, shape index: {}]
  %s2 = inlined_call_operand.vmem [shape: f32[2,1], index: 2, kind: input, shape index: {}]
  %s3 = inlined_call_operand.vmem [shape: f32[32,2], index: 3, kind: input, shape index: {}]
  %s4 = inlined_call_operand.vmem [shape: f32[32,1], index: 4, kind: input, shape index: {}]
  %s5 = inlined_call_operand.vmem [shape: s32[1,256], index: 5, kind: input, shape index: {}]
  %s6 = inlined_call_operand.vmem [shape: s32[1,256], index: 6, kind: input, shape index: {}]
  %s7 = inlined_call_operand.vmem [shape: f32[98], index: 7, kind: input, shape index: {}]
  %s8 = inlined_call_operand.<no memory space> [shape: f32[1], index: 8, kind: input, shape index: {}]
  %s9 = inlined_call_operand.hbm [shape: f32[2,32,256], index: 9, kind: output, shape index: {}]
  %s10 = sld [smem:[#allocation0]]
  $region77: #{tpu_custom_call.1} parent=0
    _
  %s12 = ssub.s32 1, %s10
  %s13 = scalar_select 0, %s12, %s10
  %14 = sst [smem:[#allocation2]] %s8
  $region1: #{tpu_custom_call.1} parent=0
    #allocation3 [shape = 'u8[65536]{0}', space=vmem, size = 0x10000, scoped, tag = 'input window, operand 0']
    #allocation4 [shape = 's32[2]{0}', space=sflag, size = 0x8, scoped, tag = 'scoped memory for tpu_custom_call.1']
    #allocation5 [shape = 's32[2]{0}', space=sflag, size = 0x8, scoped, tag = 'scoped memory for tpu_custom_call.1']
    #allocation6 [shape = 's32[2]{0}', space=sflag, size = 0x8, scoped, tag = 'scoped memory for tpu_custom_call.1']
    #allocation7 [shape = 'u8[512]{0}', space=smem, size = 0x200, scoped, tag = 'input window, operand 7, single buffered']
    #allocation8 [shape = 'u8[65536]{0}', space=vmem, size = 0x10000, scoped, tag = 'output window, operand 0']
    %15 = vsyncpa [#allocation4], 0
    %s16 = scalar_lea.sflag [#allocation4], 1
    %17 = vsyncpa %s16, 0
    %18 = vsyncpa [#allocation6], 0
    %19 = vsyncpa [#allocation5], 0
    %s20 = scalar_lea.sflag [#allocation5], 1
    %21 = vsyncpa %s20, 0
    loop: start=0, step=1, limit=4
    $region2: #{tpu_custom_call.1} parent=1 // loop_pre_header
      _
    $region3: #{tpu_custom_call.1} parent=1 // loop_header
      %s23 = sphi 0, %s27
      %p24 = scmp.ge.s32.totalorder %s23, 4
      %s33 = sphi 0, %s35
      %s36 = sphi 0, %s33
      %s37 = sphi 0, %s36
      %s53 = sphi 0, %s37
      %s57 = sphi 0, %s57
      %s59 = sphi 0, %s57
      %s60 = sphi 0, %s59
      %s74 = sphi 0, %s60
      %s78 = sphi 0, %s78
      %s80 = sphi 0, %s78
      %s81 = sphi 0, %s80
      %s95 = sphi 0, %s81
      %s99 = sphi 0, %s99
      %s101 = sphi 0, %s99
      %s102 = sphi 0, %s101
      %s116 = sphi 0, %s102
      %s120 = sphi 0, %s120
      %s122 = sphi 0, %s120
      %s123 = sphi 0, %s122
      %s137 = sphi 0, %s123
      %s141 = sphi 0, %s141
      %s143 = sphi 0, %s141
      %s144 = sphi 0, %s143
      %s158 = sphi 0, %s144
      %s162 = sphi 0, %s162
      %s164 = sphi 0, %s162
      %s165 = sphi 0, %s164
      %s179 = sphi 0, %s165
      %s183 = sphi 0, %s183
      %s185 = sphi 0, %s183
      %s186 = sphi 0, %s185
      %s200 = sphi 0, %s186
      %s204 = sphi 0, %s204
      %s206 = sphi 0, %s204
      %s207 = sphi 0, %s206
      %s221 = sphi 0, %s207
      %s227 = sphi 0, %s229
      %s230 = sphi 0, %s227
      %s231 = sphi 0, %s230
      %s247 = sphi 0, %s231
    $region4: #{tpu_custom_call.1} parent=1 // loop_header_branch
      %26 = sbr.rel (%p24) target = $region8
    $region5: #{tpu_custom_call.1} parent=1 // loop_body
      %s28 = ssub.s32 %s23, 1
      %s29 = ssub.s32 %s23, 2
      %s30 = sadd.s32 %s23, 1
      %s31 = ssub.s32 %s23, %s30
      %p32 = scmp.eq.s32.totalorder %s31, 0
      %s34 = sadd.s32 %s33, 1
      %s35 = scalar_select %p32, %s33, %s34
      %p38 = pneg %p32
      %p39 = scmp.eq.s32.totalorder %s23, 1
      %p40 = por %p38, %p39
      %p41 = scmp.ne.s32.totalorder %s33, %s36
      %p42 = scmp.eq.s32.totalorder %s23, 0
      %p43 = por %p41, %p42
      %p44 = scmp.ne.s32.totalorder %s33, %s36
      %p45 = scmp.eq.s32.totalorder %s28, 1
      %p46 = por %p44, %p45
      %p47 = scmp.ne.s32.totalorder %s36, %s37
      %p48 = scmp.eq.s32.totalorder %s28, 0
      %p49 = por %p47, %p48
      %p50 = scmp.ne.s32.totalorder %s36, %s37
      %p51 = scmp.eq.s32.totalorder %s29, 1
      %p52 = por %p50, %p51
      %p54 = scmp.ne.s32.totalorder %s37, %s53
      %p55 = scmp.eq.s32.totalorder %s29, 0
      %p56 = por %p54, %p55
      %s58 = sadd.s32 %s57, 1
      %p61 = scmp.eq.s32.totalorder %s23, 1
      %p62 = scmp.ne.s32.totalorder %s57, %s59
      %p63 = scmp.eq.s32.totalorder %s23, 0
      %p64 = por %p62, %p63
      %p65 = scmp.ne.s32.totalorder %s57, %s59
      %p66 = scmp.eq.s32.totalorder %s28, 1
      %p67 = por %p65, %p66
      %p68 = scmp.ne.s32.totalorder %s59, %s60
      %p69 = scmp.eq.s32.totalorder %s28, 0
      %p70 = por %p68, %p69
      %p71 = scmp.ne.s32.totalorder %s59, %s60
      %p72 = scmp.eq.s32.totalorder %s29, 1
      %p73 = por %p71, %p72
      %p75 = scmp.ne.s32.totalorder %s60, %s74
      %p76 = scmp.eq.s32.totalorder %s29, 0
      %p77 = por %p75, %p76
      %s79 = sadd.s32 %s78, 1
      %p82 = scmp.eq.s32.totalorder %s23, 1
      %p83 = scmp.ne.s32.totalorder %s78, %s80
      %p84 = scmp.eq.s32.totalorder %s23, 0
      %p85 = por %p83, %p84
      %p86 = scmp.ne.s32.totalorder %s78, %s80
      %p87 = scmp.eq.s32.totalorder %s28, 1
      %p88 = por %p86, %p87
      %p89 = scmp.ne.s32.totalorder %s80, %s81
      %p90 = scmp.eq.s32.totalorder %s28, 0
      %p91 = por %p89, %p90
      %p92 = scmp.ne.s32.totalorder %s80, %s81
      %p93 = scmp.eq.s32.totalorder %s29, 1
      %p94 = por %p92, %p93
      %p96 = scmp.ne.s32.totalorder %s81, %s95
      %p97 = scmp.eq.s32.totalorder %s29, 0
      %p98 = por %p96, %p97
      %s100 = sadd.s32 %s99, 1
      %p103 = scmp.eq.s32.totalorder %s23, 1
      %p104 = scmp.ne.s32.totalorder %s99, %s101
      %p105 = scmp.eq.s32.totalorder %s23, 0
      %p106 = por %p104, %p105
      %p107 = scmp.ne.s32.totalorder %s99, %s101
      %p108 = scmp.eq.s32.totalorder %s28, 1
      %p109 = por %p107, %p108
      %p110 = scmp.ne.s32.totalorder %s101, %s102
      %p111 = scmp.eq.s32.totalorder %s28, 0
      %p112 = por %p110, %p111
      %p113 = scmp.ne.s32.totalorder %s101, %s102
      %p114 = scmp.eq.s32.totalorder %s29, 1
      %p115 = por %p113, %p114
      %p117 = scmp.ne.s32.totalorder %s102, %s116
      %p118 = scmp.eq.s32.totalorder %s29, 0
      %p119 = por %p117, %p118
      %s121 = sadd.s32 %s120, 1
      %p124 = scmp.eq.s32.totalorder %s23, 1
      %p125 = scmp.ne.s32.totalorder %s120, %s122
      %p126 = scmp.eq.s32.totalorder %s23, 0
      %p127 = por %p125, %p126
      %p128 = scmp.ne.s32.totalorder %s120, %s122
      %p129 = scmp.eq.s32.totalorder %s28, 1
      %p130 = por %p128, %p129
      %p131 = scmp.ne.s32.totalorder %s122, %s123
      %p132 = scmp.eq.s32.totalorder %s28, 0
      %p133 = por %p131, %p132
      %p134 = scmp.ne.s32.totalorder %s122, %s123
      %p135 = scmp.eq.s32.totalorder %s29, 1
      %p136 = por %p134, %p135
      %p138 = scmp.ne.s32.totalorder %s123, %s137
      %p139 = scmp.eq.s32.totalorder %s29, 0
      %p140 = por %p138, %p139
      %s142 = sadd.s32 %s141, 1
      %p145 = scmp.eq.s32.totalorder %s23, 1
      %p146 = scmp.ne.s32.totalorder %s141, %s143
      %p147 = scmp.eq.s32.totalorder %s23, 0
      %p148 = por %p146, %p147
      %p149 = scmp.ne.s32.totalorder %s141, %s143
      %p150 = scmp.eq.s32.totalorder %s28, 1
      %p151 = por %p149, %p150
      %p152 = scmp.ne.s32.totalorder %s143, %s144
      %p153 = scmp.eq.s32.totalorder %s28, 0
      %p154 = por %p152, %p153
      %p155 = scmp.ne.s32.totalorder %s143, %s144
      %p156 = scmp.eq.s32.totalorder %s29, 1
      %p157 = por %p155, %p156
      %p159 = scmp.ne.s32.totalorder %s144, %s158
      %p160 = scmp.eq.s32.totalorder %s29, 0
      %p161 = por %p159, %p160
      %s163 = sadd.s32 %s162, 1
      %p166 = scmp.eq.s32.totalorder %s23, 1
      %p167 = scmp.ne.s32.totalorder %s162, %s164
      %p168 = scmp.eq.s32.totalorder %s23, 0
      %p169 = por %p167, %p168
      %p170 = scmp.ne.s32.totalorder %s162, %s164
      %p171 = scmp.eq.s32.totalorder %s28, 1
      %p172 = por %p170, %p171
      %p173 = scmp.ne.s32.totalorder %s164, %s165
      %p174 = scmp.eq.s32.totalorder %s28, 0
      %p175 = por %p173, %p174
      %p176 = scmp.ne.s32.totalorder %s164, %s165
      %p177 = scmp.eq.s32.totalorder %s29, 1
      %p178 = por %p176, %p177
      %p180 = scmp.ne.s32.totalorder %s165, %s179
      %p181 = scmp.eq.s32.totalorder %s29, 0
      %p182 = por %p180, %p181
      %s184 = sadd.s32 %s183, 1
      %p187 = scmp.eq.s32.totalorder %s23, 1
      %p188 = scmp.ne.s32.totalorder %s183, %s185
      %p189 = scmp.eq.s32.totalorder %s23, 0
      %p190 = por %p188, %p189
      %p191 = scmp.ne.s32.totalorder %s183, %s185
      %p192 = scmp.eq.s32.totalorder %s28, 1
      %p193 = por %p191, %p192
      %p194 = scmp.ne.s32.totalorder %s185, %s186
      %p195 = scmp.eq.s32.totalorder %s28, 0
      %p196 = por %p194, %p195
      %p197 = scmp.ne.s32.totalorder %s185, %s186
      %p198 = scmp.eq.s32.totalorder %s29, 1
      %p199 = por %p197, %p198
      %p201 = scmp.ne.s32.totalorder %s186, %s200
      %p202 = scmp.eq.s32.totalorder %s29, 0
      %p203 = por %p201, %p202
      %s205 = sadd.s32 %s204, 1
      %p208 = scmp.eq.s32.totalorder %s23, 1
      %p209 = scmp.ne.s32.totalorder %s204, %s206
      %p210 = scmp.eq.s32.totalorder %s23, 0
      %p211 = por %p209, %p210
      %p212 = scmp.ne.s32.totalorder %s204, %s206
      %p213 = scmp.eq.s32.totalorder %s28, 1
      %p214 = por %p212, %p213
      %p215 = scmp.ne.s32.totalorder %s206, %s207
      %p216 = scmp.eq.s32.totalorder %s28, 0
      %p217 = por %p215, %p216
      %p218 = scmp.ne.s32.totalorder %s206, %s207
      %p219 = scmp.eq.s32.totalorder %s29, 1
      %p220 = por %p218, %p219
      %p222 = scmp.ne.s32.totalorder %s207, %s221
      %p223 = scmp.eq.s32.totalorder %s29, 0
      %p224 = por %p222, %p223
      %s225 = ssub.s32 %s23, %s30
      %p226 = scmp.eq.s32.totalorder %s225, 0
      %s228 = sadd.s32 %s227, 1
      %s229 = scalar_select %p226, %s227, %s228
      %p232 = pneg %p226
      %p233 = scmp.eq.s32.totalorder %s23, 1
      %p234 = por %p232, %p233
      %p235 = scmp.ne.s32.totalorder %s227, %s230
      %p236 = scmp.eq.s32.totalorder %s23, 0
      %p237 = por %p235, %p236
      %p238 = scmp.ne.s32.totalorder %s227, %s230
      %p239 = scmp.eq.s32.totalorder %s28, 1
      %p240 = por %p238, %p239
      %p241 = scmp.ne.s32.totalorder %s230, %s231
      %p242 = scmp.eq.s32.totalorder %s28, 0
      %p243 = por %p241, %p242
      %p244 = scmp.ne.s32.totalorder %s230, %s231
      %p245 = scmp.eq.s32.totalorder %s29, 1
      %p246 = por %p244, %p245
      %p248 = scmp.ne.s32.totalorder %s231, %s247
      %p249 = scmp.eq.s32.totalorder %s29, 0
      %p250 = por %p248, %p249
      %p251 = scmp.le.s32.totalorder 1, %s23
      %p252 = scmp.lt.s32.totalorder %s23, 3
      %p253 = pnand %p251, %p252
      %p254 = pneg %p253
      // Predicated region
      $region9: #{tpu_custom_call.1} parent=5 // pred_check
        _
      $region10: #{tpu_custom_call.1} parent=5 // pred_check_branch
        %256 = sbr.rel (%p253) target = $region12
      $region11: #{tpu_custom_call.1} parent=5 // pred_region
        %s257 = ssub.s32 %s23, 1
        // Predicated region
        $region13: #{tpu_custom_call.1} parent=11 // pred_check
          %p258 = pneg %p70
        $region14: #{tpu_custom_call.1} parent=11 // pred_check_branch
          %260 = sbr.rel (%p258) target = $region16
        $region15: #{tpu_custom_call.1} parent=11 // pred_region
          _
        $region16: #{tpu_custom_call.1} parent=11 // pred_fallthru
          _
        // Predicated region
        $region17: #{tpu_custom_call.1} parent=11 // pred_check
          %p261 = pneg %p91
        $region18: #{tpu_custom_call.1} parent=11 // pred_check_branch
          %263 = sbr.rel (%p261) target = $region20
        $region19: #{tpu_custom_call.1} parent=11 // pred_region
          _
        $region20: #{tpu_custom_call.1} parent=11 // pred_fallthru
          _
        // Predicated region
        $region21: #{tpu_custom_call.1} parent=11 // pred_check
          %p264 = pneg %p112
        $region22: #{tpu_custom_call.1} parent=11 // pred_check_branch
          %266 = sbr.rel (%p264) target = $region24
        $region23: #{tpu_custom_call.1} parent=11 // pred_region
          _
        $region24: #{tpu_custom_call.1} parent=11 // pred_fallthru
          _
        // Predicated region
        $region25: #{tpu_custom_call.1} parent=11 // pred_check
          %p267 = pneg %p133
        $region26: #{tpu_custom_call.1} parent=11 // pred_check_branch
          %269 = sbr.rel (%p267) target = $region28
        $region27: #{tpu_custom_call.1} parent=11 // pred_region
          _
        $region28: #{tpu_custom_call.1} parent=11 // pred_fallthru
          _
        // Predicated region
        $region29: #{tpu_custom_call.1} parent=11 // pred_check
          %p270 = pneg %p154
        $region30: #{tpu_custom_call.1} parent=11 // pred_check_branch
          %272 = sbr.rel (%p270) target = $region32
        $region31: #{tpu_custom_call.1} parent=11 // pred_region
          _
        $region32: #{tpu_custom_call.1} parent=11 // pred_fallthru
          _
        // Predicated region
        $region33: #{tpu_custom_call.1} parent=11 // pred_check
          %p273 = pneg %p175
        $region34: #{tpu_custom_call.1} parent=11 // pred_check_branch
          %275 = sbr.rel (%p273) target = $region36
        $region35: #{tpu_custom_call.1} parent=11 // pred_region
          _
        $region36: #{tpu_custom_call.1} parent=11 // pred_fallthru
          _
        // Predicated region
        $region37: #{tpu_custom_call.1} parent=11 // pred_check
          %p276 = pneg %p196
        $region38: #{tpu_custom_call.1} parent=11 // pred_check_branch
          %278 = sbr.rel (%p276) target = $region40
        $region39: #{tpu_custom_call.1} parent=11 // pred_region
          %s280 = ssub.s32 16, 16
          %281 = vsyncadd [#allocation6], %s280
          %s283 = sshll.u32 %s7, 4
          %s284 = int_to_ptr.vmem [resolvable:$true] %s283
          %286 = dma.vmem_to_smem %s284, 16, [#allocation7], [#allocation6]
        $region40: #{tpu_custom_call.1} parent=11 // pred_fallthru
          _
        // Predicated region
        $region41: #{tpu_custom_call.1} parent=11 // pred_check
          %p287 = pneg %p217
        $region42: #{tpu_custom_call.1} parent=11 // pred_check_branch
          %289 = sbr.rel (%p287) target = $region44
        $region43: #{tpu_custom_call.1} parent=11 // pred_region
          _
        $region44: #{tpu_custom_call.1} parent=11 // pred_fallthru
          _
      $region12: #{tpu_custom_call.1} parent=5 // pred_fallthru
        _
      %p290 = scmp.lt.s32.totalorder %s23, 2
      // Predicated region
      $region45: #{tpu_custom_call.1} parent=5 // pred_check
        %p291 = pneg %p290
      $region46: #{tpu_custom_call.1} parent=5 // pred_check_branch
        %293 = sbr.rel (%p291) target = $region48
      $region47: #{tpu_custom_call.1} parent=5 // pred_region
        // Predicated region
        $region49: #{tpu_custom_call.1} parent=47 // pred_check
          %p294 = pneg %p43
        $region50: #{tpu_custom_call.1} parent=47 // pred_check_branch
          %296 = sbr.rel (%p294) target = $region52
        $region51: #{tpu_custom_call.1} parent=47 // pred_region
          %s297 = sand.u32 %s33, 1
          %s298 = scalar_lea.sflag [#allocation4], %s297
          %s299 = sand.u32 %s33, 1
          %s300 = smul.addr %s299, 64
          %s301 = scalar_lea.vmem [#allocation3], %s300
          %s303 = ssub.s32 1024, 1024
          %304 = vsyncadd %s298, %s303
          %s305 = smul.addr %s23, 8
          %s306 = smul.addr %s305, 128
          %s307 = scalar_lea.hbm %s0, %s306
          %s308 = sshll.u32 %s301, 4
          %s309 = int_to_ptr.vmem [resolvable:$true] %s308
          %314 = dma.hbm_to_vmem [thread:$0]  %s307, 1024, %s309, %s298, 256, 256, 16
        $region52: #{tpu_custom_call.1} parent=47 // pred_fallthru
          _
      $region48: #{tpu_custom_call.1} parent=5 // pred_fallthru
        _
      %p315 = scmp.le.s32.totalorder 1, %s23
      %p316 = scmp.lt.s32.totalorder %s23, 3
      %p317 = pnand %p315, %p316
      %p318 = pneg %p317
      // Predicated region
      $region53: #{tpu_custom_call.1} parent=5 // pred_check
        _
      $region54: #{tpu_custom_call.1} parent=5 // pred_check_branch
        %320 = sbr.rel (%p317) target = $region56
      $region55: #{tpu_custom_call.1} parent=5 // pred_region
        %s321 = ssub.s32 %s23, 1
        %s322 = sand.u32 %s36, 1
        %s323 = scalar_lea.sflag [#allocation4], %s322
        %s324 = sand.u32 %s36, 1
        %s325 = smul.addr %s324, 64
        %s326 = scalar_lea.vmem [#allocation3], %s325
        // Predicated region
        $region57: #{tpu_custom_call.1} parent=55 // pred_check
          %p327 = pneg %p49
        $region58: #{tpu_custom_call.1} parent=55 // pred_check_branch
          %329 = sbr.rel (%p327) target = $region60
        $region59: #{tpu_custom_call.1} parent=55 // pred_region
          %330 = dma.done %s323, 1024
        $region60: #{tpu_custom_call.1} parent=55 // pred_fallthru
          _
        // Predicated region
        $region61: #{tpu_custom_call.1} parent=55 // pred_check
          %p331 = pneg %p196
        $region62: #{tpu_custom_call.1} parent=55 // pred_check_branch
          %333 = sbr.rel (%p331) target = $region64
        $region63: #{tpu_custom_call.1} parent=55 // pred_region
          %334 = dma.done [#allocation6], 16
        $region64: #{tpu_custom_call.1} parent=55 // pred_fallthru
          _
        %335 = sfence
        %s336 = sand.u32 %s36, 1
        %s337 = scalar_lea.sflag [#allocation4], %s336
        %s338 = sand.u32 %s36, 1
        %s339 = smul.addr %s338, 64
        %s340 = scalar_lea.vmem [#allocation3], %s339
        %p341 = pneg %p49
        %p342 = pneg %p46
        %p343 = pneg %p70
        %p344 = pneg %p67
        %p345 = pneg %p91
        %p346 = pneg %p88
        %p347 = pneg %p112
        %p348 = pneg %p109
        %p349 = pneg %p133
        %p350 = pneg %p130
        %p351 = pneg %p154
        %p352 = pneg %p151
        %p353 = pneg %p175
        %p354 = pneg %p172
        %p355 = pneg %p196
        %p356 = pneg %p193
        %p357 = pneg %p217
        %p358 = pneg %p214
        %p359 = pneg %p243
        %p360 = pneg %p240
        %s361 = sand.u32 %s230, 1
        %s362 = scalar_lea.sflag [#allocation5], %s361
        %s363 = sand.u32 %s230, 1
        %s364 = smul.addr %s363, 64
        %s365 = scalar_lea.vmem [#allocation8], %s364
        %v366 = vld [vmem:[%s326] sm:$0xff]
        %v367 = vld [vmem:[%s326 + $0x8] sm:$0xff]
        %v368 = vld [vmem:[%s326 + $0x10] sm:$0xff]
        %v369 = vld [vmem:[%s326 + $0x18] sm:$0xff]
        %v370 = vld [vmem:[%s326 + $0x20] sm:$0xff]
        %v371 = vld [vmem:[%s326 + $0x28] sm:$0xff]
        %v372 = vld [vmem:[%s326 + $0x30] sm:$0xff]
        %v373 = vld [vmem:[%s326 + $0x38] sm:$0xff]
        %v374 = vadd.f32 %v366, %v367
        %375 = vadd.xlane.f32.xlu0 %v374
        %v376 = vpop.xlane.xlu0 %375
        %v377 = vadd.f32 %v368, %v369
        %378 = vadd.xlane.f32.xlu0 %v377
        %v379 = vpop.xlane.xlu0 %378
        %v380 = vadd.f32 %v370, %v371
        %381 = vadd.xlane.f32.xlu0 %v380
        %v382 = vpop.xlane.xlu0 %381
        %v383 = vadd.f32 %v372, %v373
        %384 = vadd.xlane.f32.xlu0 %v383
        %v385 = vpop.xlane.xlu0 %384
        %v386 = vrcp.pop 256.0
        %v387 = vmul.f32 %v376, %v386
        %v388 = vmul.f32 %v379, %v386
        %v389 = vmul.f32 %v382, %v386
        %v390 = vmul.f32 %v385, %v386
        %v391 = vmax.f32 %v366, %v367
        %392 = vmax.xlane.f32.xlu0 %v391
        %v393 = vpop.xlane.xlu0 %392
        %v394 = vmax.f32 %v368, %v369
        %395 = vmax.xlane.f32.xlu0 %v394
        %v396 = vpop.xlane.xlu0 %395
        %v397 = vmax.f32 %v370, %v371
        %398 = vmax.xlane.f32.xlu0 %v397
        %v399 = vpop.xlane.xlu0 %398
        %v400 = vmax.f32 %v372, %v373
        %401 = vmax.xlane.f32.xlu0 %v400
        %v402 = vpop.xlane.xlu0 %401
        %v403 = vlaneseq
        %v404 = vand.u32 %v403, 127
        %vm405 = vcmp.eq.s32.totalorder %v404, 0
        %v406 = vsel %vm405, %v387, %v393
        %v407 = vsel %vm405, %v388, %v396
        %v408 = vsel %vm405, %v389, %v399
        %v409 = vsel %vm405, %v390, %v402
        %v410 = vld [vmem:[%s1] sm:$0x3]
        %v411 = vld [vmem:[%s2] sm:$0x3]
        %413 = vset.pattern.permute.xlu0 0
        %414 = vperm.xlu0 %413, %v411
        %v415 = vpop.permute.xlu0 %414
        %vm417 = vcmask 261120
        %v419 = vsel %vm417, %v410, 0
        %421 = vmatprep.subr.mxu0 0.0
        %422 = vmatpush1.msra.mxu0 %v406
        %423 = vmatprep.subr.mxu0 0.0
        %424 = vmatpush1.msra.mxu0 %v407
        %425 = vmatprep.subr.mxu0 0.0
        %426 = vmatpush1.msra.mxu0 %v408
        %427 = vmatprep.subr.mxu0 0.0
        %428 = vmatpush1.msra.mxu0 %v409
        %429 = vmatprep.subr.mxu0 0.0
        %430 = vmatpush1.msra.mxu0 0.0
        %431 = vmatprep.subr.mxu0 0.0
        %432 = vmatpush1.msra.mxu0 0.0
        %433 = vmatprep.subr.mxu0 0.0
        %434 = vmatpush1.msra.mxu0 0.0
        %435 = vmatprep.subr.mxu0 0.0
        %436 = vmatpush1.msra.mxu0 0.0
        %437 = vmatprep.subr.mxu0 0.0
        %438 = vmatpush1.msra.mxu0 0.0
        %439 = vmatprep.subr.mxu0 0.0
        %440 = vmatpush1.msra.mxu0 0.0
        %441 = vmatprep.subr.mxu0 0.0
        %442 = vmatpush1.msra.mxu0 0.0
        %443 = vmatprep.subr.mxu0 0.0
        %444 = vmatpush1.msra.mxu0 0.0
        %445 = vmatprep.subr.mxu0 0.0
        %446 = vmatpush1.msra.mxu0 0.0
        %447 = vmatprep.subr.mxu0 0.0
        %448 = vmatpush1.msra.mxu0 0.0
        %449 = vmatprep.subr.mxu0 0.0
        %450 = vmatpush1.msra.mxu0 0.0
        %451 = vmatprep.subr.mxu0 0.0
        %452 = vmatpush1.msra.mxu0 0.0
        %453 = vmatprep.subr.mxu0 0.0
        %454 = vmatpush1.msra.mxu0 0.0
        %455 = vmatprep.subr.mxu0 0.0
        %456 = vmatpush1.msra.mxu0 0.0
        %457 = vmatprep.subr.mxu0 0.0
        %458 = vmatpush1.msra.mxu0 0.0
        %459 = vmatprep.subr.mxu0 0.0
        %460 = vmatpush1.msra.mxu0 0.0
        %461 = vmatprep.subr.mxu0 0.0
        %462 = vmatpush1.msra.mxu0 0.0
        %463 = vmatprep.subr.mxu0 0.0
        %464 = vmatpush1.msra.mxu0 0.0
        %465 = vmatprep.subr.mxu0 0.0
        %466 = vmatpush1.msra.mxu0 0.0
        %467 = vmatprep.subr.mxu0 0.0
        %468 = vmatpush1.msra.mxu0 0.0
        %469 = vmatprep.subr.mxu0 0.0
        %470 = vmatpush1.msra.mxu0 0.0
        %471 = vmatprep.subr.mxu0 0.0
        %472 = vmatpush1.msra.mxu0 0.0
        %473 = vmatprep.subr.mxu0 0.0
        %474 = vmatpush1.msra.mxu0 0.0
        %475 = vmatprep.subr.mxu0 0.0
        %476 = vmatpush1.msra.mxu0 0.0
        %477 = vmatprep.subr.mxu0 0.0
        %478 = vmatpush1.msra.mxu0 0.0
        %479 = vmatprep.subr.mxu0 0.0
        %480 = vmatpush1.msra.mxu0 0.0
        %481 = vmatprep.subr.mxu0 0.0
        %482 = vmatpush1.msra.mxu0 0.0
        %483 = vmatprep.subr.mxu0 0.0
        %484 = vmatpush1.msra.mxu0 0.0
        %485 = vmatprep.mubr.f32.mxu0 0.0
        %486 = vmatmul.mubr.f32.gmra.mrb[0].mxu0 %v419
        %v487 = vpop.f32.mrb[0].mxu0
        %v488 = vadd.f32 %v415, %v487
        %v489 = vpop.f32.mrb[0].mxu0
        %490 = vdwg.mxu0
        %v491 = vmax.f32 %v488, 0.0
        %v492 = vld [vmem:[%s3] sm:$0xff]
        %v493 = vld [vmem:[%s3 + $0x8] sm:$0xff]
        %v494 = vld [vmem:[%s3 + $0x10] sm:$0xff]
        %v495 = vld [vmem:[%s3 + $0x18] sm:$0xff]
        %v496 = vld [vmem:[%s4] sm:$0xff]
        %v497 = vld [vmem:[%s4 + $0x8] sm:$0xff]
        %v498 = vld [vmem:[%s4 + $0x10] sm:$0xff]
        %v499 = vld [vmem:[%s4 + $0x18] sm:$0xff]
        %501 = vset.pattern.permute.xlu0 0
        %502 = vperm.xlu0 %501, %v496
        %v503 = vpop.permute.xlu0 %502
        %506 = vset.pattern.permute.xlu0 0
        %507 = vperm.xlu0 %506, %v497
        %v508 = vpop.permute.xlu0 %507
        %511 = vset.pattern.permute.xlu0 0
        %512 = vperm.xlu0 %511, %v498
        %v513 = vpop.permute.xlu0 %512
        %516 = vset.pattern.permute.xlu0 0
        %517 = vperm.xlu0 %516, %v499
        %v518 = vpop.permute.xlu0 %517
        %vm520 = vcmask 15360
        %v522 = vsel %vm520, %v492, 0
        %v525 = vsel %vm520, %v493, 0
        %v528 = vsel %vm520, %v494, 0
        %v531 = vsel %vm520, %v495, 0
        %vm533 = vcmask 1041408
        %v535 = vsel %vm533, %v491, 0
        %537 = vmatprep.subr.mxu0 0.0
        %538 = vmatpush1.msra.mxu0 %v535
        %539 = vmatprep.subr.mxu0 0.0
        %540 = vmatpush1.msra.mxu0 0.0
        %541 = vmatprep.subr.mxu0 0.0
        %542 = vmatpush1.msra.mxu0 0.0
        %543 = vmatprep.subr.mxu0 0.0
        %544 = vmatpush1.msra.mxu0 0.0
        %545 = vmatprep.subr.mxu0 0.0
        %546 = vmatpush1.msra.mxu0 0.0
        %547 = vmatprep.subr.mxu0 0.0
        %548 = vmatpush1.msra.mxu0 0.0
        %549 = vmatprep.subr.mxu0 0.0
        %550 = vmatpush1.msra.mxu0 0.0
        %551 = vmatprep.subr.mxu0 0.0
        %552 = vmatpush1.msra.mxu0 0.0
        %553 = vmatprep.subr.mxu0 0.0
        %554 = vmatpush1.msra.mxu0 0.0
        %555 = vmatprep.subr.mxu0 0.0
        %556 = vmatpush1.msra.mxu0 0.0
        %557 = vmatprep.subr.mxu0 0.0
        %558 = vmatpush1.msra.mxu0 0.0
        %559 = vmatprep.subr.mxu0 0.0
        %560 = vmatpush1.msra.mxu0 0.0
        %561 = vmatprep.subr.mxu0 0.0
        %562 = vmatpush1.msra.mxu0 0.0
        %563 = vmatprep.subr.mxu0 0.0
        %564 = vmatpush1.msra.mxu0 0.0
        %565 = vmatprep.subr.mxu0 0.0
        %566 = vmatpush1.msra.mxu0 0.0
        %567 = vmatprep.subr.mxu0 0.0
        %568 = vmatpush1.msra.mxu0 0.0
        %569 = vmatprep.subr.mxu0 0.0
        %570 = vmatpush1.msra.mxu0 0.0
        %571 = vmatprep.subr.mxu0 0.0
        %572 = vmatpush1.msra.mxu0 0.0
        %573 = vmatprep.subr.mxu0 0.0
        %574 = vmatpush1.msra.mxu0 0.0
        %575 = vmatprep.subr.mxu0 0.0
        %576 = vmatpush1.msra.mxu0 0.0
        %577 = vmatprep.subr.mxu0 0.0
        %578 = vmatpush1.msra.mxu0 0.0
        %579 = vmatprep.subr.mxu0 0.0
        %580 = vmatpush1.msra.mxu0 0.0
        %581 = vmatprep.subr.mxu0 0.0
        %582 = vmatpush1.msra.mxu0 0.0
        %583 = vmatprep.subr.mxu0 0.0
        %584 = vmatpush1.msra.mxu0 0.0
        %585 = vmatprep.subr.mxu0 0.0
        %586 = vmatpush1.msra.mxu0 0.0
        %587 = vmatprep.subr.mxu0 0.0
        %588 = vmatpush1.msra.mxu0 0.0
        %589 = vmatprep.subr.mxu0 0.0
        %590 = vmatpush1.msra.mxu0 0.0
        %591 = vmatprep.subr.mxu0 0.0
        %592 = vmatpush1.msra.mxu0 0.0
        %593 = vmatprep.subr.mxu0 0.0
        %594 = vmatpush1.msra.mxu0 0.0
        %595 = vmatprep.subr.mxu0 0.0
        %596 = vmatpush1.msra.mxu0 0.0
        %597 = vmatprep.subr.mxu0 0.0
        %598 = vmatpush1.msra.mxu0 0.0
        %599 = vmatprep.subr.mxu0 0.0
        %600 = vmatpush1.msra.mxu0 0.0
        %601 = vmatprep.mubr.f32.mxu0 0.0
        %602 = vmatmul.mubr.f32.gmra.mrb[0].mxu0 %v522
        %v603 = vpop.f32.mrb[0].mxu0
        %v604 = vadd.f32 %v503, %v603
        %v605 = vpop.f32.mrb[0].mxu0
        %606 = vmatprep.mubr.f32.mxu0 0.0
        %607 = vmatmul.mubr.f32.gmra.mrb[0].mxu0 %v525
        %v608 = vpop.f32.mrb[0].mxu0
        %v609 = vadd.f32 %v508, %v608
        %v610 = vpop.f32.mrb[0].mxu0
        %611 = vmatprep.mubr.f32.mxu0 0.0
        %612 = vmatmul.mubr.f32.gmra.mrb[0].mxu0 %v528
        %v613 = vpop.f32.mrb[0].mxu0
        %v614 = vadd.f32 %v513, %v613
        %v615 = vpop.f32.mrb[0].mxu0
        %616 = vmatprep.mubr.f32.mxu0 0.0
        %617 = vmatmul.mubr.f32.gmra.mrb[0].mxu0 %v531
        %v618 = vpop.f32.mrb[0].mxu0
        %v619 = vadd.f32 %v518, %v618
        %v620 = vpop.f32.mrb[0].mxu0
        %621 = vdwg.mxu0
        %v622 = vsel %vm520, %v604, 0.0
        %623 = vadd.xlane.f32.xlu0 %v622
        %v624 = vpop.xlane.xlu0 %623
        %v625 = vsel %vm520, %v609, 0.0
        %626 = vadd.xlane.f32.xlu0 %v625
        %v627 = vpop.xlane.xlu0 %626
        %v628 = vsel %vm520, %v614, 0.0
        %629 = vadd.xlane.f32.xlu0 %v628
        %v630 = vpop.xlane.xlu0 %629
        %v631 = vsel %vm520, %v619, 0.0
        %632 = vadd.xlane.f32.xlu0 %v631
        %v633 = vpop.xlane.xlu0 %632
        %v634 = vxor.u32 %v624, 2147483648
        %v635 = vxor.u32 %v627, 2147483648
        %v636 = vxor.u32 %v630, 2147483648
        %v637 = vxor.u32 %v633, 2147483648
        %v638 = vmul.f32 %v634, 1.442695
        %v639 = vpow.pop %v638
        %v640 = vmul.f32 %v635, 1.442695
        %v641 = vpow.pop %v640
        %v642 = vmul.f32 %v636, 1.442695
        %v643 = vpow.pop %v642
        %v644 = vmul.f32 %v637, 1.442695
        %v645 = vpow.pop %v644
        %v646 = vadd.f32 %v639, 1.0
        %v647 = vadd.f32 %v641, 1.0
        %v648 = vadd.f32 %v643, 1.0
        %v649 = vadd.f32 %v645, 1.0
        %v650 = vrcp.pop %v646
        %v651 = vmul.f32 1.0, %v650
        %v652 = vrcp.pop %v647
        %v653 = vmul.f32 1.0, %v652
        %v654 = vrcp.pop %v648
        %v655 = vmul.f32 1.0, %v654
        %v656 = vrcp.pop %v649
        %v657 = vmul.f32 1.0, %v656
        %v658 = vmul.f32 %v366, %v651
        %v659 = vmul.f32 %v367, %v651
        %v660 = vmul.f32 %v368, %v653
        %v661 = vmul.f32 %v369, %v653
        %v662 = vmul.f32 %v370, %v655
        %v663 = vmul.f32 %v371, %v655
        %v664 = vmul.f32 %v372, %v657
        %v665 = vmul.f32 %v373, %v657
        %v666 = vmax.f32 %v658, %v662
        %v667 = vmax.f32 %v660, %v664
        %v668 = vmax.f32 %v666, %v667
        %v669 = vrot.slane %v668, 4
        %v670 = vmax.f32 %v668, %v669
        %v671 = vrot.slane %v670, 2
        %v672 = vmax.f32 %v670, %v671
        %v673 = vrot.slane %v672, 1
        %v674 = vmax.f32 %v672, %v673
        %v675 = vmax.f32 %v659, %v663
        %v676 = vmax.f32 %v661, %v665
        %v677 = vmax.f32 %v675, %v676
        %v678 = vrot.slane %v677, 4
        %v679 = vmax.f32 %v677, %v678
        %v680 = vrot.slane %v679, 2
        %v681 = vmax.f32 %v679, %v680
        %v682 = vrot.slane %v681, 1
        %v683 = vmax.f32 %v681, %v682
        %v684 = vadd.f32 %v658, %v660
        %v685 = vadd.f32 %v684, %v662
        %v686 = vadd.f32 %v685, %v664
        %v687 = vrot.slane %v686, 4
        %v688 = vadd.f32 %v686, %v687
        %v689 = vrot.slane %v688, 2
        %v690 = vadd.f32 %v688, %v689
        %v691 = vrot.slane %v690, 1
        %v692 = vadd.f32 %v690, %v691
        %v693 = vadd.f32 %v659, %v661
        %v694 = vadd.f32 %v693, %v663
        %v695 = vadd.f32 %v694, %v665
        %v696 = vrot.slane %v695, 4
        %v697 = vadd.f32 %v695, %v696
        %v698 = vrot.slane %v697, 2
        %v699 = vadd.f32 %v697, %v698
        %v700 = vrot.slane %v699, 1
        %v701 = vadd.f32 %v699, %v700
        %v702 = vrcp.pop 32.0
        %v703 = vmul.f32 %v692, %v702
        %v704 = vmul.f32 %v701, %v702
        %v705 = vld [vmem:[%s5] sm:$0x3]
        %v706 = vld [vmem:[%s6] sm:$0x3]
        %v707 = vadd.s32 %v706, 4294967293
        %vm708 = vcmp.ge.s32.totalorder %v707, 0
        %vm709 = vcmp.lt.s32.totalorder %v707, 16
        %vm710 = vmand %vm708, %vm709
        %v711 = vadd.s32 %v706, 4294967294
        %vm712 = vcmp.ge.s32.totalorder %v711, 0
        %vm713 = vcmp.lt.s32.totalorder %v711, 16
        %vm714 = vmand %vm712, %vm713
        %v715 = vadd.s32 %v706, 4294967295
        %vm716 = vcmp.ge.s32.totalorder %v715, 0
        %vm717 = vcmp.lt.s32.totalorder %v715, 16
        %vm718 = vmand %vm716, %vm717
        %vm719 = vcmp.ge.s32.totalorder %v706, 0
        %vm720 = vcmp.lt.s32.totalorder %v706, 16
        %vm721 = vmand %vm719, %vm720
        %v722 = vadd.s32 %v706, 1
        %vm723 = vcmp.ge.s32.totalorder %v722, 0
        %vm724 = vcmp.lt.s32.totalorder %v722, 16
        %vm725 = vmand %vm723, %vm724
        %v726 = vadd.s32 %v706, 2
        %vm727 = vcmp.ge.s32.totalorder %v726, 0
        %vm728 = vcmp.lt.s32.totalorder %v726, 16
        %vm729 = vmand %vm727, %vm728
        %v730 = vadd.s32 %v706, 3
        %vm731 = vcmp.ge.s32.totalorder %v730, 0
        %vm732 = vcmp.lt.s32.totalorder %v730, 16
        %vm733 = vmand %vm731, %vm732
        %s734 = sld [smem:[#allocation2]]
        %v735 = vstv %s734
        %v736 = vadd.f32 %v735, 0.0
        %v737 = vadd.s32 %v705, 4294967293
        %vm738 = vcmp.ge.s32.totalorder %v737, 0
        %vm739 = vcmp.lt.s32.totalorder %v737, 16
        %vm740 = vmand %vm738, %vm739
        %741 = vrot.lane.b32.xlu0 %v674, 51
        %v742 = vpop.permute.xlu0 %741
        %743 = vrot.lane.b32.xlu0 %v683, 51
        %v744 = vpop.permute.xlu0 %743
        %vm745 = vcmp.lt.s32.totalorder %v404, 51
        %v746 = vsel %vm745, %v742, %v744
        %v747 = vsel %vm745, %v744, %v742
        %748 = vrot.lane.b32.xlu0 %v703, 51
        %v749 = vpop.permute.xlu0 %748
        %750 = vrot.lane.b32.xlu0 %v704, 51
        %v751 = vpop.permute.xlu0 %750
        %v752 = vsel %vm745, %v749, %v751
        %v753 = vsel %vm745, %v751, %v749
        %s754 = sld [smem:[#allocation7]]
        %s755 = sld [smem:[#allocation7 + $0x31]]
        %v756 = vstv %s754
        %v757 = vmul.f32 %v756, %v747
        %v758 = vmul.f32 %v756, %v746
        %v759 = vstv %s755
        %v760 = vmul.f32 %v759, %v753
        %v761 = vmul.f32 %v759, %v752
        %v762 = vadd.f32 %v757, %v760
        %v763 = vadd.f32 %v758, %v761
        %vm764 = vmand %vm740, %vm710
        %v767 = vcombine.low %v762, %v763
        %v769 = vunpack.c.l.s4 1966171168
        %v770 = vunpack.c.0.s8 %v769
        %v771 = vlaneseq
        %v772 = vshrl.u32 %v771, 7
        %v773 = vsub.s32 %v770, %v772
        %v774 = vrot.slane %v767, %v773
        %v776 = vunpack.c.l.s4 1966171168
        %v777 = vunpack.c.0.s8 %v776
        %v778 = vlaneseq
        %v779 = vshrl.u32 %v778, 7
        %v780 = vsub.s32 %v777, %v779
        %v781 = vrot.slane %v774, %v780
        %v783 = vsel %vm764, %v781, 0.0
        %v784 = vadd.f32 %v736, %v783
        %785 = vrot.lane.b32.xlu0 %v674, 50
        %v786 = vpop.permute.xlu0 %785
        %787 = vrot.lane.b32.xlu0 %v683, 50
        %v788 = vpop.permute.xlu0 %787
        %vm789 = vcmp.lt.s32.totalorder %v404, 50
        %v790 = vsel %vm789, %v786, %v788
        %v791 = vsel %vm789, %v788, %v786
        %792 = vrot.lane.b32.xlu0 %v703, 50
        %v793 = vpop.permute.xlu0 %792
        %794 = vrot.lane.b32.xlu0 %v704, 50
        %v795 = vpop.permute.xlu0 %794
        %v796 = vsel %vm789, %v793, %v795
        %v797 = vsel %vm789, %v795, %v793
        %s798 = sld [smem:[#allocation7 + $0x1]]
        %s799 = sld [smem:[#allocation7 + $0x32]]
        %v800 = vstv %s798
        %v801 = vmul.f32 %v800, %v791
        %v802 = vmul.f32 %v800, %v790
        %v803 = vstv %s799
        %v804 = vmul.f32 %v803, %v797
        %v805 = vmul.f32 %v803, %v796
        %v806 = vadd.f32 %v801, %v804
        %v807 = vadd.f32 %v802, %v805
        %vm808 = vmand %vm740, %vm714
        %v811 = vcombine.low %v806, %v807
        %v813 = vunpack.c.l.s4 1966171168
        %v814 = vunpack.c.0.s8 %v813
        %v815 = vlaneseq
        %v816 = vshrl.u32 %v815, 7
        %v817 = vsub.s32 %v814, %v816
        %v818 = vrot.slane %v811, %v817
        %v820 = vunpack.c.l.s4 1966171168
        %v821 = vunpack.c.0.s8 %v820
        %v822 = vlaneseq
        %v823 = vshrl.u32 %v822, 7
        %v824 = vsub.s32 %v821, %v823
        %v825 = vrot.slane %v818, %v824
        %v827 = vsel %vm808, %v825, 0.0
        %v828 = vadd.f32 %v784, %v827
        %829 = vrot.lane.b32.xlu0 %v674, 49
        %v830 = vpop.permute.xlu0 %829
        %831 = vrot.lane.b32.xlu0 %v683, 49
        %v832 = vpop.permute.xlu0 %831
        %vm833 = vcmp.lt.s32.totalorder %v404, 49
        %v834 = vsel %vm833, %v830, %v832
        %v835 = vsel %vm833, %v832, %v830
        %836 = vrot.lane.b32.xlu0 %v703, 49
        %v837 = vpop.permute.xlu0 %836
        %838 = vrot.lane.b32.xlu0 %v704, 49
        %v839 = vpop.permute.xlu0 %838
        %v840 = vsel %vm833, %v837, %v839
        %v841 = vsel %vm833, %v839, %v837
        %s842 = sld [smem:[#allocation7 + $0x2]]
        %s843 = sld [smem:[#allocation7 + $0x33]]
        %v844 = vstv %s842
        %v845 = vmul.f32 %v844, %v835
        %v846 = vmul.f32 %v844, %v834
        %v847 = vstv %s843
        %v848 = vmul.f32 %v847, %v841
        %v849 = vmul.f32 %v847, %v840
        %v850 = vadd.f32 %v845, %v848
        %v851 = vadd.f32 %v846, %v849
        %vm852 = vmand %vm740, %vm718
        %v855 = vcombine.low %v850, %v851
        %v857 = vunpack.c.l.s4 1966171168
        %v858 = vunpack.c.0.s8 %v857
        %v859 = vlaneseq
        %v860 = vshrl.u32 %v859, 7
        %v861 = vsub.s32 %v858, %v860
        %v862 = vrot.slane %v855, %v861
        %v864 = vunpack.c.l.s4 1966171168
        %v865 = vunpack.c.0.s8 %v864
        %v866 = vlaneseq
        %v867 = vshrl.u32 %v866, 7
        %v868 = vsub.s32 %v865, %v867
        %v869 = vrot.slane %v862, %v868
        %v871 = vsel %vm852, %v869, 0.0
        %v872 = vadd.f32 %v828, %v871
        %873 = vrot.lane.b32.xlu0 %v674, 48
        %v874 = vpop.permute.xlu0 %873
        %875 = vrot.lane.b32.xlu0 %v683, 48
        %v876 = vpop.permute.xlu0 %875
        %vm877 = vcmp.lt.s32.totalorder %v404, 48
        %v878 = vsel %vm877, %v874, %v876
        %v879 = vsel %vm877, %v876, %v874
        %880 = vrot.lane.b32.xlu0 %v703, 48
        %v881 = vpop.permute.xlu0 %880
        %882 = vrot.lane.b32.xlu0 %v704, 48
        %v883 = vpop.permute.xlu0 %882
        %v884 = vsel %vm877, %v881, %v883
        %v885 = vsel %vm877, %v883, %v881
        %s886 = sld [smem:[#allocation7 + $0x3]]
        %s887 = sld [smem:[#allocation7 + $0x34]]
        %v888 = vstv %s886
        %v889 = vmul.f32 %v888, %v879
        %v890 = vmul.f32 %v888, %v878
        %v891 = vstv %s887
        %v892 = vmul.f32 %v891, %v885
        %v893 = vmul.f32 %v891, %v884
        %v894 = vadd.f32 %v889, %v892
        %v895 = vadd.f32 %v890, %v893
        %vm896 = vmand %vm740, %vm721
        %v899 = vcombine.low %v894, %v895
        %v901 = vunpack.c.l.s4 1966171168
        %v902 = vunpack.c.0.s8 %v901
        %v903 = vlaneseq
        %v904 = vshrl.u32 %v903, 7
        %v905 = vsub.s32 %v902, %v904
        %v906 = vrot.slane %v899, %v905
        %v908 = vunpack.c.l.s4 1966171168
        %v909 = vunpack.c.0.s8 %v908
        %v910 = vlaneseq
        %v911 = vshrl.u32 %v910, 7
        %v912 = vsub.s32 %v909, %v911
        %v913 = vrot.slane %v906, %v912
        %v915 = vsel %vm896, %v913, 0.0
        %v916 = vadd.f32 %v872, %v915
        %917 = vrot.lane.b32.xlu0 %v674, 47
        %v918 = vpop.permute.xlu0 %917
        %919 = vrot.lane.b32.xlu0 %v683, 47
        %v920 = vpop.permute.xlu0 %919
        %vm921 = vcmp.lt.s32.totalorder %v404, 47
        %v922 = vsel %vm921, %v918, %v920
        %v923 = vsel %vm921, %v920, %v918
        %924 = vrot.lane.b32.xlu0 %v703, 47
        %v925 = vpop.permute.xlu0 %924
        %926 = vrot.lane.b32.xlu0 %v704, 47
        %v927 = vpop.permute.xlu0 %926
        %v928 = vsel %vm921, %v925, %v927
        %v929 = vsel %vm921, %v927, %v925
        %s930 = sld [smem:[#allocation7 + $0x4]]
        %s931 = sld [smem:[#allocation7 + $0x35]]
        %v932 = vstv %s930
        %v933 = vmul.f32 %v932, %v923
        %v934 = vmul.f32 %v932, %v922
        %v935 = vstv %s931
        %v936 = vmul.f32 %v935, %v929
        %v937 = vmul.f32 %v935, %v928
        %v938 = vadd.f32 %v933, %v936
        %v939 = vadd.f32 %v934, %v937
        %vm940 = vmand %vm740, %vm725
        %v943 = vcombine.low %v938, %v939
        %v945 = vunpack.c.l.s4 1966171168
        %v946 = vunpack.c.0.s8 %v945
        %v947 = vlaneseq
        %v948 = vshrl.u32 %v947, 7
        %v949 = vsub.s32 %v946, %v948
        %v950 = vrot.slane %v943, %v949
        %v952 = vunpack.c.l.s4 1966171168
        %v953 = vunpack.c.0.s8 %v952
        %v954 = vlaneseq
        %v955 = vshrl.u32 %v954, 7
        %v956 = vsub.s32 %v953, %v955
        %v957 = vrot.slane %v950, %v956
        %v959 = vsel %vm940, %v957, 0.0
        %v960 = vadd.f32 %v916, %v959
        %961 = vrot.lane.b32.xlu0 %v674, 46
        %v962 = vpop.permute.xlu0 %961
        %963 = vrot.lane.b32.xlu0 %v683, 46
        %v964 = vpop.permute.xlu0 %963
        %vm965 = vcmp.lt.s32.totalorder %v404, 46
        %v966 = vsel %vm965, %v962, %v964
        %v967 = vsel %vm965, %v964, %v962
        %968 = vrot.lane.b32.xlu0 %v703, 46
        %v969 = vpop.permute.xlu0 %968
        %970 = vrot.lane.b32.xlu0 %v704, 46
        %v971 = vpop.permute.xlu0 %970
        %v972 = vsel %vm965, %v969, %v971
        %v973 = vsel %vm965, %v971, %v969
        %s974 = sld [smem:[#allocation7 + $0x5]]
        %s975 = sld [smem:[#allocation7 + $0x36]]
        %v976 = vstv %s974
        %v977 = vmul.f32 %v976, %v967
        %v978 = vmul.f32 %v976, %v966
        %v979 = vstv %s975
        %v980 = vmul.f32 %v979, %v973
        %v981 = vmul.f32 %v979, %v972
        %v982 = vadd.f32 %v977, %v980
        %v983 = vadd.f32 %v978, %v981
        %vm984 = vmand %vm740, %vm729
        %v987 = vcombine.low %v982, %v983
        %v989 = vunpack.c.l.s4 1966171168
        %v990 = vunpack.c.0.s8 %v989
        %v991 = vlaneseq
        %v992 = vshrl.u32 %v991, 7
        %v993 = vsub.s32 %v990, %v992
        %v994 = vrot.slane %v987, %v993
        %v996 = vunpack.c.l.s4 1966171168
        %v997 = vunpack.c.0.s8 %v996
        %v998 = vlaneseq
        %v999 = vshrl.u32 %v998, 7
        %v1000 = vsub.s32 %v997, %v999
        %v1001 = vrot.slane %v994, %v1000
        %v1003 = vsel %vm984, %v1001, 0.0
        %v1004 = vadd.f32 %v960, %v1003
        %1005 = vrot.lane.b32.xlu0 %v674, 45
        %v1006 = vpop.permute.xlu0 %1005
        %1007 = vrot.lane.b32.xlu0 %v683, 45
        %v1008 = vpop.permute.xlu0 %1007
        %vm1009 = vcmp.lt.s32.totalorder %v404, 45
        %v1010 = vsel %vm1009, %v1006, %v1008
        %v1011 = vsel %vm1009, %v1008, %v1006
        %1012 = vrot.lane.b32.xlu0 %v703, 45
        %v1013 = vpop.permute.xlu0 %1012
        %1014 = vrot.lane.b32.xlu0 %v704, 45
        %v1015 = vpop.permute.xlu0 %1014
        %v1016 = vsel %vm1009, %v1013, %v1015
        %v1017 = vsel %vm1009, %v1015, %v1013
        %s1018 = sld [smem:[#allocation7 + $0x6]]
        %s1019 = sld [smem:[#allocation7 + $0x37]]
        %v1020 = vstv %s1018
        %v1021 = vmul.f32 %v1020, %v1011
        %v1022 = vmul.f32 %v1020, %v1010
        %v1023 = vstv %s1019
        %v1024 = vmul.f32 %v1023, %v1017
        %v1025 = vmul.f32 %v1023, %v1016
        %v1026 = vadd.f32 %v1021, %v1024
        %v1027 = vadd.f32 %v1022, %v1025
        %vm1028 = vmand %vm740, %vm733
        %v1031 = vcombine.low %v1026, %v1027
        %v1033 = vunpack.c.l.s4 1966171168
        %v1034 = vunpack.c.0.s8 %v1033
        %v1035 = vlaneseq
        %v1036 = vshrl.u32 %v1035, 7
        %v1037 = vsub.s32 %v1034, %v1036
        %v1038 = vrot.slane %v1031, %v1037
        %v1040 = vunpack.c.l.s4 1966171168
        %v1041 = vunpack.c.0.s8 %v1040
        %v1042 = vlaneseq
        %v1043 = vshrl.u32 %v1042, 7
        %v1044 = vsub.s32 %v1041, %v1043
        %v1045 = vrot.slane %v1038, %v1044
        %v1047 = vsel %vm1028, %v1045, 0.0
        %v1048 = vadd.f32 %v1004, %v1047
        %v1049 = vadd.s32 %v705, 4294967294
        %vm1050 = vcmp.ge.s32.totalorder %v1049, 0
        %vm1051 = vcmp.lt.s32.totalorder %v1049, 16
        %vm1052 = vmand %vm1050, %vm1051
        %1053 = vrot.lane.b32.xlu0 %v674, 35
        %v1054 = vpop.permute.xlu0 %1053
        %1055 = vrot.lane.b32.xlu0 %v683, 35
        %v1056 = vpop.permute.xlu0 %1055
        %vm1057 = vcmp.lt.s32.totalorder %v404, 35
        %v1058 = vsel %vm1057, %v1054, %v1056
        %v1059 = vsel %vm1057, %v1056, %v1054
        %1060 = vrot.lane.b32.xlu0 %v703, 35
        %v1061 = vpop.permute.xlu0 %1060
        %1062 = vrot.lane.b32.xlu0 %v704, 35
        %v1063 = vpop.permute.xlu0 %1062
        %v1064 = vsel %vm1057, %v1061, %v1063
        %v1065 = vsel %vm1057, %v1063, %v1061
        %s1066 = sld [smem:[#allocation7 + $0x7]]
        %s1067 = sld [smem:[#allocation7 + $0x38]]
        %v1068 = vstv %s1066
        %v1069 = vmul.f32 %v1068, %v1059
        %v1070 = vmul.f32 %v1068, %v1058
        %v1071 = vstv %s1067
        %v1072 = vmul.f32 %v1071, %v1065
        %v1073 = vmul.f32 %v1071, %v1064
        %v1074 = vadd.f32 %v1069, %v1072
        %v1075 = vadd.f32 %v1070, %v1073
        %vm1076 = vmand %vm1052, %vm710
        %v1079 = vcombine.low %v1074, %v1075
        %v1081 = vunpack.c.l.s4 1966171168
        %v1082 = vunpack.c.0.s8 %v1081
        %v1083 = vlaneseq
        %v1084 = vshrl.u32 %v1083, 7
        %v1085 = vsub.s32 %v1082, %v1084
        %v1086 = vrot.slane %v1079, %v1085
        %v1088 = vunpack.c.l.s4 1966171168
        %v1089 = vunpack.c.0.s8 %v1088
        %v1090 = vlaneseq
        %v1091 = vshrl.u32 %v1090, 7
        %v1092 = vsub.s32 %v1089, %v1091
        %v1093 = vrot.slane %v1086, %v1092
        %v1095 = vsel %vm1076, %v1093, 0.0
        %v1096 = vadd.f32 %v1048, %v1095
        %1097 = vrot.lane.b32.xlu0 %v674, 34
        %v1098 = vpop.permute.xlu0 %1097
        %1099 = vrot.lane.b32.xlu0 %v683, 34
        %v1100 = vpop.permute.xlu0 %1099
        %vm1101 = vcmp.lt.s32.totalorder %v404, 34
        %v1102 = vsel %vm1101, %v1098, %v1100
        %v1103 = vsel %vm1101, %v1100, %v1098
        %1104 = vrot.lane.b32.xlu0 %v703, 34
        %v1105 = vpop.permute.xlu0 %1104
        %1106 = vrot.lane.b32.xlu0 %v704, 34
        %v1107 = vpop.permute.xlu0 %1106
        %v1108 = vsel %vm1101, %v1105, %v1107
        %v1109 = vsel %vm1101, %v1107, %v1105
        %s1110 = sld [smem:[#allocation7 + $0x8]]
        %s1111 = sld [smem:[#allocation7 + $0x39]]
        %v1112 = vstv %s1110
        %v1113 = vmul.f32 %v1112, %v1103
        %v1114 = vmul.f32 %v1112, %v1102
        %v1115 = vstv %s1111
        %v1116 = vmul.f32 %v1115, %v1109
        %v1117 = vmul.f32 %v1115, %v1108
        %v1118 = vadd.f32 %v1113, %v1116
        %v1119 = vadd.f32 %v1114, %v1117
        %vm1120 = vmand %vm1052, %vm714
        %v1123 = vcombine.low %v1118, %v1119
        %v1125 = vunpack.c.l.s4 1966171168
        %v1126 = vunpack.c.0.s8 %v1125
        %v1127 = vlaneseq
        %v1128 = vshrl.u32 %v1127, 7
        %v1129 = vsub.s32 %v1126, %v1128
        %v1130 = vrot.slane %v1123, %v1129
        %v1132 = vunpack.c.l.s4 1966171168
        %v1133 = vunpack.c.0.s8 %v1132
        %v1134 = vlaneseq
        %v1135 = vshrl.u32 %v1134, 7
        %v1136 = vsub.s32 %v1133, %v1135
        %v1137 = vrot.slane %v1130, %v1136
        %v1139 = vsel %vm1120, %v1137, 0.0
        %v1140 = vadd.f32 %v1096, %v1139
        %1141 = vrot.lane.b32.xlu0 %v674, 33
        %v1142 = vpop.permute.xlu0 %1141
        %1143 = vrot.lane.b32.xlu0 %v683, 33
        %v1144 = vpop.permute.xlu0 %1143
        %vm1145 = vcmp.lt.s32.totalorder %v404, 33
        %v1146 = vsel %vm1145, %v1142, %v1144
        %v1147 = vsel %vm1145, %v1144, %v1142
        %1148 = vrot.lane.b32.xlu0 %v703, 33
        %v1149 = vpop.permute.xlu0 %1148
        %1150 = vrot.lane.b32.xlu0 %v704, 33
        %v1151 = vpop.permute.xlu0 %1150
        %v1152 = vsel %vm1145, %v1149, %v1151
        %v1153 = vsel %vm1145, %v1151, %v1149
        %s1154 = sld [smem:[#allocation7 + $0x9]]
        %s1155 = sld [smem:[#allocation7 + $0x3a]]
        %v1156 = vstv %s1154
        %v1157 = vmul.f32 %v1156, %v1147
        %v1158 = vmul.f32 %v1156, %v1146
        %v1159 = vstv %s1155
        %v1160 = vmul.f32 %v1159, %v1153
        %v1161 = vmul.f32 %v1159, %v1152
        %v1162 = vadd.f32 %v1157, %v1160
        %v1163 = vadd.f32 %v1158, %v1161
        %vm1164 = vmand %vm1052, %vm718
        %v1167 = vcombine.low %v1162, %v1163
        %v1169 = vunpack.c.l.s4 1966171168
        %v1170 = vunpack.c.0.s8 %v1169
        %v1171 = vlaneseq
        %v1172 = vshrl.u32 %v1171, 7
        %v1173 = vsub.s32 %v1170, %v1172
        %v1174 = vrot.slane %v1167, %v1173
        %v1176 = vunpack.c.l.s4 1966171168
        %v1177 = vunpack.c.0.s8 %v1176
        %v1178 = vlaneseq
        %v1179 = vshrl.u32 %v1178, 7
        %v1180 = vsub.s32 %v1177, %v1179
        %v1181 = vrot.slane %v1174, %v1180
        %v1183 = vsel %vm1164, %v1181, 0.0
        %v1184 = vadd.f32 %v1140, %v1183
        %1185 = vrot.lane.b32.xlu0 %v674, 32
        %v1186 = vpop.permute.xlu0 %1185
        %1187 = vrot.lane.b32.xlu0 %v683, 32
        %v1188 = vpop.permute.xlu0 %1187
        %vm1189 = vcmp.lt.s32.totalorder %v404, 32
        %v1190 = vsel %vm1189, %v1186, %v1188
        %v1191 = vsel %vm1189, %v1188, %v1186
        %1192 = vrot.lane.b32.xlu0 %v703, 32
        %v1193 = vpop.permute.xlu0 %1192
        %1194 = vrot.lane.b32.xlu0 %v704, 32
        %v1195 = vpop.permute.xlu0 %1194
        %v1196 = vsel %vm1189, %v1193, %v1195
        %v1197 = vsel %vm1189, %v1195, %v1193
        %s1198 = sld [smem:[#allocation7 + $0xa]]
        %s1199 = sld [smem:[#allocation7 + $0x3b]]
        %v1200 = vstv %s1198
        %v1201 = vmul.f32 %v1200, %v1191
        %v1202 = vmul.f32 %v1200, %v1190
        %v1203 = vstv %s1199
        %v1204 = vmul.f32 %v1203, %v1197
        %v1205 = vmul.f32 %v1203, %v1196
        %v1206 = vadd.f32 %v1201, %v1204
        %v1207 = vadd.f32 %v1202, %v1205
        %vm1208 = vmand %vm1052, %vm721
        %v1211 = vcombine.low %v1206, %v1207
        %v1213 = vunpack.c.l.s4 1966171168
        %v1214 = vunpack.c.0.s8 %v1213
        %v1215 = vlaneseq
        %v1216 = vshrl.u32 %v1215, 7
        %v1217 = vsub.s32 %v1214, %v1216
        %v1218 = vrot.slane %v1211, %v1217
        %v1220 = vunpack.c.l.s4 1966171168
        %v1221 = vunpack.c.0.s8 %v1220
        %v1222 = vlaneseq
        %v1223 = vshrl.u32 %v1222, 7
        %v1224 = vsub.s32 %v1221, %v1223
        %v1225 = vrot.slane %v1218, %v1224
        %v1227 = vsel %vm1208, %v1225, 0.0
        %v1228 = vadd.f32 %v1184, %v1227
        %1229 = vrot.lane.b32.xlu0 %v674, 31
        %v1230 = vpop.permute.xlu0 %1229
        %1231 = vrot.lane.b32.xlu0 %v683, 31
        %v1232 = vpop.permute.xlu0 %1231
        %vm1233 = vcmp.lt.s32.totalorder %v404, 31
        %v1234 = vsel %vm1233, %v1230, %v1232
        %v1235 = vsel %vm1233, %v1232, %v1230
        %1236 = vrot.lane.b32.xlu0 %v703, 31
        %v1237 = vpop.permute.xlu0 %1236
        %1238 = vrot.lane.b32.xlu0 %v704, 31
        %v1239 = vpop.permute.xlu0 %1238
        %v1240 = vsel %vm1233, %v1237, %v1239
        %v1241 = vsel %vm1233, %v1239, %v1237
        %s1242 = sld [smem:[#allocation7 + $0xb]]
        %s1243 = sld [smem:[#allocation7 + $0x3c]]
        %v1244 = vstv %s1242
        %v1245 = vmul.f32 %v1244, %v1235
        %v1246 = vmul.f32 %v1244, %v1234
        %v1247 = vstv %s1243
        %v1248 = vmul.f32 %v1247, %v1241
        %v1249 = vmul.f32 %v1247, %v1240
        %v1250 = vadd.f32 %v1245, %v1248
        %v1251 = vadd.f32 %v1246, %v1249
        %vm1252 = vmand %vm1052, %vm725
        %v1255 = vcombine.low %v1250, %v1251
        %v1257 = vunpack.c.l.s4 1966171168
        %v1258 = vunpack.c.0.s8 %v1257
        %v1259 = vlaneseq
        %v1260 = vshrl.u32 %v1259, 7
        %v1261 = vsub.s32 %v1258, %v1260
        %v1262 = vrot.slane %v1255, %v1261
        %v1264 = vunpack.c.l.s4 1966171168
        %v1265 = vunpack.c.0.s8 %v1264
        %v1266 = vlaneseq
        %v1267 = vshrl.u32 %v1266, 7
        %v1268 = vsub.s32 %v1265, %v1267
        %v1269 = vrot.slane %v1262, %v1268
        %v1271 = vsel %vm1252, %v1269, 0.0
        %v1272 = vadd.f32 %v1228, %v1271
        %1273 = vrot.lane.b32.xlu0 %v674, 30
        %v1274 = vpop.permute.xlu0 %1273
        %1275 = vrot.lane.b32.xlu0 %v683, 30
        %v1276 = vpop.permute.xlu0 %1275
        %vm1277 = vcmp.lt.s32.totalorder %v404, 30
        %v1278 = vsel %vm1277, %v1274, %v1276
        %v1279 = vsel %vm1277, %v1276, %v1274
        %1280 = vrot.lane.b32.xlu0 %v703, 30
        %v1281 = vpop.permute.xlu0 %1280
        %1282 = vrot.lane.b32.xlu0 %v704, 30
        %v1283 = vpop.permute.xlu0 %1282
        %v1284 = vsel %vm1277, %v1281, %v1283
        %v1285 = vsel %vm1277, %v1283, %v1281
        %s1286 = sld [smem:[#allocation7 + $0xc]]
        %s1287 = sld [smem:[#allocation7 + $0x3d]]
        %v1288 = vstv %s1286
        %v1289 = vmul.f32 %v1288, %v1279
        %v1290 = vmul.f32 %v1288, %v1278
        %v1291 = vstv %s1287
        %v1292 = vmul.f32 %v1291, %v1285
        %v1293 = vmul.f32 %v1291, %v1284
        %v1294 = vadd.f32 %v1289, %v1292
        %v1295 = vadd.f32 %v1290, %v1293
        %vm1296 = vmand %vm1052, %vm729
        %v1299 = vcombine.low %v1294, %v1295
        %v1301 = vunpack.c.l.s4 1966171168
        %v1302 = vunpack.c.0.s8 %v1301
        %v1303 = vlaneseq
        %v1304 = vshrl.u32 %v1303, 7
        %v1305 = vsub.s32 %v1302, %v1304
        %v1306 = vrot.slane %v1299, %v1305
        %v1308 = vunpack.c.l.s4 1966171168
        %v1309 = vunpack.c.0.s8 %v1308
        %v1310 = vlaneseq
        %v1311 = vshrl.u32 %v1310, 7
        %v1312 = vsub.s32 %v1309, %v1311
        %v1313 = vrot.slane %v1306, %v1312
        %v1315 = vsel %vm1296, %v1313, 0.0
        %v1316 = vadd.f32 %v1272, %v1315
        %1317 = vrot.lane.b32.xlu0 %v674, 29
        %v1318 = vpop.permute.xlu0 %1317
        %1319 = vrot.lane.b32.xlu0 %v683, 29
        %v1320 = vpop.permute.xlu0 %1319
        %vm1321 = vcmp.lt.s32.totalorder %v404, 29
        %v1322 = vsel %vm1321, %v1318, %v1320
        %v1323 = vsel %vm1321, %v1320, %v1318
        %1324 = vrot.lane.b32.xlu0 %v703, 29
        %v1325 = vpop.permute.xlu0 %1324
        %1326 = vrot.lane.b32.xlu0 %v704, 29
        %v1327 = vpop.permute.xlu0 %1326
        %v1328 = vsel %vm1321, %v1325, %v1327
        %v1329 = vsel %vm1321, %v1327, %v1325
        %s1330 = sld [smem:[#allocation7 + $0xd]]
        %s1331 = sld [smem:[#allocation7 + $0x3e]]
        %v1332 = vstv %s1330
        %v1333 = vmul.f32 %v1332, %v1323
        %v1334 = vmul.f32 %v1332, %v1322
        %v1335 = vstv %s1331
        %v1336 = vmul.f32 %v1335, %v1329
        %v1337 = vmul.f32 %v1335, %v1328
        %v1338 = vadd.f32 %v1333, %v1336
        %v1339 = vadd.f32 %v1334, %v1337
        %vm1340 = vmand %vm1052, %vm733
        %v1343 = vcombine.low %v1338, %v1339
        %v1345 = vunpack.c.l.s4 1966171168
        %v1346 = vunpack.c.0.s8 %v1345
        %v1347 = vlaneseq
        %v1348 = vshrl.u32 %v1347, 7
        %v1349 = vsub.s32 %v1346, %v1348
        %v1350 = vrot.slane %v1343, %v1349
        %v1352 = vunpack.c.l.s4 1966171168
        %v1353 = vunpack.c.0.s8 %v1352
        %v1354 = vlaneseq
        %v1355 = vshrl.u32 %v1354, 7
        %v1356 = vsub.s32 %v1353, %v1355
        %v1357 = vrot.slane %v1350, %v1356
        %v1359 = vsel %vm1340, %v1357, 0.0
        %v1360 = vadd.f32 %v1316, %v1359
        %v1361 = vadd.s32 %v705, 4294967295
        %vm1362 = vcmp.ge.s32.totalorder %v1361, 0
        %vm1363 = vcmp.lt.s32.totalorder %v1361, 16
        %vm1364 = vmand %vm1362, %vm1363
        %1365 = vrot.lane.b32.xlu0 %v674, 19
        %v1366 = vpop.permute.xlu0 %1365
        %1367 = vrot.lane.b32.xlu0 %v683, 19
        %v1368 = vpop.permute.xlu0 %1367
        %vm1369 = vcmp.lt.s32.totalorder %v404, 19
        %v1370 = vsel %vm1369, %v1366, %v1368
        %v1371 = vsel %vm1369, %v1368, %v1366
        %1372 = vrot.lane.b32.xlu0 %v703, 19
        %v1373 = vpop.permute.xlu0 %1372
        %1374 = vrot.lane.b32.xlu0 %v704, 19
        %v1375 = vpop.permute.xlu0 %1374
        %v1376 = vsel %vm1369, %v1373, %v1375
        %v1377 = vsel %vm1369, %v1375, %v1373
        %s1378 = sld [smem:[#allocation7 + $0xe]]
        %s1379 = sld [smem:[#allocation7 + $0x3f]]
        %v1380 = vstv %s1378
        %v1381 = vmul.f32 %v1380, %v1371
        %v1382 = vmul.f32 %v1380, %v1370
        %v1383 = vstv %s1379
        %v1384 = vmul.f32 %v1383, %v1377
        %v1385 = vmul.f32 %v1383, %v1376
        %v1386 = vadd.f32 %v1381, %v1384
        %v1387 = vadd.f32 %v1382, %v1385
        %vm1388 = vmand %vm1364, %vm710
        %v1391 = vcombine.low %v1386, %v1387
        %v1393 = vunpack.c.l.s4 1966171168
        %v1394 = vunpack.c.0.s8 %v1393
        %v1395 = vlaneseq
        %v1396 = vshrl.u32 %v1395, 7
        %v1397 = vsub.s32 %v1394, %v1396
        %v1398 = vrot.slane %v1391, %v1397
        %v1400 = vunpack.c.l.s4 1966171168
        %v1401 = vunpack.c.0.s8 %v1400
        %v1402 = vlaneseq
        %v1403 = vshrl.u32 %v1402, 7
        %v1404 = vsub.s32 %v1401, %v1403
        %v1405 = vrot.slane %v1398, %v1404
        %v1407 = vsel %vm1388, %v1405, 0.0
        %v1408 = vadd.f32 %v1360, %v1407
        %1409 = vrot.lane.b32.xlu0 %v674, 18
        %v1410 = vpop.permute.xlu0 %1409
        %1411 = vrot.lane.b32.xlu0 %v683, 18
        %v1412 = vpop.permute.xlu0 %1411
        %vm1413 = vcmp.lt.s32.totalorder %v404, 18
        %v1414 = vsel %vm1413, %v1410, %v1412
        %v1415 = vsel %vm1413, %v1412, %v1410
        %1416 = vrot.lane.b32.xlu0 %v703, 18
        %v1417 = vpop.permute.xlu0 %1416
        %1418 = vrot.lane.b32.xlu0 %v704, 18
        %v1419 = vpop.permute.xlu0 %1418
        %v1420 = vsel %vm1413, %v1417, %v1419
        %v1421 = vsel %vm1413, %v1419, %v1417
        %s1422 = sld [smem:[#allocation7 + $0xf]]
        %s1423 = sld [smem:[#allocation7 + $0x40]]
        %v1424 = vstv %s1422
        %v1425 = vmul.f32 %v1424, %v1415
        %v1426 = vmul.f32 %v1424, %v1414
        %v1427 = vstv %s1423
        %v1428 = vmul.f32 %v1427, %v1421
        %v1429 = vmul.f32 %v1427, %v1420
        %v1430 = vadd.f32 %v1425, %v1428
        %v1431 = vadd.f32 %v1426, %v1429
        %vm1432 = vmand %vm1364, %vm714
        %v1435 = vcombine.low %v1430, %v1431
        %v1437 = vunpack.c.l.s4 1966171168
        %v1438 = vunpack.c.0.s8 %v1437
        %v1439 = vlaneseq
        %v1440 = vshrl.u32 %v1439, 7
        %v1441 = vsub.s32 %v1438, %v1440
        %v1442 = vrot.slane %v1435, %v1441
        %v1444 = vunpack.c.l.s4 1966171168
        %v1445 = vunpack.c.0.s8 %v1444
        %v1446 = vlaneseq
        %v1447 = vshrl.u32 %v1446, 7
        %v1448 = vsub.s32 %v1445, %v1447
        %v1449 = vrot.slane %v1442, %v1448
        %v1451 = vsel %vm1432, %v1449, 0.0
        %v1452 = vadd.f32 %v1408, %v1451
        %1453 = vrot.lane.b32.xlu0 %v674, 17
        %v1454 = vpop.permute.xlu0 %1453
        %1455 = vrot.lane.b32.xlu0 %v683, 17
        %v1456 = vpop.permute.xlu0 %1455
        %vm1457 = vcmp.lt.s32.totalorder %v404, 17
        %v1458 = vsel %vm1457, %v1454, %v1456
        %v1459 = vsel %vm1457, %v1456, %v1454
        %1460 = vrot.lane.b32.xlu0 %v703, 17
        %v1461 = vpop.permute.xlu0 %1460
        %1462 = vrot.lane.b32.xlu0 %v704, 17
        %v1463 = vpop.permute.xlu0 %1462
        %v1464 = vsel %vm1457, %v1461, %v1463
        %v1465 = vsel %vm1457, %v1463, %v1461
        %s1466 = sld [smem:[#allocation7 + $0x10]]
        %s1467 = sld [smem:[#allocation7 + $0x41]]
        %v1468 = vstv %s1466
        %v1469 = vmul.f32 %v1468, %v1459
        %v1470 = vmul.f32 %v1468, %v1458
        %v1471 = vstv %s1467
        %v1472 = vmul.f32 %v1471, %v1465
        %v1473 = vmul.f32 %v1471, %v1464
        %v1474 = vadd.f32 %v1469, %v1472
        %v1475 = vadd.f32 %v1470, %v1473
        %vm1476 = vmand %vm1364, %vm718
        %v1479 = vcombine.low %v1474, %v1475
        %v1481 = vunpack.c.l.s4 1966171168
        %v1482 = vunpack.c.0.s8 %v1481
        %v1483 = vlaneseq
        %v1484 = vshrl.u32 %v1483, 7
        %v1485 = vsub.s32 %v1482, %v1484
        %v1486 = vrot.slane %v1479, %v1485
        %v1488 = vunpack.c.l.s4 1966171168
        %v1489 = vunpack.c.0.s8 %v1488
        %v1490 = vlaneseq
        %v1491 = vshrl.u32 %v1490, 7
        %v1492 = vsub.s32 %v1489, %v1491
        %v1493 = vrot.slane %v1486, %v1492
        %v1495 = vsel %vm1476, %v1493, 0.0
        %v1496 = vadd.f32 %v1452, %v1495
        %1497 = vrot.lane.b32.xlu0 %v674, 16
        %v1498 = vpop.permute.xlu0 %1497
        %1499 = vrot.lane.b32.xlu0 %v683, 16
        %v1500 = vpop.permute.xlu0 %1499
        %vm1501 = vcmp.lt.s32.totalorder %v404, 16
        %v1502 = vsel %vm1501, %v1498, %v1500
        %v1503 = vsel %vm1501, %v1500, %v1498
        %1504 = vrot.lane.b32.xlu0 %v703, 16
        %v1505 = vpop.permute.xlu0 %1504
        %1506 = vrot.lane.b32.xlu0 %v704, 16
        %v1507 = vpop.permute.xlu0 %1506
        %v1508 = vsel %vm1501, %v1505, %v1507
        %v1509 = vsel %vm1501, %v1507, %v1505
        %s1510 = sld [smem:[#allocation7 + $0x11]]
        %s1511 = sld [smem:[#allocation7 + $0x42]]
        %v1512 = vstv %s1510
        %v1513 = vmul.f32 %v1512, %v1503
        %v1514 = vmul.f32 %v1512, %v1502
        %v1515 = vstv %s1511
        %v1516 = vmul.f32 %v1515, %v1509
        %v1517 = vmul.f32 %v1515, %v1508
        %v1518 = vadd.f32 %v1513, %v1516
        %v1519 = vadd.f32 %v1514, %v1517
        %vm1520 = vmand %vm1364, %vm721
        %v1523 = vcombine.low %v1518, %v1519
        %v1525 = vunpack.c.l.s4 1966171168
        %v1526 = vunpack.c.0.s8 %v1525
        %v1527 = vlaneseq
        %v1528 = vshrl.u32 %v1527, 7
        %v1529 = vsub.s32 %v1526, %v1528
        %v1530 = vrot.slane %v1523, %v1529
        %v1532 = vunpack.c.l.s4 1966171168
        %v1533 = vunpack.c.0.s8 %v1532
        %v1534 = vlaneseq
        %v1535 = vshrl.u32 %v1534, 7
        %v1536 = vsub.s32 %v1533, %v1535
        %v1537 = vrot.slane %v1530, %v1536
        %v1539 = vsel %vm1520, %v1537, 0.0
        %v1540 = vadd.f32 %v1496, %v1539
        %1541 = vrot.lane.b32.xlu0 %v674, 15
        %v1542 = vpop.permute.xlu0 %1541
        %1543 = vrot.lane.b32.xlu0 %v683, 15
        %v1544 = vpop.permute.xlu0 %1543
        %vm1545 = vcmp.lt.s32.totalorder %v404, 15
        %v1546 = vsel %vm1545, %v1542, %v1544
        %v1547 = vsel %vm1545, %v1544, %v1542
        %1548 = vrot.lane.b32.xlu0 %v703, 15
        %v1549 = vpop.permute.xlu0 %1548
        %1550 = vrot.lane.b32.xlu0 %v704, 15
        %v1551 = vpop.permute.xlu0 %1550
        %v1552 = vsel %vm1545, %v1549, %v1551
        %v1553 = vsel %vm1545, %v1551, %v1549
        %s1554 = sld [smem:[#allocation7 + $0x12]]
        %s1555 = sld [smem:[#allocation7 + $0x43]]
        %v1556 = vstv %s1554
        %v1557 = vmul.f32 %v1556, %v1547
        %v1558 = vmul.f32 %v1556, %v1546
        %v1559 = vstv %s1555
        %v1560 = vmul.f32 %v1559, %v1553
        %v1561 = vmul.f32 %v1559, %v1552
        %v1562 = vadd.f32 %v1557, %v1560
        %v1563 = vadd.f32 %v1558, %v1561
        %vm1564 = vmand %vm1364, %vm725
        %v1567 = vcombine.low %v1562, %v1563
        %v1569 = vunpack.c.l.s4 1966171168
        %v1570 = vunpack.c.0.s8 %v1569
        %v1571 = vlaneseq
        %v1572 = vshrl.u32 %v1571, 7
        %v1573 = vsub.s32 %v1570, %v1572
        %v1574 = vrot.slane %v1567, %v1573
        %v1576 = vunpack.c.l.s4 1966171168
        %v1577 = vunpack.c.0.s8 %v1576
        %v1578 = vlaneseq
        %v1579 = vshrl.u32 %v1578, 7
        %v1580 = vsub.s32 %v1577, %v1579
        %v1581 = vrot.slane %v1574, %v1580
        %v1583 = vsel %vm1564, %v1581, 0.0
        %v1584 = vadd.f32 %v1540, %v1583
        %1585 = vrot.lane.b32.xlu0 %v674, 14
        %v1586 = vpop.permute.xlu0 %1585
        %1587 = vrot.lane.b32.xlu0 %v683, 14
        %v1588 = vpop.permute.xlu0 %1587
        %vm1589 = vcmp.lt.s32.totalorder %v404, 14
        %v1590 = vsel %vm1589, %v1586, %v1588
        %v1591 = vsel %vm1589, %v1588, %v1586
        %1592 = vrot.lane.b32.xlu0 %v703, 14
        %v1593 = vpop.permute.xlu0 %1592
        %1594 = vrot.lane.b32.xlu0 %v704, 14
        %v1595 = vpop.permute.xlu0 %1594
        %v1596 = vsel %vm1589, %v1593, %v1595
        %v1597 = vsel %vm1589, %v1595, %v1593
        %s1598 = sld [smem:[#allocation7 + $0x13]]
        %s1599 = sld [smem:[#allocation7 + $0x44]]
        %v1600 = vstv %s1598
        %v1601 = vmul.f32 %v1600, %v1591
        %v1602 = vmul.f32 %v1600, %v1590
        %v1603 = vstv %s1599
        %v1604 = vmul.f32 %v1603, %v1597
        %v1605 = vmul.f32 %v1603, %v1596
        %v1606 = vadd.f32 %v1601, %v1604
        %v1607 = vadd.f32 %v1602, %v1605
        %vm1608 = vmand %vm1364, %vm729
        %v1611 = vcombine.low %v1606, %v1607
        %v1613 = vunpack.c.l.s4 1966171168
        %v1614 = vunpack.c.0.s8 %v1613
        %v1615 = vlaneseq
        %v1616 = vshrl.u32 %v1615, 7
        %v1617 = vsub.s32 %v1614, %v1616
        %v1618 = vrot.slane %v1611, %v1617
        %v1620 = vunpack.c.l.s4 1966171168
        %v1621 = vunpack.c.0.s8 %v1620
        %v1622 = vlaneseq
        %v1623 = vshrl.u32 %v1622, 7
        %v1624 = vsub.s32 %v1621, %v1623
        %v1625 = vrot.slane %v1618, %v1624
        %v1627 = vsel %vm1608, %v1625, 0.0
        %v1628 = vadd.f32 %v1584, %v1627
        %1629 = vrot.lane.b32.xlu0 %v674, 13
        %v1630 = vpop.permute.xlu0 %1629
        %1631 = vrot.lane.b32.xlu0 %v683, 13
        %v1632 = vpop.permute.xlu0 %1631
        %vm1633 = vcmp.lt.s32.totalorder %v404, 13
        %v1634 = vsel %vm1633, %v1630, %v1632
        %v1635 = vsel %vm1633, %v1632, %v1630
        %1636 = vrot.lane.b32.xlu0 %v703, 13
        %v1637 = vpop.permute.xlu0 %1636
        %1638 = vrot.lane.b32.xlu0 %v704, 13
        %v1639 = vpop.permute.xlu0 %1638
        %v1640 = vsel %vm1633, %v1637, %v1639
        %v1641 = vsel %vm1633, %v1639, %v1637
        %s1642 = sld [smem:[#allocation7 + $0x14]]
        %s1643 = sld [smem:[#allocation7 + $0x45]]
        %v1644 = vstv %s1642
        %v1645 = vmul.f32 %v1644, %v1635
        %v1646 = vmul.f32 %v1644, %v1634
        %v1647 = vstv %s1643
        %v1648 = vmul.f32 %v1647, %v1641
        %v1649 = vmul.f32 %v1647, %v1640
        %v1650 = vadd.f32 %v1645, %v1648
        %v1651 = vadd.f32 %v1646, %v1649
        %vm1652 = vmand %vm1364, %vm733
        %v1655 = vcombine.low %v1650, %v1651
        %v1657 = vunpack.c.l.s4 1966171168
        %v1658 = vunpack.c.0.s8 %v1657
        %v1659 = vlaneseq
        %v1660 = vshrl.u32 %v1659, 7
        %v1661 = vsub.s32 %v1658, %v1660
        %v1662 = vrot.slane %v1655, %v1661
        %v1664 = vunpack.c.l.s4 1966171168
        %v1665 = vunpack.c.0.s8 %v1664
        %v1666 = vlaneseq
        %v1667 = vshrl.u32 %v1666, 7
        %v1668 = vsub.s32 %v1665, %v1667
        %v1669 = vrot.slane %v1662, %v1668
        %v1671 = vsel %vm1652, %v1669, 0.0
        %v1672 = vadd.f32 %v1628, %v1671
        %vm1673 = vcmp.ge.s32.totalorder %v705, 0
        %vm1674 = vcmp.lt.s32.totalorder %v705, 16
        %vm1675 = vmand %vm1673, %vm1674
        %1676 = vrot.lane.b32.xlu0 %v674, 3
        %v1677 = vpop.permute.xlu0 %1676
        %1678 = vrot.lane.b32.xlu0 %v683, 3
        %v1679 = vpop.permute.xlu0 %1678
        %vm1680 = vcmp.lt.s32.totalorder %v404, 3
        %v1681 = vsel %vm1680, %v1677, %v1679
        %v1682 = vsel %vm1680, %v1679, %v1677
        %1683 = vrot.lane.b32.xlu0 %v703, 3
        %v1684 = vpop.permute.xlu0 %1683
        %1685 = vrot.lane.b32.xlu0 %v704, 3
        %v1686 = vpop.permute.xlu0 %1685
        %v1687 = vsel %vm1680, %v1684, %v1686
        %v1688 = vsel %vm1680, %v1686, %v1684
        %s1689 = sld [smem:[#allocation7 + $0x15]]
        %s1690 = sld [smem:[#allocation7 + $0x46]]
        %v1691 = vstv %s1689
        %v1692 = vmul.f32 %v1691, %v1682
        %v1693 = vmul.f32 %v1691, %v1681
        %v1694 = vstv %s1690
        %v1695 = vmul.f32 %v1694, %v1688
        %v1696 = vmul.f32 %v1694, %v1687
        %v1697 = vadd.f32 %v1692, %v1695
        %v1698 = vadd.f32 %v1693, %v1696
        %vm1699 = vmand %vm1675, %vm710
        %v1702 = vcombine.low %v1697, %v1698
        %v1704 = vunpack.c.l.s4 1966171168
        %v1705 = vunpack.c.0.s8 %v1704
        %v1706 = vlaneseq
        %v1707 = vshrl.u32 %v1706, 7
        %v1708 = vsub.s32 %v1705, %v1707
        %v1709 = vrot.slane %v1702, %v1708
        %v1711 = vunpack.c.l.s4 1966171168
        %v1712 = vunpack.c.0.s8 %v1711
        %v1713 = vlaneseq
        %v1714 = vshrl.u32 %v1713, 7
        %v1715 = vsub.s32 %v1712, %v1714
        %v1716 = vrot.slane %v1709, %v1715
        %v1718 = vsel %vm1699, %v1716, 0.0
        %v1719 = vadd.f32 %v1672, %v1718
        %1720 = vrot.lane.b32.xlu0 %v674, 2
        %v1721 = vpop.permute.xlu0 %1720
        %1722 = vrot.lane.b32.xlu0 %v683, 2
        %v1723 = vpop.permute.xlu0 %1722
        %vm1724 = vcmp.lt.s32.totalorder %v404, 2
        %v1725 = vsel %vm1724, %v1721, %v1723
        %v1726 = vsel %vm1724, %v1723, %v1721
        %1727 = vrot.lane.b32.xlu0 %v703, 2
        %v1728 = vpop.permute.xlu0 %1727
        %1729 = vrot.lane.b32.xlu0 %v704, 2
        %v1730 = vpop.permute.xlu0 %1729
        %v1731 = vsel %vm1724, %v1728, %v1730
        %v1732 = vsel %vm1724, %v1730, %v1728
        %s1733 = sld [smem:[#allocation7 + $0x16]]
        %s1734 = sld [smem:[#allocation7 + $0x47]]
        %v1735 = vstv %s1733
        %v1736 = vmul.f32 %v1735, %v1726
        %v1737 = vmul.f32 %v1735, %v1725
        %v1738 = vstv %s1734
        %v1739 = vmul.f32 %v1738, %v1732
        %v1740 = vmul.f32 %v1738, %v1731
        %v1741 = vadd.f32 %v1736, %v1739
        %v1742 = vadd.f32 %v1737, %v1740
        %vm1743 = vmand %vm1675, %vm714
        %v1746 = vcombine.low %v1741, %v1742
        %v1748 = vunpack.c.l.s4 1966171168
        %v1749 = vunpack.c.0.s8 %v1748
        %v1750 = vlaneseq
        %v1751 = vshrl.u32 %v1750, 7
        %v1752 = vsub.s32 %v1749, %v1751
        %v1753 = vrot.slane %v1746, %v1752
        %v1755 = vunpack.c.l.s4 1966171168
        %v1756 = vunpack.c.0.s8 %v1755
        %v1757 = vlaneseq
        %v1758 = vshrl.u32 %v1757, 7
        %v1759 = vsub.s32 %v1756, %v1758
        %v1760 = vrot.slane %v1753, %v1759
        %v1762 = vsel %vm1743, %v1760, 0.0
        %v1763 = vadd.f32 %v1719, %v1762
        %1764 = vrot.lane.b32.xlu0 %v674, 1
        %v1765 = vpop.permute.xlu0 %1764
        %1766 = vrot.lane.b32.xlu0 %v683, 1
        %v1767 = vpop.permute.xlu0 %1766
        %vm1768 = vcmp.lt.s32.totalorder %v404, 1
        %v1769 = vsel %vm1768, %v1765, %v1767
        %v1770 = vsel %vm1768, %v1767, %v1765
        %1771 = vrot.lane.b32.xlu0 %v703, 1
        %v1772 = vpop.permute.xlu0 %1771
        %1773 = vrot.lane.b32.xlu0 %v704, 1
        %v1774 = vpop.permute.xlu0 %1773
        %v1775 = vsel %vm1768, %v1772, %v1774
        %v1776 = vsel %vm1768, %v1774, %v1772
        %s1777 = sld [smem:[#allocation7 + $0x17]]
        %s1778 = sld [smem:[#allocation7 + $0x48]]
        %v1779 = vstv %s1777
        %v1780 = vmul.f32 %v1779, %v1770
        %v1781 = vmul.f32 %v1779, %v1769
        %v1782 = vstv %s1778
        %v1783 = vmul.f32 %v1782, %v1776
        %v1784 = vmul.f32 %v1782, %v1775
        %v1785 = vadd.f32 %v1780, %v1783
        %v1786 = vadd.f32 %v1781, %v1784
        %vm1787 = vmand %vm1675, %vm718
        %v1790 = vcombine.low %v1785, %v1786
        %v1792 = vunpack.c.l.s4 1966171168
        %v1793 = vunpack.c.0.s8 %v1792
        %v1794 = vlaneseq
        %v1795 = vshrl.u32 %v1794, 7
        %v1796 = vsub.s32 %v1793, %v1795
        %v1797 = vrot.slane %v1790, %v1796
        %v1799 = vunpack.c.l.s4 1966171168
        %v1800 = vunpack.c.0.s8 %v1799
        %v1801 = vlaneseq
        %v1802 = vshrl.u32 %v1801, 7
        %v1803 = vsub.s32 %v1800, %v1802
        %v1804 = vrot.slane %v1797, %v1803
        %v1806 = vsel %vm1787, %v1804, 0.0
        %v1807 = vadd.f32 %v1763, %v1806
        %s1808 = sld [smem:[#allocation7 + $0x18]]
        %s1809 = sld [smem:[#allocation7 + $0x49]]
        %v1810 = vstv %s1808
        %v1811 = vmul.f32 %v1810, %v674
        %v1812 = vmul.f32 %v1810, %v683
        %v1813 = vstv %s1809
        %v1814 = vmul.f32 %v1813, %v703
        %v1815 = vmul.f32 %v1813, %v704
        %v1816 = vadd.f32 %v1811, %v1814
        %v1817 = vadd.f32 %v1812, %v1815
        %vm1818 = vmand %vm1675, %vm721
        %v1821 = vcombine.low %v1816, %v1817
        %v1823 = vunpack.c.l.s4 1966171168
        %v1824 = vunpack.c.0.s8 %v1823
        %v1825 = vlaneseq
        %v1826 = vshrl.u32 %v1825, 7
        %v1827 = vsub.s32 %v1824, %v1826
        %v1828 = vrot.slane %v1821, %v1827
        %v1830 = vunpack.c.l.s4 1966171168
        %v1831 = vunpack.c.0.s8 %v1830
        %v1832 = vlaneseq
        %v1833 = vshrl.u32 %v1832, 7
        %v1834 = vsub.s32 %v1831, %v1833
        %v1835 = vrot.slane %v1828, %v1834
        %v1837 = vsel %vm1818, %v1835, 0.0
        %v1838 = vadd.f32 %v1807, %v1837
        %1839 = vrot.lane.b32.xlu0 %v674, 127
        %v1840 = vpop.permute.xlu0 %1839
        %1841 = vrot.lane.b32.xlu0 %v683, 127
        %v1842 = vpop.permute.xlu0 %1841
        %vm1843 = vcmp.lt.s32.totalorder %v404, 127
        %v1844 = vsel %vm1843, %v1840, %v1842
        %v1845 = vsel %vm1843, %v1842, %v1840
        %1846 = vrot.lane.b32.xlu0 %v703, 127
        %v1847 = vpop.permute.xlu0 %1846
        %1848 = vrot.lane.b32.xlu0 %v704, 127
        %v1849 = vpop.permute.xlu0 %1848
        %v1850 = vsel %vm1843, %v1847, %v1849
        %v1851 = vsel %vm1843, %v1849, %v1847
        %s1852 = sld [smem:[#allocation7 + $0x19]]
        %s1853 = sld [smem:[#allocation7 + $0x4a]]
        %v1854 = vstv %s1852
        %v1855 = vmul.f32 %v1854, %v1844
        %v1856 = vmul.f32 %v1854, %v1845
        %v1857 = vstv %s1853
        %v1858 = vmul.f32 %v1857, %v1850
        %v1859 = vmul.f32 %v1857, %v1851
        %v1860 = vadd.f32 %v1855, %v1858
        %v1861 = vadd.f32 %v1856, %v1859
        %vm1862 = vmand %vm1675, %vm725
        %v1865 = vcombine.low %v1860, %v1861
        %v1867 = vunpack.c.l.s4 1966171168
        %v1868 = vunpack.c.0.s8 %v1867
        %v1869 = vlaneseq
        %v1870 = vshrl.u32 %v1869, 7
        %v1871 = vsub.s32 %v1868, %v1870
        %v1872 = vrot.slane %v1865, %v1871
        %v1874 = vunpack.c.l.s4 1966171168
        %v1875 = vunpack.c.0.s8 %v1874
        %v1876 = vlaneseq
        %v1877 = vshrl.u32 %v1876, 7
        %v1878 = vsub.s32 %v1875, %v1877
        %v1879 = vrot.slane %v1872, %v1878
        %v1881 = vsel %vm1862, %v1879, 0.0
        %v1882 = vadd.f32 %v1838, %v1881
        %1883 = vrot.lane.b32.xlu0 %v674, 126
        %v1884 = vpop.permute.xlu0 %1883
        %1885 = vrot.lane.b32.xlu0 %v683, 126
        %v1886 = vpop.permute.xlu0 %1885
        %vm1887 = vcmp.lt.s32.totalorder %v404, 126
        %v1888 = vsel %vm1887, %v1884, %v1886
        %v1889 = vsel %vm1887, %v1886, %v1884
        %1890 = vrot.lane.b32.xlu0 %v703, 126
        %v1891 = vpop.permute.xlu0 %1890
        %1892 = vrot.lane.b32.xlu0 %v704, 126
        %v1893 = vpop.permute.xlu0 %1892
        %v1894 = vsel %vm1887, %v1891, %v1893
        %v1895 = vsel %vm1887, %v1893, %v1891
        %s1896 = sld [smem:[#allocation7 + $0x1a]]
        %s1897 = sld [smem:[#allocation7 + $0x4b]]
        %v1898 = vstv %s1896
        %v1899 = vmul.f32 %v1898, %v1888
        %v1900 = vmul.f32 %v1898, %v1889
        %v1901 = vstv %s1897
        %v1902 = vmul.f32 %v1901, %v1894
        %v1903 = vmul.f32 %v1901, %v1895
        %v1904 = vadd.f32 %v1899, %v1902
        %v1905 = vadd.f32 %v1900, %v1903
        %vm1906 = vmand %vm1675, %vm729
        %v1909 = vcombine.low %v1904, %v1905
        %v1911 = vunpack.c.l.s4 1966171168
        %v1912 = vunpack.c.0.s8 %v1911
        %v1913 = vlaneseq
        %v1914 = vshrl.u32 %v1913, 7
        %v1915 = vsub.s32 %v1912, %v1914
        %v1916 = vrot.slane %v1909, %v1915
        %v1918 = vunpack.c.l.s4 1966171168
        %v1919 = vunpack.c.0.s8 %v1918
        %v1920 = vlaneseq
        %v1921 = vshrl.u32 %v1920, 7
        %v1922 = vsub.s32 %v1919, %v1921
        %v1923 = vrot.slane %v1916, %v1922
        %v1925 = vsel %vm1906, %v1923, 0.0
        %v1926 = vadd.f32 %v1882, %v1925
        %1927 = vrot.lane.b32.xlu0 %v674, 125
        %v1928 = vpop.permute.xlu0 %1927
        %1929 = vrot.lane.b32.xlu0 %v683, 125
        %v1930 = vpop.permute.xlu0 %1929
        %vm1931 = vcmp.lt.s32.totalorder %v404, 125
        %v1932 = vsel %vm1931, %v1928, %v1930
        %v1933 = vsel %vm1931, %v1930, %v1928
        %1934 = vrot.lane.b32.xlu0 %v703, 125
        %v1935 = vpop.permute.xlu0 %1934
        %1936 = vrot.lane.b32.xlu0 %v704, 125
        %v1937 = vpop.permute.xlu0 %1936
        %v1938 = vsel %vm1931, %v1935, %v1937
        %v1939 = vsel %vm1931, %v1937, %v1935
        %s1940 = sld [smem:[#allocation7 + $0x1b]]
        %s1941 = sld [smem:[#allocation7 + $0x4c]]
        %v1942 = vstv %s1940
        %v1943 = vmul.f32 %v1942, %v1932
        %v1944 = vmul.f32 %v1942, %v1933
        %v1945 = vstv %s1941
        %v1946 = vmul.f32 %v1945, %v1938
        %v1947 = vmul.f32 %v1945, %v1939
        %v1948 = vadd.f32 %v1943, %v1946
        %v1949 = vadd.f32 %v1944, %v1947
        %vm1950 = vmand %vm1675, %vm733
        %v1953 = vcombine.low %v1948, %v1949
        %v1955 = vunpack.c.l.s4 1966171168
        %v1956 = vunpack.c.0.s8 %v1955
        %v1957 = vlaneseq
        %v1958 = vshrl.u32 %v1957, 7
        %v1959 = vsub.s32 %v1956, %v1958
        %v1960 = vrot.slane %v1953, %v1959
        %v1962 = vunpack.c.l.s4 1966171168
        %v1963 = vunpack.c.0.s8 %v1962
        %v1964 = vlaneseq
        %v1965 = vshrl.u32 %v1964, 7
        %v1966 = vsub.s32 %v1963, %v1965
        %v1967 = vrot.slane %v1960, %v1966
        %v1969 = vsel %vm1950, %v1967, 0.0
        %v1970 = vadd.f32 %v1926, %v1969
        %v1971 = vadd.s32 %v705, 1
        %vm1972 = vcmp.ge.s32.totalorder %v1971, 0
        %vm1973 = vcmp.lt.s32.totalorder %v1971, 16
        %vm1974 = vmand %vm1972, %vm1973
        %1975 = vrot.lane.b32.xlu0 %v674, 115
        %v1976 = vpop.permute.xlu0 %1975
        %1977 = vrot.lane.b32.xlu0 %v683, 115
        %v1978 = vpop.permute.xlu0 %1977
        %vm1979 = vcmp.lt.s32.totalorder %v404, 115
        %v1980 = vsel %vm1979, %v1976, %v1978
        %v1981 = vsel %vm1979, %v1978, %v1976
        %1982 = vrot.lane.b32.xlu0 %v703, 115
        %v1983 = vpop.permute.xlu0 %1982
        %1984 = vrot.lane.b32.xlu0 %v704, 115
        %v1985 = vpop.permute.xlu0 %1984
        %v1986 = vsel %vm1979, %v1983, %v1985
        %v1987 = vsel %vm1979, %v1985, %v1983
        %s1988 = sld [smem:[#allocation7 + $0x1c]]
        %s1989 = sld [smem:[#allocation7 + $0x4d]]
        %v1990 = vstv %s1988
        %v1991 = vmul.f32 %v1990, %v1980
        %v1992 = vmul.f32 %v1990, %v1981
        %v1993 = vstv %s1989
        %v1994 = vmul.f32 %v1993, %v1986
        %v1995 = vmul.f32 %v1993, %v1987
        %v1996 = vadd.f32 %v1991, %v1994
        %v1997 = vadd.f32 %v1992, %v1995
        %vm1998 = vmand %vm1974, %vm710
        %v2001 = vcombine.low %v1996, %v1997
        %v2003 = vunpack.c.l.s4 1966171168
        %v2004 = vunpack.c.0.s8 %v2003
        %v2005 = vlaneseq
        %v2006 = vshrl.u32 %v2005, 7
        %v2007 = vsub.s32 %v2004, %v2006
        %v2008 = vrot.slane %v2001, %v2007
        %v2010 = vunpack.c.l.s4 1966171168
        %v2011 = vunpack.c.0.s8 %v2010
        %v2012 = vlaneseq
        %v2013 = vshrl.u32 %v2012, 7
        %v2014 = vsub.s32 %v2011, %v2013
        %v2015 = vrot.slane %v2008, %v2014
        %v2017 = vsel %vm1998, %v2015, 0.0
        %v2018 = vadd.f32 %v1970, %v2017
        %2019 = vrot.lane.b32.xlu0 %v674, 114
        %v2020 = vpop.permute.xlu0 %2019
        %2021 = vrot.lane.b32.xlu0 %v683, 114
        %v2022 = vpop.permute.xlu0 %2021
        %vm2023 = vcmp.lt.s32.totalorder %v404, 114
        %v2024 = vsel %vm2023, %v2020, %v2022
        %v2025 = vsel %vm2023, %v2022, %v2020
        %2026 = vrot.lane.b32.xlu0 %v703, 114
        %v2027 = vpop.permute.xlu0 %2026
        %2028 = vrot.lane.b32.xlu0 %v704, 114
        %v2029 = vpop.permute.xlu0 %2028
        %v2030 = vsel %vm2023, %v2027, %v2029
        %v2031 = vsel %vm2023, %v2029, %v2027
        %s2032 = sld [smem:[#allocation7 + $0x1d]]
        %s2033 = sld [smem:[#allocation7 + $0x4e]]
        %v2034 = vstv %s2032
        %v2035 = vmul.f32 %v2034, %v2024
        %v2036 = vmul.f32 %v2034, %v2025
        %v2037 = vstv %s2033
        %v2038 = vmul.f32 %v2037, %v2030
        %v2039 = vmul.f32 %v2037, %v2031
        %v2040 = vadd.f32 %v2035, %v2038
        %v2041 = vadd.f32 %v2036, %v2039
        %vm2042 = vmand %vm1974, %vm714
        %v2045 = vcombine.low %v2040, %v2041
        %v2047 = vunpack.c.l.s4 1966171168
        %v2048 = vunpack.c.0.s8 %v2047
        %v2049 = vlaneseq
        %v2050 = vshrl.u32 %v2049, 7
        %v2051 = vsub.s32 %v2048, %v2050
        %v2052 = vrot.slane %v2045, %v2051
        %v2054 = vunpack.c.l.s4 1966171168
        %v2055 = vunpack.c.0.s8 %v2054
        %v2056 = vlaneseq
        %v2057 = vshrl.u32 %v2056, 7
        %v2058 = vsub.s32 %v2055, %v2057
        %v2059 = vrot.slane %v2052, %v2058
        %v2061 = vsel %vm2042, %v2059, 0.0
        %v2062 = vadd.f32 %v2018, %v2061
        %2063 = vrot.lane.b32.xlu0 %v674, 113
        %v2064 = vpop.permute.xlu0 %2063
        %2065 = vrot.lane.b32.xlu0 %v683, 113
        %v2066 = vpop.permute.xlu0 %2065
        %vm2067 = vcmp.lt.s32.totalorder %v404, 113
        %v2068 = vsel %vm2067, %v2064, %v2066
        %v2069 = vsel %vm2067, %v2066, %v2064
        %2070 = vrot.lane.b32.xlu0 %v703, 113
        %v2071 = vpop.permute.xlu0 %2070
        %2072 = vrot.lane.b32.xlu0 %v704, 113
        %v2073 = vpop.permute.xlu0 %2072
        %v2074 = vsel %vm2067, %v2071, %v2073
        %v2075 = vsel %vm2067, %v2073, %v2071
        %s2076 = sld [smem:[#allocation7 + $0x1e]]
        %s2077 = sld [smem:[#allocation7 + $0x4f]]
        %v2078 = vstv %s2076
        %v2079 = vmul.f32 %v2078, %v2068
        %v2080 = vmul.f32 %v2078, %v2069
        %v2081 = vstv %s2077
        %v2082 = vmul.f32 %v2081, %v2074
        %v2083 = vmul.f32 %v2081, %v2075
        %v2084 = vadd.f32 %v2079, %v2082
        %v2085 = vadd.f32 %v2080, %v2083
        %vm2086 = vmand %vm1974, %vm718
        %v2089 = vcombine.low %v2084, %v2085
        %v2091 = vunpack.c.l.s4 1966171168
        %v2092 = vunpack.c.0.s8 %v2091
        %v2093 = vlaneseq
        %v2094 = vshrl.u32 %v2093, 7
        %v2095 = vsub.s32 %v2092, %v2094
        %v2096 = vrot.slane %v2089, %v2095
        %v2098 = vunpack.c.l.s4 1966171168
        %v2099 = vunpack.c.0.s8 %v2098
        %v2100 = vlaneseq
        %v2101 = vshrl.u32 %v2100, 7
        %v2102 = vsub.s32 %v2099, %v2101
        %v2103 = vrot.slane %v2096, %v2102
        %v2105 = vsel %vm2086, %v2103, 0.0
        %v2106 = vadd.f32 %v2062, %v2105
        %2107 = vrot.lane.b32.xlu0 %v674, 112
        %v2108 = vpop.permute.xlu0 %2107
        %2109 = vrot.lane.b32.xlu0 %v683, 112
        %v2110 = vpop.permute.xlu0 %2109
        %vm2111 = vcmp.lt.s32.totalorder %v404, 112
        %v2112 = vsel %vm2111, %v2108, %v2110
        %v2113 = vsel %vm2111, %v2110, %v2108
        %2114 = vrot.lane.b32.xlu0 %v703, 112
        %v2115 = vpop.permute.xlu0 %2114
        %2116 = vrot.lane.b32.xlu0 %v704, 112
        %v2117 = vpop.permute.xlu0 %2116
        %v2118 = vsel %vm2111, %v2115, %v2117
        %v2119 = vsel %vm2111, %v2117, %v2115
        %s2120 = sld [smem:[#allocation7 + $0x1f]]
        %s2121 = sld [smem:[#allocation7 + $0x50]]
        %v2122 = vstv %s2120
        %v2123 = vmul.f32 %v2122, %v2112
        %v2124 = vmul.f32 %v2122, %v2113
        %v2125 = vstv %s2121
        %v2126 = vmul.f32 %v2125, %v2118
        %v2127 = vmul.f32 %v2125, %v2119
        %v2128 = vadd.f32 %v2123, %v2126
        %v2129 = vadd.f32 %v2124, %v2127
        %vm2130 = vmand %vm1974, %vm721
        %v2133 = vcombine.low %v2128, %v2129
        %v2135 = vunpack.c.l.s4 1966171168
        %v2136 = vunpack.c.0.s8 %v2135
        %v2137 = vlaneseq
        %v2138 = vshrl.u32 %v2137, 7
        %v2139 = vsub.s32 %v2136, %v2138
        %v2140 = vrot.slane %v2133, %v2139
        %v2142 = vunpack.c.l.s4 1966171168
        %v2143 = vunpack.c.0.s8 %v2142
        %v2144 = vlaneseq
        %v2145 = vshrl.u32 %v2144, 7
        %v2146 = vsub.s32 %v2143, %v2145
        %v2147 = vrot.slane %v2140, %v2146
        %v2149 = vsel %vm2130, %v2147, 0.0
        %v2150 = vadd.f32 %v2106, %v2149
        %2151 = vrot.lane.b32.xlu0 %v674, 111
        %v2152 = vpop.permute.xlu0 %2151
        %2153 = vrot.lane.b32.xlu0 %v683, 111
        %v2154 = vpop.permute.xlu0 %2153
        %vm2155 = vcmp.lt.s32.totalorder %v404, 111
        %v2156 = vsel %vm2155, %v2152, %v2154
        %v2157 = vsel %vm2155, %v2154, %v2152
        %2158 = vrot.lane.b32.xlu0 %v703, 111
        %v2159 = vpop.permute.xlu0 %2158
        %2160 = vrot.lane.b32.xlu0 %v704, 111
        %v2161 = vpop.permute.xlu0 %2160
        %v2162 = vsel %vm2155, %v2159, %v2161
        %v2163 = vsel %vm2155, %v2161, %v2159
        %s2164 = sld [smem:[#allocation7 + $0x20]]
        %s2165 = sld [smem:[#allocation7 + $0x51]]
        %v2166 = vstv %s2164
        %v2167 = vmul.f32 %v2166, %v2156
        %v2168 = vmul.f32 %v2166, %v2157
        %v2169 = vstv %s2165
        %v2170 = vmul.f32 %v2169, %v2162
        %v2171 = vmul.f32 %v2169, %v2163
        %v2172 = vadd.f32 %v2167, %v2170
        %v2173 = vadd.f32 %v2168, %v2171
        %vm2174 = vmand %vm1974, %vm725
        %v2177 = vcombine.low %v2172, %v2173
        %v2179 = vunpack.c.l.s4 1966171168
        %v2180 = vunpack.c.0.s8 %v2179
        %v2181 = vlaneseq
        %v2182 = vshrl.u32 %v2181, 7
        %v2183 = vsub.s32 %v2180, %v2182
        %v2184 = vrot.slane %v2177, %v2183
        %v2186 = vunpack.c.l.s4 1966171168
        %v2187 = vunpack.c.0.s8 %v2186
        %v2188 = vlaneseq
        %v2189 = vshrl.u32 %v2188, 7
        %v2190 = vsub.s32 %v2187, %v2189
        %v2191 = vrot.slane %v2184, %v2190
        %v2193 = vsel %vm2174, %v2191, 0.0
        %v2194 = vadd.f32 %v2150, %v2193
        %2195 = vrot.lane.b32.xlu0 %v674, 110
        %v2196 = vpop.permute.xlu0 %2195
        %2197 = vrot.lane.b32.xlu0 %v683, 110
        %v2198 = vpop.permute.xlu0 %2197
        %vm2199 = vcmp.lt.s32.totalorder %v404, 110
        %v2200 = vsel %vm2199, %v2196, %v2198
        %v2201 = vsel %vm2199, %v2198, %v2196
        %2202 = vrot.lane.b32.xlu0 %v703, 110
        %v2203 = vpop.permute.xlu0 %2202
        %2204 = vrot.lane.b32.xlu0 %v704, 110
        %v2205 = vpop.permute.xlu0 %2204
        %v2206 = vsel %vm2199, %v2203, %v2205
        %v2207 = vsel %vm2199, %v2205, %v2203
        %s2208 = sld [smem:[#allocation7 + $0x21]]
        %s2209 = sld [smem:[#allocation7 + $0x52]]
        %v2210 = vstv %s2208
        %v2211 = vmul.f32 %v2210, %v2200
        %v2212 = vmul.f32 %v2210, %v2201
        %v2213 = vstv %s2209
        %v2214 = vmul.f32 %v2213, %v2206
        %v2215 = vmul.f32 %v2213, %v2207
        %v2216 = vadd.f32 %v2211, %v2214
        %v2217 = vadd.f32 %v2212, %v2215
        %vm2218 = vmand %vm1974, %vm729
        %v2221 = vcombine.low %v2216, %v2217
        %v2223 = vunpack.c.l.s4 1966171168
        %v2224 = vunpack.c.0.s8 %v2223
        %v2225 = vlaneseq
        %v2226 = vshrl.u32 %v2225, 7
        %v2227 = vsub.s32 %v2224, %v2226
        %v2228 = vrot.slane %v2221, %v2227
        %v2230 = vunpack.c.l.s4 1966171168
        %v2231 = vunpack.c.0.s8 %v2230
        %v2232 = vlaneseq
        %v2233 = vshrl.u32 %v2232, 7
        %v2234 = vsub.s32 %v2231, %v2233
        %v2235 = vrot.slane %v2228, %v2234
        %v2237 = vsel %vm2218, %v2235, 0.0
        %v2238 = vadd.f32 %v2194, %v2237
        %2239 = vrot.lane.b32.xlu0 %v674, 109
        %v2240 = vpop.permute.xlu0 %2239
        %2241 = vrot.lane.b32.xlu0 %v683, 109
        %v2242 = vpop.permute.xlu0 %2241
        %vm2243 = vcmp.lt.s32.totalorder %v404, 109
        %v2244 = vsel %vm2243, %v2240, %v2242
        %v2245 = vsel %vm2243, %v2242, %v2240
        %2246 = vrot.lane.b32.xlu0 %v703, 109
        %v2247 = vpop.permute.xlu0 %2246
        %2248 = vrot.lane.b32.xlu0 %v704, 109
        %v2249 = vpop.permute.xlu0 %2248
        %v2250 = vsel %vm2243, %v2247, %v2249
        %v2251 = vsel %vm2243, %v2249, %v2247
        %s2252 = sld [smem:[#allocation7 + $0x22]]
        %s2253 = sld [smem:[#allocation7 + $0x53]]
        %v2254 = vstv %s2252
        %v2255 = vmul.f32 %v2254, %v2244
        %v2256 = vmul.f32 %v2254, %v2245
        %v2257 = vstv %s2253
        %v2258 = vmul.f32 %v2257, %v2250
        %v2259 = vmul.f32 %v2257, %v2251
        %v2260 = vadd.f32 %v2255, %v2258
        %v2261 = vadd.f32 %v2256, %v2259
        %vm2262 = vmand %vm1974, %vm733
        %v2265 = vcombine.low %v2260, %v2261
        %v2267 = vunpack.c.l.s4 1966171168
        %v2268 = vunpack.c.0.s8 %v2267
        %v2269 = vlaneseq
        %v2270 = vshrl.u32 %v2269, 7
        %v2271 = vsub.s32 %v2268, %v2270
        %v2272 = vrot.slane %v2265, %v2271
        %v2274 = vunpack.c.l.s4 1966171168
        %v2275 = vunpack.c.0.s8 %v2274
        %v2276 = vlaneseq
        %v2277 = vshrl.u32 %v2276, 7
        %v2278 = vsub.s32 %v2275, %v2277
        %v2279 = vrot.slane %v2272, %v2278
        %v2281 = vsel %vm2262, %v2279, 0.0
        %v2282 = vadd.f32 %v2238, %v2281
        %v2283 = vadd.s32 %v705, 2
        %vm2284 = vcmp.ge.s32.totalorder %v2283, 0
        %vm2285 = vcmp.lt.s32.totalorder %v2283, 16
        %vm2286 = vmand %vm2284, %vm2285
        %2287 = vrot.lane.b32.xlu0 %v674, 99
        %v2288 = vpop.permute.xlu0 %2287
        %2289 = vrot.lane.b32.xlu0 %v683, 99
        %v2290 = vpop.permute.xlu0 %2289
        %vm2291 = vcmp.lt.s32.totalorder %v404, 99
        %v2292 = vsel %vm2291, %v2288, %v2290
        %v2293 = vsel %vm2291, %v2290, %v2288
        %2294 = vrot.lane.b32.xlu0 %v703, 99
        %v2295 = vpop.permute.xlu0 %2294
        %2296 = vrot.lane.b32.xlu0 %v704, 99
        %v2297 = vpop.permute.xlu0 %2296
        %v2298 = vsel %vm2291, %v2295, %v2297
        %v2299 = vsel %vm2291, %v2297, %v2295
        %s2300 = sld [smem:[#allocation7 + $0x23]]
        %s2301 = sld [smem:[#allocation7 + $0x54]]
        %v2302 = vstv %s2300
        %v2303 = vmul.f32 %v2302, %v2292
        %v2304 = vmul.f32 %v2302, %v2293
        %v2305 = vstv %s2301
        %v2306 = vmul.f32 %v2305, %v2298
        %v2307 = vmul.f32 %v2305, %v2299
        %v2308 = vadd.f32 %v2303, %v2306
        %v2309 = vadd.f32 %v2304, %v2307
        %vm2310 = vmand %vm2286, %vm710
        %v2313 = vcombine.low %v2308, %v2309
        %v2315 = vunpack.c.l.s4 1966171168
        %v2316 = vunpack.c.0.s8 %v2315
        %v2317 = vlaneseq
        %v2318 = vshrl.u32 %v2317, 7
        %v2319 = vsub.s32 %v2316, %v2318
        %v2320 = vrot.slane %v2313, %v2319
        %v2322 = vunpack.c.l.s4 1966171168
        %v2323 = vunpack.c.0.s8 %v2322
        %v2324 = vlaneseq
        %v2325 = vshrl.u32 %v2324, 7
        %v2326 = vsub.s32 %v2323, %v2325
        %v2327 = vrot.slane %v2320, %v2326
        %v2329 = vsel %vm2310, %v2327, 0.0
        %v2330 = vadd.f32 %v2282, %v2329
        %2331 = vrot.lane.b32.xlu0 %v674, 98
        %v2332 = vpop.permute.xlu0 %2331
        %2333 = vrot.lane.b32.xlu0 %v683, 98
        %v2334 = vpop.permute.xlu0 %2333
        %vm2335 = vcmp.lt.s32.totalorder %v404, 98
        %v2336 = vsel %vm2335, %v2332, %v2334
        %v2337 = vsel %vm2335, %v2334, %v2332
        %2338 = vrot.lane.b32.xlu0 %v703, 98
        %v2339 = vpop.permute.xlu0 %2338
        %2340 = vrot.lane.b32.xlu0 %v704, 98
        %v2341 = vpop.permute.xlu0 %2340
        %v2342 = vsel %vm2335, %v2339, %v2341
        %v2343 = vsel %vm2335, %v2341, %v2339
        %s2344 = sld [smem:[#allocation7 + $0x24]]
        %s2345 = sld [smem:[#allocation7 + $0x55]]
        %v2346 = vstv %s2344
        %v2347 = vmul.f32 %v2346, %v2336
        %v2348 = vmul.f32 %v2346, %v2337
        %v2349 = vstv %s2345
        %v2350 = vmul.f32 %v2349, %v2342
        %v2351 = vmul.f32 %v2349, %v2343
        %v2352 = vadd.f32 %v2347, %v2350
        %v2353 = vadd.f32 %v2348, %v2351
        %vm2354 = vmand %vm2286, %vm714
        %v2357 = vcombine.low %v2352, %v2353
        %v2359 = vunpack.c.l.s4 1966171168
        %v2360 = vunpack.c.0.s8 %v2359
        %v2361 = vlaneseq
        %v2362 = vshrl.u32 %v2361, 7
        %v2363 = vsub.s32 %v2360, %v2362
        %v2364 = vrot.slane %v2357, %v2363
        %v2366 = vunpack.c.l.s4 1966171168
        %v2367 = vunpack.c.0.s8 %v2366
        %v2368 = vlaneseq
        %v2369 = vshrl.u32 %v2368, 7
        %v2370 = vsub.s32 %v2367, %v2369
        %v2371 = vrot.slane %v2364, %v2370
        %v2373 = vsel %vm2354, %v2371, 0.0
        %v2374 = vadd.f32 %v2330, %v2373
        %2375 = vrot.lane.b32.xlu0 %v674, 97
        %v2376 = vpop.permute.xlu0 %2375
        %2377 = vrot.lane.b32.xlu0 %v683, 97
        %v2378 = vpop.permute.xlu0 %2377
        %vm2379 = vcmp.lt.s32.totalorder %v404, 97
        %v2380 = vsel %vm2379, %v2376, %v2378
        %v2381 = vsel %vm2379, %v2378, %v2376
        %2382 = vrot.lane.b32.xlu0 %v703, 97
        %v2383 = vpop.permute.xlu0 %2382
        %2384 = vrot.lane.b32.xlu0 %v704, 97
        %v2385 = vpop.permute.xlu0 %2384
        %v2386 = vsel %vm2379, %v2383, %v2385
        %v2387 = vsel %vm2379, %v2385, %v2383
        %s2388 = sld [smem:[#allocation7 + $0x25]]
        %s2389 = sld [smem:[#allocation7 + $0x56]]
        %v2390 = vstv %s2388
        %v2391 = vmul.f32 %v2390, %v2380
        %v2392 = vmul.f32 %v2390, %v2381
        %v2393 = vstv %s2389
        %v2394 = vmul.f32 %v2393, %v2386
        %v2395 = vmul.f32 %v2393, %v2387
        %v2396 = vadd.f32 %v2391, %v2394
        %v2397 = vadd.f32 %v2392, %v2395
        %vm2398 = vmand %vm2286, %vm718
        %v2401 = vcombine.low %v2396, %v2397
        %v2403 = vunpack.c.l.s4 1966171168
        %v2404 = vunpack.c.0.s8 %v2403
        %v2405 = vlaneseq
        %v2406 = vshrl.u32 %v2405, 7
        %v2407 = vsub.s32 %v2404, %v2406
        %v2408 = vrot.slane %v2401, %v2407
        %v2410 = vunpack.c.l.s4 1966171168
        %v2411 = vunpack.c.0.s8 %v2410
        %v2412 = vlaneseq
        %v2413 = vshrl.u32 %v2412, 7
        %v2414 = vsub.s32 %v2411, %v2413
        %v2415 = vrot.slane %v2408, %v2414
        %v2417 = vsel %vm2398, %v2415, 0.0
        %v2418 = vadd.f32 %v2374, %v2417
        %2419 = vrot.lane.b32.xlu0 %v674, 96
        %v2420 = vpop.permute.xlu0 %2419
        %2421 = vrot.lane.b32.xlu0 %v683, 96
        %v2422 = vpop.permute.xlu0 %2421
        %vm2423 = vcmp.lt.s32.totalorder %v404, 96
        %v2424 = vsel %vm2423, %v2420, %v2422
        %v2425 = vsel %vm2423, %v2422, %v2420
        %2426 = vrot.lane.b32.xlu0 %v703, 96
        %v2427 = vpop.permute.xlu0 %2426
        %2428 = vrot.lane.b32.xlu0 %v704, 96
        %v2429 = vpop.permute.xlu0 %2428
        %v2430 = vsel %vm2423, %v2427, %v2429
        %v2431 = vsel %vm2423, %v2429, %v2427
        %s2432 = sld [smem:[#allocation7 + $0x26]]
        %s2433 = sld [smem:[#allocation7 + $0x57]]
        %v2434 = vstv %s2432
        %v2435 = vmul.f32 %v2434, %v2424
        %v2436 = vmul.f32 %v2434, %v2425
        %v2437 = vstv %s2433
        %v2438 = vmul.f32 %v2437, %v2430
        %v2439 = vmul.f32 %v2437, %v2431
        %v2440 = vadd.f32 %v2435, %v2438
        %v2441 = vadd.f32 %v2436, %v2439
        %vm2442 = vmand %vm2286, %vm721
        %v2445 = vcombine.low %v2440, %v2441
        %v2447 = vunpack.c.l.s4 1966171168
        %v2448 = vunpack.c.0.s8 %v2447
        %v2449 = vlaneseq
        %v2450 = vshrl.u32 %v2449, 7
        %v2451 = vsub.s32 %v2448, %v2450
        %v2452 = vrot.slane %v2445, %v2451
        %v2454 = vunpack.c.l.s4 1966171168
        %v2455 = vunpack.c.0.s8 %v2454
        %v2456 = vlaneseq
        %v2457 = vshrl.u32 %v2456, 7
        %v2458 = vsub.s32 %v2455, %v2457
        %v2459 = vrot.slane %v2452, %v2458
        %v2461 = vsel %vm2442, %v2459, 0.0
        %v2462 = vadd.f32 %v2418, %v2461
        %2463 = vrot.lane.b32.xlu0 %v674, 95
        %v2464 = vpop.permute.xlu0 %2463
        %2465 = vrot.lane.b32.xlu0 %v683, 95
        %v2466 = vpop.permute.xlu0 %2465
        %vm2467 = vcmp.lt.s32.totalorder %v404, 95
        %v2468 = vsel %vm2467, %v2464, %v2466
        %v2469 = vsel %vm2467, %v2466, %v2464
        %2470 = vrot.lane.b32.xlu0 %v703, 95
        %v2471 = vpop.permute.xlu0 %2470
        %2472 = vrot.lane.b32.xlu0 %v704, 95
        %v2473 = vpop.permute.xlu0 %2472
        %v2474 = vsel %vm2467, %v2471, %v2473
        %v2475 = vsel %vm2467, %v2473, %v2471
        %s2476 = sld [smem:[#allocation7 + $0x27]]
        %s2477 = sld [smem:[#allocation7 + $0x58]]
        %v2478 = vstv %s2476
        %v2479 = vmul.f32 %v2478, %v2468
        %v2480 = vmul.f32 %v2478, %v2469
        %v2481 = vstv %s2477
        %v2482 = vmul.f32 %v2481, %v2474
        %v2483 = vmul.f32 %v2481, %v2475
        %v2484 = vadd.f32 %v2479, %v2482
        %v2485 = vadd.f32 %v2480, %v2483
        %vm2486 = vmand %vm2286, %vm725
        %v2489 = vcombine.low %v2484, %v2485
        %v2491 = vunpack.c.l.s4 1966171168
        %v2492 = vunpack.c.0.s8 %v2491
        %v2493 = vlaneseq
        %v2494 = vshrl.u32 %v2493, 7
        %v2495 = vsub.s32 %v2492, %v2494
        %v2496 = vrot.slane %v2489, %v2495
        %v2498 = vunpack.c.l.s4 1966171168
        %v2499 = vunpack.c.0.s8 %v2498
        %v2500 = vlaneseq
        %v2501 = vshrl.u32 %v2500, 7
        %v2502 = vsub.s32 %v2499, %v2501
        %v2503 = vrot.slane %v2496, %v2502
        %v2505 = vsel %vm2486, %v2503, 0.0
        %v2506 = vadd.f32 %v2462, %v2505
        %2507 = vrot.lane.b32.xlu0 %v674, 94
        %v2508 = vpop.permute.xlu0 %2507
        %2509 = vrot.lane.b32.xlu0 %v683, 94
        %v2510 = vpop.permute.xlu0 %2509
        %vm2511 = vcmp.lt.s32.totalorder %v404, 94
        %v2512 = vsel %vm2511, %v2508, %v2510
        %v2513 = vsel %vm2511, %v2510, %v2508
        %2514 = vrot.lane.b32.xlu0 %v703, 94
        %v2515 = vpop.permute.xlu0 %2514
        %2516 = vrot.lane.b32.xlu0 %v704, 94
        %v2517 = vpop.permute.xlu0 %2516
        %v2518 = vsel %vm2511, %v2515, %v2517
        %v2519 = vsel %vm2511, %v2517, %v2515
        %s2520 = sld [smem:[#allocation7 + $0x28]]
        %s2521 = sld [smem:[#allocation7 + $0x59]]
        %v2522 = vstv %s2520
        %v2523 = vmul.f32 %v2522, %v2512
        %v2524 = vmul.f32 %v2522, %v2513
        %v2525 = vstv %s2521
        %v2526 = vmul.f32 %v2525, %v2518
        %v2527 = vmul.f32 %v2525, %v2519
        %v2528 = vadd.f32 %v2523, %v2526
        %v2529 = vadd.f32 %v2524, %v2527
        %vm2530 = vmand %vm2286, %vm729
        %v2533 = vcombine.low %v2528, %v2529
        %v2535 = vunpack.c.l.s4 1966171168
        %v2536 = vunpack.c.0.s8 %v2535
        %v2537 = vlaneseq
        %v2538 = vshrl.u32 %v2537, 7
        %v2539 = vsub.s32 %v2536, %v2538
        %v2540 = vrot.slane %v2533, %v2539
        %v2542 = vunpack.c.l.s4 1966171168
        %v2543 = vunpack.c.0.s8 %v2542
        %v2544 = vlaneseq
        %v2545 = vshrl.u32 %v2544, 7
        %v2546 = vsub.s32 %v2543, %v2545
        %v2547 = vrot.slane %v2540, %v2546
        %v2549 = vsel %vm2530, %v2547, 0.0
        %v2550 = vadd.f32 %v2506, %v2549
        %2551 = vrot.lane.b32.xlu0 %v674, 93
        %v2552 = vpop.permute.xlu0 %2551
        %2553 = vrot.lane.b32.xlu0 %v683, 93
        %v2554 = vpop.permute.xlu0 %2553
        %vm2555 = vcmp.lt.s32.totalorder %v404, 93
        %v2556 = vsel %vm2555, %v2552, %v2554
        %v2557 = vsel %vm2555, %v2554, %v2552
        %2558 = vrot.lane.b32.xlu0 %v703, 93
        %v2559 = vpop.permute.xlu0 %2558
        %2560 = vrot.lane.b32.xlu0 %v704, 93
        %v2561 = vpop.permute.xlu0 %2560
        %v2562 = vsel %vm2555, %v2559, %v2561
        %v2563 = vsel %vm2555, %v2561, %v2559
        %s2564 = sld [smem:[#allocation7 + $0x29]]
        %s2565 = sld [smem:[#allocation7 + $0x5a]]
        %v2566 = vstv %s2564
        %v2567 = vmul.f32 %v2566, %v2556
        %v2568 = vmul.f32 %v2566, %v2557
        %v2569 = vstv %s2565
        %v2570 = vmul.f32 %v2569, %v2562
        %v2571 = vmul.f32 %v2569, %v2563
        %v2572 = vadd.f32 %v2567, %v2570
        %v2573 = vadd.f32 %v2568, %v2571
        %vm2574 = vmand %vm2286, %vm733
        %v2577 = vcombine.low %v2572, %v2573
        %v2579 = vunpack.c.l.s4 1966171168
        %v2580 = vunpack.c.0.s8 %v2579
        %v2581 = vlaneseq
        %v2582 = vshrl.u32 %v2581, 7
        %v2583 = vsub.s32 %v2580, %v2582
        %v2584 = vrot.slane %v2577, %v2583
        %v2586 = vunpack.c.l.s4 1966171168
        %v2587 = vunpack.c.0.s8 %v2586
        %v2588 = vlaneseq
        %v2589 = vshrl.u32 %v2588, 7
        %v2590 = vsub.s32 %v2587, %v2589
        %v2591 = vrot.slane %v2584, %v2590
        %v2593 = vsel %vm2574, %v2591, 0.0
        %v2594 = vadd.f32 %v2550, %v2593
        %v2595 = vadd.s32 %v705, 3
        %vm2596 = vcmp.ge.s32.totalorder %v2595, 0
        %vm2597 = vcmp.lt.s32.totalorder %v2595, 16
        %vm2598 = vmand %vm2596, %vm2597
        %2599 = vrot.lane.b32.xlu0 %v674, 83
        %v2600 = vpop.permute.xlu0 %2599
        %2601 = vrot.lane.b32.xlu0 %v683, 83
        %v2602 = vpop.permute.xlu0 %2601
        %vm2603 = vcmp.lt.s32.totalorder %v404, 83
        %v2604 = vsel %vm2603, %v2600, %v2602
        %v2605 = vsel %vm2603, %v2602, %v2600
        %2606 = vrot.lane.b32.xlu0 %v703, 83
        %v2607 = vpop.permute.xlu0 %2606
        %2608 = vrot.lane.b32.xlu0 %v704, 83
        %v2609 = vpop.permute.xlu0 %2608
        %v2610 = vsel %vm2603, %v2607, %v2609
        %v2611 = vsel %vm2603, %v2609, %v2607
        %s2612 = sld [smem:[#allocation7 + $0x2a]]
        %s2613 = sld [smem:[#allocation7 + $0x5b]]
        %v2614 = vstv %s2612
        %v2615 = vmul.f32 %v2614, %v2604
        %v2616 = vmul.f32 %v2614, %v2605
        %v2617 = vstv %s2613
        %v2618 = vmul.f32 %v2617, %v2610
        %v2619 = vmul.f32 %v2617, %v2611
        %v2620 = vadd.f32 %v2615, %v2618
        %v2621 = vadd.f32 %v2616, %v2619
        %vm2622 = vmand %vm2598, %vm710
        %v2625 = vcombine.low %v2620, %v2621
        %v2627 = vunpack.c.l.s4 1966171168
        %v2628 = vunpack.c.0.s8 %v2627
        %v2629 = vlaneseq
        %v2630 = vshrl.u32 %v2629, 7
        %v2631 = vsub.s32 %v2628, %v2630
        %v2632 = vrot.slane %v2625, %v2631
        %v2634 = vunpack.c.l.s4 1966171168
        %v2635 = vunpack.c.0.s8 %v2634
        %v2636 = vlaneseq
        %v2637 = vshrl.u32 %v2636, 7
        %v2638 = vsub.s32 %v2635, %v2637
        %v2639 = vrot.slane %v2632, %v2638
        %v2641 = vsel %vm2622, %v2639, 0.0
        %v2642 = vadd.f32 %v2594, %v2641
        %2643 = vrot.lane.b32.xlu0 %v674, 82
        %v2644 = vpop.permute.xlu0 %2643
        %2645 = vrot.lane.b32.xlu0 %v683, 82
        %v2646 = vpop.permute.xlu0 %2645
        %vm2647 = vcmp.lt.s32.totalorder %v404, 82
        %v2648 = vsel %vm2647, %v2644, %v2646
        %v2649 = vsel %vm2647, %v2646, %v2644
        %2650 = vrot.lane.b32.xlu0 %v703, 82
        %v2651 = vpop.permute.xlu0 %2650
        %2652 = vrot.lane.b32.xlu0 %v704, 82
        %v2653 = vpop.permute.xlu0 %2652
        %v2654 = vsel %vm2647, %v2651, %v2653
        %v2655 = vsel %vm2647, %v2653, %v2651
        %s2656 = sld [smem:[#allocation7 + $0x2b]]
        %s2657 = sld [smem:[#allocation7 + $0x5c]]
        %v2658 = vstv %s2656
        %v2659 = vmul.f32 %v2658, %v2648
        %v2660 = vmul.f32 %v2658, %v2649
        %v2661 = vstv %s2657
        %v2662 = vmul.f32 %v2661, %v2654
        %v2663 = vmul.f32 %v2661, %v2655
        %v2664 = vadd.f32 %v2659, %v2662
        %v2665 = vadd.f32 %v2660, %v2663
        %vm2666 = vmand %vm2598, %vm714
        %v2669 = vcombine.low %v2664, %v2665
        %v2671 = vunpack.c.l.s4 1966171168
        %v2672 = vunpack.c.0.s8 %v2671
        %v2673 = vlaneseq
        %v2674 = vshrl.u32 %v2673, 7
        %v2675 = vsub.s32 %v2672, %v2674
        %v2676 = vrot.slane %v2669, %v2675
        %v2678 = vunpack.c.l.s4 1966171168
        %v2679 = vunpack.c.0.s8 %v2678
        %v2680 = vlaneseq
        %v2681 = vshrl.u32 %v2680, 7
        %v2682 = vsub.s32 %v2679, %v2681
        %v2683 = vrot.slane %v2676, %v2682
        %v2685 = vsel %vm2666, %v2683, 0.0
        %v2686 = vadd.f32 %v2642, %v2685
        %2687 = vrot.lane.b32.xlu0 %v674, 81
        %v2688 = vpop.permute.xlu0 %2687
        %2689 = vrot.lane.b32.xlu0 %v683, 81
        %v2690 = vpop.permute.xlu0 %2689
        %vm2691 = vcmp.lt.s32.totalorder %v404, 81
        %v2692 = vsel %vm2691, %v2688, %v2690
        %v2693 = vsel %vm2691, %v2690, %v2688
        %2694 = vrot.lane.b32.xlu0 %v703, 81
        %v2695 = vpop.permute.xlu0 %2694
        %2696 = vrot.lane.b32.xlu0 %v704, 81
        %v2697 = vpop.permute.xlu0 %2696
        %v2698 = vsel %vm2691, %v2695, %v2697
        %v2699 = vsel %vm2691, %v2697, %v2695
        %s2700 = sld [smem:[#allocation7 + $0x2c]]
        %s2701 = sld [smem:[#allocation7 + $0x5d]]
        %v2702 = vstv %s2700
        %v2703 = vmul.f32 %v2702, %v2692
        %v2704 = vmul.f32 %v2702, %v2693
        %v2705 = vstv %s2701
        %v2706 = vmul.f32 %v2705, %v2698
        %v2707 = vmul.f32 %v2705, %v2699
        %v2708 = vadd.f32 %v2703, %v2706
        %v2709 = vadd.f32 %v2704, %v2707
        %vm2710 = vmand %vm2598, %vm718
        %v2713 = vcombine.low %v2708, %v2709
        %v2715 = vunpack.c.l.s4 1966171168
        %v2716 = vunpack.c.0.s8 %v2715
        %v2717 = vlaneseq
        %v2718 = vshrl.u32 %v2717, 7
        %v2719 = vsub.s32 %v2716, %v2718
        %v2720 = vrot.slane %v2713, %v2719
        %v2722 = vunpack.c.l.s4 1966171168
        %v2723 = vunpack.c.0.s8 %v2722
        %v2724 = vlaneseq
        %v2725 = vshrl.u32 %v2724, 7
        %v2726 = vsub.s32 %v2723, %v2725
        %v2727 = vrot.slane %v2720, %v2726
        %v2729 = vsel %vm2710, %v2727, 0.0
        %v2730 = vadd.f32 %v2686, %v2729
        %2731 = vrot.lane.b32.xlu0 %v674, 80
        %v2732 = vpop.permute.xlu0 %2731
        %2733 = vrot.lane.b32.xlu0 %v683, 80
        %v2734 = vpop.permute.xlu0 %2733
        %vm2735 = vcmp.lt.s32.totalorder %v404, 80
        %v2736 = vsel %vm2735, %v2732, %v2734
        %v2737 = vsel %vm2735, %v2734, %v2732
        %2738 = vrot.lane.b32.xlu0 %v703, 80
        %v2739 = vpop.permute.xlu0 %2738
        %2740 = vrot.lane.b32.xlu0 %v704, 80
        %v2741 = vpop.permute.xlu0 %2740
        %v2742 = vsel %vm2735, %v2739, %v2741
        %v2743 = vsel %vm2735, %v2741, %v2739
        %s2744 = sld [smem:[#allocation7 + $0x2d]]
        %s2745 = sld [smem:[#allocation7 + $0x5e]]
        %v2746 = vstv %s2744
        %v2747 = vmul.f32 %v2746, %v2736
        %v2748 = vmul.f32 %v2746, %v2737
        %v2749 = vstv %s2745
        %v2750 = vmul.f32 %v2749, %v2742
        %v2751 = vmul.f32 %v2749, %v2743
        %v2752 = vadd.f32 %v2747, %v2750
        %v2753 = vadd.f32 %v2748, %v2751
        %vm2754 = vmand %vm2598, %vm721
        %v2757 = vcombine.low %v2752, %v2753
        %v2759 = vunpack.c.l.s4 1966171168
        %v2760 = vunpack.c.0.s8 %v2759
        %v2761 = vlaneseq
        %v2762 = vshrl.u32 %v2761, 7
        %v2763 = vsub.s32 %v2760, %v2762
        %v2764 = vrot.slane %v2757, %v2763
        %v2766 = vunpack.c.l.s4 1966171168
        %v2767 = vunpack.c.0.s8 %v2766
        %v2768 = vlaneseq
        %v2769 = vshrl.u32 %v2768, 7
        %v2770 = vsub.s32 %v2767, %v2769
        %v2771 = vrot.slane %v2764, %v2770
        %v2773 = vsel %vm2754, %v2771, 0.0
        %v2774 = vadd.f32 %v2730, %v2773
        %2775 = vrot.lane.b32.xlu0 %v674, 79
        %v2776 = vpop.permute.xlu0 %2775
        %2777 = vrot.lane.b32.xlu0 %v683, 79
        %v2778 = vpop.permute.xlu0 %2777
        %vm2779 = vcmp.lt.s32.totalorder %v404, 79
        %v2780 = vsel %vm2779, %v2776, %v2778
        %v2781 = vsel %vm2779, %v2778, %v2776
        %2782 = vrot.lane.b32.xlu0 %v703, 79
        %v2783 = vpop.permute.xlu0 %2782
        %2784 = vrot.lane.b32.xlu0 %v704, 79
        %v2785 = vpop.permute.xlu0 %2784
        %v2786 = vsel %vm2779, %v2783, %v2785
        %v2787 = vsel %vm2779, %v2785, %v2783
        %s2788 = sld [smem:[#allocation7 + $0x2e]]
        %s2789 = sld [smem:[#allocation7 + $0x5f]]
        %v2790 = vstv %s2788
        %v2791 = vmul.f32 %v2790, %v2780
        %v2792 = vmul.f32 %v2790, %v2781
        %v2793 = vstv %s2789
        %v2794 = vmul.f32 %v2793, %v2786
        %v2795 = vmul.f32 %v2793, %v2787
        %v2796 = vadd.f32 %v2791, %v2794
        %v2797 = vadd.f32 %v2792, %v2795
        %vm2798 = vmand %vm2598, %vm725
        %v2801 = vcombine.low %v2796, %v2797
        %v2803 = vunpack.c.l.s4 1966171168
        %v2804 = vunpack.c.0.s8 %v2803
        %v2805 = vlaneseq
        %v2806 = vshrl.u32 %v2805, 7
        %v2807 = vsub.s32 %v2804, %v2806
        %v2808 = vrot.slane %v2801, %v2807
        %v2810 = vunpack.c.l.s4 1966171168
        %v2811 = vunpack.c.0.s8 %v2810
        %v2812 = vlaneseq
        %v2813 = vshrl.u32 %v2812, 7
        %v2814 = vsub.s32 %v2811, %v2813
        %v2815 = vrot.slane %v2808, %v2814
        %v2817 = vsel %vm2798, %v2815, 0.0
        %v2818 = vadd.f32 %v2774, %v2817
        %2819 = vrot.lane.b32.xlu0 %v674, 78
        %v2820 = vpop.permute.xlu0 %2819
        %2821 = vrot.lane.b32.xlu0 %v683, 78
        %v2822 = vpop.permute.xlu0 %2821
        %vm2823 = vcmp.lt.s32.totalorder %v404, 78
        %v2824 = vsel %vm2823, %v2820, %v2822
        %v2825 = vsel %vm2823, %v2822, %v2820
        %2826 = vrot.lane.b32.xlu0 %v703, 78
        %v2827 = vpop.permute.xlu0 %2826
        %2828 = vrot.lane.b32.xlu0 %v704, 78
        %v2829 = vpop.permute.xlu0 %2828
        %v2830 = vsel %vm2823, %v2827, %v2829
        %v2831 = vsel %vm2823, %v2829, %v2827
        %s2832 = sld [smem:[#allocation7 + $0x2f]]
        %s2833 = sld [smem:[#allocation7 + $0x60]]
        %v2834 = vstv %s2832
        %v2835 = vmul.f32 %v2834, %v2824
        %v2836 = vmul.f32 %v2834, %v2825
        %v2837 = vstv %s2833
        %v2838 = vmul.f32 %v2837, %v2830
        %v2839 = vmul.f32 %v2837, %v2831
        %v2840 = vadd.f32 %v2835, %v2838
        %v2841 = vadd.f32 %v2836, %v2839
        %vm2842 = vmand %vm2598, %vm729
        %v2845 = vcombine.low %v2840, %v2841
        %v2847 = vunpack.c.l.s4 1966171168
        %v2848 = vunpack.c.0.s8 %v2847
        %v2849 = vlaneseq
        %v2850 = vshrl.u32 %v2849, 7
        %v2851 = vsub.s32 %v2848, %v2850
        %v2852 = vrot.slane %v2845, %v2851
        %v2854 = vunpack.c.l.s4 1966171168
        %v2855 = vunpack.c.0.s8 %v2854
        %v2856 = vlaneseq
        %v2857 = vshrl.u32 %v2856, 7
        %v2858 = vsub.s32 %v2855, %v2857
        %v2859 = vrot.slane %v2852, %v2858
        %v2861 = vsel %vm2842, %v2859, 0.0
        %v2862 = vadd.f32 %v2818, %v2861
        %2863 = vrot.lane.b32.xlu0 %v674, 77
        %v2864 = vpop.permute.xlu0 %2863
        %2865 = vrot.lane.b32.xlu0 %v683, 77
        %v2866 = vpop.permute.xlu0 %2865
        %vm2867 = vcmp.lt.s32.totalorder %v404, 77
        %v2868 = vsel %vm2867, %v2864, %v2866
        %v2869 = vsel %vm2867, %v2866, %v2864
        %2870 = vrot.lane.b32.xlu0 %v703, 77
        %v2871 = vpop.permute.xlu0 %2870
        %2872 = vrot.lane.b32.xlu0 %v704, 77
        %v2873 = vpop.permute.xlu0 %2872
        %v2874 = vsel %vm2867, %v2871, %v2873
        %v2875 = vsel %vm2867, %v2873, %v2871
        %s2876 = sld [smem:[#allocation7 + $0x30]]
        %s2877 = sld [smem:[#allocation7 + $0x61]]
        %v2878 = vstv %s2876
        %v2879 = vmul.f32 %v2878, %v2868
        %v2880 = vmul.f32 %v2878, %v2869
        %v2881 = vstv %s2877
        %v2882 = vmul.f32 %v2881, %v2874
        %v2883 = vmul.f32 %v2881, %v2875
        %v2884 = vadd.f32 %v2879, %v2882
        %v2885 = vadd.f32 %v2880, %v2883
        %vm2886 = vmand %vm2598, %vm733
        %v2889 = vcombine.low %v2884, %v2885
        %v2891 = vunpack.c.l.s4 1966171168
        %v2892 = vunpack.c.0.s8 %v2891
        %v2893 = vlaneseq
        %v2894 = vshrl.u32 %v2893, 7
        %v2895 = vsub.s32 %v2892, %v2894
        %v2896 = vrot.slane %v2889, %v2895
        %v2898 = vunpack.c.l.s4 1966171168
        %v2899 = vunpack.c.0.s8 %v2898
        %v2900 = vlaneseq
        %v2901 = vshrl.u32 %v2900, 7
        %v2902 = vsub.s32 %v2899, %v2901
        %v2903 = vrot.slane %v2896, %v2902
        %v2905 = vsel %vm2886, %v2903, 0.0
        %v2906 = vadd.f32 %v2862, %v2905
        %v2907 = vxor.u32 %v2906, 2147483648
        %v2908 = vmul.f32 %v2907, 1.442695
        %v2909 = vpow.pop %v2908
        %v2910 = vadd.f32 %v2909, 1.0
        %v2911 = vrcp.pop %v2910
        %v2912 = vmul.f32 1.0, %v2911
        %v2914 = vlaneseq
        %v2915 = vshrl.u32 %v2914, 7
        %v2916 = vsub.s32 0, %v2915
        %v2917 = vrot.slane %v2912, %v2916
        %v2918 = vlaneseq
        %v2919 = vshrl.u32 %v2918, 7
        %v2920 = vsub.s32 1, %v2919
        %v2921 = vrot.slane %v2912, %v2920
        %v2924 = vmul.f32 %v658, %v2917
        %v2925 = vmul.f32 %v659, %v2921
        %v2926 = vmul.f32 %v660, %v2917
        %v2927 = vmul.f32 %v661, %v2921
        %v2928 = vmul.f32 %v662, %v2917
        %v2929 = vmul.f32 %v663, %v2921
        %v2930 = vmul.f32 %v664, %v2917
        %v2931 = vmul.f32 %v665, %v2921
        %2932 = vst [vmem:[%s365] sm:$0xff] %v2924
        %2933 = vst [vmem:[%s365 + $0x8] sm:$0xff] %v2925
        %2934 = vst [vmem:[%s365 + $0x10] sm:$0xff] %v2926
        %2935 = vst [vmem:[%s365 + $0x18] sm:$0xff] %v2927
        %2936 = vst [vmem:[%s365 + $0x20] sm:$0xff] %v2928
        %2937 = vst [vmem:[%s365 + $0x28] sm:$0xff] %v2929
        %2938 = vst [vmem:[%s365 + $0x30] sm:$0xff] %v2930
        %2939 = vst [vmem:[%s365 + $0x38] sm:$0xff] %v2931
        %s2940 = sand.u32 %s230, 1
        %s2941 = scalar_lea.sflag [#allocation5], %s2940
        %s2942 = sand.u32 %s230, 1
        %s2943 = smul.addr %s2942, 64
        %s2944 = scalar_lea.vmem [#allocation8], %s2943
        // Predicated region
        $region65: #{tpu_custom_call.1} parent=55 // pred_check
          %p2945 = pneg %p240
        $region66: #{tpu_custom_call.1} parent=55 // pred_check_branch
          %2947 = sbr.rel (%p2945) target = $region68
        $region67: #{tpu_custom_call.1} parent=55 // pred_region
          %s2949 = ssub.s32 1024, 1024
          %2950 = vsyncadd %s2941, %s2949
          %s2951 = smul.addr %s28, 8
          %s2952 = smul.addr %s2951, 128
          %s2953 = scalar_lea.hbm %s9, %s2952
          %s2954 = sshll.u32 %s2944, 4
          %s2955 = int_to_ptr.vmem [resolvable:$true] %s2954
          %2960 = dma.vmem_to_hbm [thread:$0]  %s2955, 1024, %s2953, %s2941, 256, 256, 16
        $region68: #{tpu_custom_call.1} parent=55 // pred_fallthru
          _
      $region56: #{tpu_custom_call.1} parent=5 // pred_fallthru
        _
      %p2961 = scmp.le.s32.totalorder 2, %s23
      // Predicated region
      $region69: #{tpu_custom_call.1} parent=5 // pred_check
        %p2962 = pneg %p2961
      $region70: #{tpu_custom_call.1} parent=5 // pred_check_branch
        %2964 = sbr.rel (%p2962) target = $region72
      $region71: #{tpu_custom_call.1} parent=5 // pred_region
        %s2965 = ssub.s32 %s23, 2
        // Predicated region
        $region73: #{tpu_custom_call.1} parent=71 // pred_check
          %p2966 = pneg %p246
        $region74: #{tpu_custom_call.1} parent=71 // pred_check_branch
          %2968 = sbr.rel (%p2966) target = $region76
        $region75: #{tpu_custom_call.1} parent=71 // pred_region
          %s2969 = sand.u32 %s231, 1
          %s2970 = scalar_lea.sflag [#allocation5], %s2969
          %s2971 = sand.u32 %s231, 1
          %s2972 = smul.addr %s2971, 64
          %s2973 = scalar_lea.vmem [#allocation8], %s2972
          %2974 = dma.done %s2970, 1024
        $region76: #{tpu_custom_call.1} parent=71 // pred_fallthru
          _
      $region72: #{tpu_custom_call.1} parent=5 // pred_fallthru
        _
    $region6: #{tpu_custom_call.1} parent=1 // loop_footer
      %s27 = sadd.s32 1, %s23
    $region7: #{tpu_custom_call.1} parent=1 // loop_footer_branch
      %22 = sbr.rel target = $region3
    $region8: #{tpu_custom_call.1} parent=1 // loop_exit
      _
    %2975 = vsyncpa [#allocation4], 1
    %s2976 = scalar_lea.sflag [#allocation4], 1
    %2977 = vsyncpa %s2976, 1
    %2978 = vsyncpa [#allocation5], 1
    %s2979 = scalar_lea.sflag [#allocation5], 1
    %2980 = vsyncpa %s2979, 1
    %2981 = vsyncpa [#allocation6], 1
    %s2982 = scalar_lea.sflag [#allocation6], 1
    %2983 = vsyncpa %s2982, 1

</llo_original>
